<compile_context>
chip_gen: v7x
topology: tpu7x:2x2x1
jax: 0.10.0
libtpu: 0.0.40
codegen_flags: <defaults>
</compile_context>

<pallas_src>
import jax
import jax.numpy as jnp
from jax.experimental import pallas as pl
from jax.experimental.pallas import tpu as pltpu

NUM_CLASSES = 20          # small, deterministic choice for num_classes
FEAT_C = 2048             # backbone output channels (fixed by fc1 = Linear(2048, 512))
FEAT_HW = 7               # backbone output spatial size (fixed by MaxPool2d(7, 7))
HW2 = FEAT_HW * FEAT_HW   # 49
HIDDEN = 512
OUT_PAD = 128             # lane-dense padded fc2 output width (>= num_classes)


def resnet_head_kernel(feat_ref, w1_ref, b1_ref, w2_ref, b2_ref, out_ref):
    """feat_ref: [TN, 49, 2048] (channel-last), backbone dtype (f32 or bf16);
    w1_ref: [2048, 512] bf16; b1_ref: [1, 512] f32;
    w2_ref: [512, OUT_PAD] bf16; b2_ref: [1, OUT_PAD] f32;
    out_ref: [TN, OUT_PAD] f32."""
    # MaxPool2d(7, 7) over the full 7x7 window == max over the spatial axis (axis=1).
    # Channel-last keeps channels on lanes: the reduce is a handful of vreg-wise
    # maxes (+ one sublane fold) instead of thousands of cross-lane XLU reduces.
    pooled = jnp.max(feat_ref[...], axis=1)                           # [TN, 2048]

    # fc1: Linear(2048, 512) on the MXU (bf16 operands, f32 accumulation).
    h = jnp.dot(pooled.astype(jnp.bfloat16), w1_ref[...],
                preferred_element_type=jnp.float32)
    h = h + b1_ref[...]                                               # f32

    # LeakyReLU(negative_slope=0.2) in f32 (v5e has no bf16 VPU path).
    h = jnp.where(h > 0, h, 0.2 * h)

    # fc2: Linear(512, num_classes) on the MXU, output kept lane-dense (OUT_PAD).
    o = jnp.dot(h.astype(w2_ref.dtype), w2_ref[...],
                preferred_element_type=jnp.float32)
    out_ref[...] = (o + b2_ref[...]).astype(out_ref.dtype)


def prepare_params(params, num_classes=NUM_CLASSES):
    """One-time conversion of PyTorch-layout weights to kernel layout:
    pre-transposed [in, out], bf16 matmul operands, lane-padded fc2 columns."""
    w1 = params["fc1_w"].T.astype(jnp.bfloat16)                       # [2048, 512]
    b1 = params["fc1_b"].reshape(1, -1).astype(jnp.float32)           # [1, 512]
    w2 = params["fc2_w"].T.astype(jnp.bfloat16)                       # [512, C]
    b2 = params["fc2_b"].reshape(1, -1).astype(jnp.float32)           # [1, C]
    pad = OUT_PAD - num_classes
    w2 = jnp.pad(w2, ((0, 0), (0, pad)))                              # [512, OUT_PAD]
    b2 = jnp.pad(b2, ((0, 0), (0, pad)))                              # [1, OUT_PAD]
    return {"w1": w1, "b1": b1, "w2": w2, "b2": b2}


def _round_up(x, m):
    return -(-x // m) * m


def _pick_tile_n(n, feat_itemsize, max_tile=64):
    """Batch-tile size: biggest tile whose double-buffered feature block fits a
    ~13 MiB per-buffer budget (safe on v7x's 64 MiB VMEM; bf16 -> 64, f32 -> 32),
    multiple of 8 unless it covers the whole (small) batch, and small enough to
    give >= 2 grid steps when the batch allows it (v7x has 2 TensorCores)."""
    budget = 13 * 1024 * 1024
    per_sample = HW2 * FEAT_C * feat_itemsize
    cap = min(max_tile, max(8, (budget // per_sample) // 8 * 8))
    if n > cap:
        return int(cap)
    if n >= 16:
        return int(min(cap, _round_up(_round_up(n, 2) // 2, 8)))
    return int(n)  # single block covering the whole tiny batch


def resnet_forward(feature_nhwc, inp, kparams, num_classes=NUM_CLASSES, max_tile_n=64):
    """feature_nhwc: backbone output [N, 7, 7, 2048] (channel-last, the layout an
    XLA/TPU backbone naturally emits; an NCHW tensor should be transposed once
    upstream / fused into the backbone's last op rather than per-call here).
    `inp` is accepted (to match forward(feature, inp)) but unused, exactly as in
    the PyTorch module. `kparams` are the prepared (pre-transposed) weights."""
    del inp  # unused by Resnet.forward
    n, h, w, c = feature_nhwc.shape
    assert c == FEAT_C and h == FEAT_HW and w == FEAT_HW

    # Free channel-last view (no data movement): [N, 7, 7, 2048] -> [N, 49, 2048].
    # No wrapper-side dtype cast: the kernel consumes the backbone dtype directly
    # and casts after pooling (avoids an extra full HBM pass over the feature map).
    feat = feature_nhwc.reshape(n, HW2, FEAT_C)

    tile_n = _pick_tile_n(n, feat.dtype.itemsize, max_tile_n)
    grid = (pl.cdiv(n, tile_n),)  # ragged last tile allowed; garbage rows sliced off

    cost = pl.CostEstimate(
        flops=2 * n * (FEAT_C * HIDDEN + HIDDEN * OUT_PAD),
        transcendentals=0,
        bytes_accessed=(int(feat.size) * feat.dtype.itemsize
                        + sum(int(v.size) * v.dtype.itemsize for v in kparams.values())
                        + n * OUT_PAD * 4),
    )

    out = pl.pallas_call(
        resnet_head_kernel,
        out_shape=jax.ShapeDtypeStruct((n, OUT_PAD), jnp.float32),
        grid=grid,
        in_specs=[
            # Feature tile marches over the batch (double-buffered, lane-dense rows).
            pl.BlockSpec((tile_n, HW2, FEAT_C), lambda i: (i, 0, 0)),
            # Weights / biases: constant index_map -> fetched once, VMEM-resident.
            # (pipeline_mode=pl.Buffered(1) would save one redundant weight copy;
            #  omitted since the VMEM budget already has ample headroom.)
            pl.BlockSpec((FEAT_C, HIDDEN), lambda i: (0, 0)),
            pl.BlockSpec((1, HIDDEN), lambda i: (0, 0)),
            pl.BlockSpec((HIDDEN, OUT_PAD), lambda i: (0, 0)),
            pl.BlockSpec((1, OUT_PAD), lambda i: (0, 0)),
        ],
        out_specs=pl.BlockSpec((tile_n, OUT_PAD), lambda i: (i, 0)),
        compiler_params=pltpu.CompilerParams(
            dimension_semantics=("parallel",),
            vmem_limit_bytes=48 * 1024 * 1024,  # above v5e's 16 MiB default, under v7x's 64 MiB
        ),
        cost_estimate=cost,
    )(feat, kparams["w1"], kparams["b1"], kparams["w2"], kparams["b2"])

    return out[:, :num_classes]


def init_params(key, num_classes=NUM_CLASSES):
    """Deterministic init matching the shapes of fc1/fc2 in the PyTorch module
    (torch.nn.Linear default: U(-1/sqrt(fan_in), 1/sqrt(fan_in)))."""
    k1, k2, k3, k4 = jax.random.split(key, 4)
    bound1 = 1.0 / jnp.sqrt(FEAT_C)
    bound2 = 1.0 / jnp.sqrt(HIDDEN)
    return {
        "fc1_w": jax.random.uniform(k1, (HIDDEN, FEAT_C), jnp.float32, -bound1, bound1),
        "fc1_b": jax.random.uniform(k2, (HIDDEN,), jnp.float32, -bound1, bound1),
        "fc2_w": jax.random.uniform(k3, (num_classes, HIDDEN), jnp.float32, -bound2, bound2),
        "fc2_b": jax.random.uniform(k4, (num_classes,), jnp.float32, -bound2, bound2),
    }


if __name__ == "__main__":
    key = jax.random.PRNGKey(0)
    k_feat, k_inp, k_param = jax.random.split(key, 3)

    batch = 2
    # Backbone output feature map (what self.features(...) would have produced),
    # in the channel-last layout a TPU backbone emits; consumed as-is (no cast).
    feature = jax.random.normal(k_feat, (batch, FEAT_HW, FEAT_HW, FEAT_C), jnp.float32)
    # `inp` (label word embeddings) — unused by forward, kept for signature parity.
    inp = jax.random.normal(k_inp, (NUM_CLASSES, 300), jnp.float32)

    params = init_params(k_param)
    kparams = prepare_params(params, NUM_CLASSES)  # one-time, hoisted off the hot path

    out = resnet_forward(feature, inp, kparams)
    out = jax.block_until_ready(out)

    # Pure-JAX f32 reference of the head math.
    pooled_ref = jnp.max(feature.reshape(batch, HW2, FEAT_C), axis=1)
    h_ref = pooled_ref @ params["fc1_w"].T + params["fc1_b"]
    h_ref = jnp.where(h_ref > 0, h_ref, 0.2 * h_ref)
    ref = h_ref @ params["fc2_w"].T + params["fc2_b"]

    assert out.shape == (batch, NUM_CLASSES)
    # bf16 matmul operands (pooled activations + weights) with f32 accumulation
    # vs a full-f32 reference — intentional precision trade for MXU throughput.
    assert jnp.allclose(out, ref, atol=5e-2, rtol=5e-2), float(jnp.max(jnp.abs(out - ref)))

    print("KERNEL_OK")
</pallas_src>

<mosaic_0001>
module attributes {stable_mosaic.version = 11 : i64} {
  func.func @resnet_head_kernel(%arg0: i32, %arg1: memref<2x49x2048xf32, #tpu.memory_space<vmem>>, %arg2: memref<2048x512xbf16, #tpu.memory_space<vmem>>, %arg3: memref<1x512xf32, #tpu.memory_space<vmem>>, %arg4: memref<512x128xbf16, #tpu.memory_space<vmem>>, %arg5: memref<1x128xf32, #tpu.memory_space<vmem>>, %arg6: memref<2x128xf32, #tpu.memory_space<vmem>>) attributes {dimension_semantics = [#tpu.dimension_semantics<parallel>], iteration_bounds = array<i64: 1>, scalar_prefetch = 0 : i64, scratch_operands = 0 : i64, tpu.core_type = #tpu.core_type<tc>, window_params = [{transform_indices = @transform_0, window_bounds = array<i64: 2, 49, 2048>}, {pipeline_mode = #tpu.pipeline_mode<synchronous>, transform_indices = @transform_1, window_bounds = array<i64: 2048, 512>}, {pipeline_mode = #tpu.pipeline_mode<synchronous>, transform_indices = @transform_2, window_bounds = array<i64: 1, 512>}, {pipeline_mode = #tpu.pipeline_mode<synchronous>, transform_indices = @transform_3, window_bounds = array<i64: 512, 128>}, {pipeline_mode = #tpu.pipeline_mode<synchronous>, transform_indices = @transform_4, window_bounds = array<i64: 1, 128>}, {transform_indices = @transform_5, window_bounds = array<i64: 2, 128>}]} {
    %c0 = arith.constant 0 : index
    %c0_0 = arith.constant 0 : index
    %c0_1 = arith.constant 0 : index
    %0 = vector.load %arg1[%c0, %c0_0, %c0_1] : memref<2x49x2048xf32, #tpu.memory_space<vmem>>, vector<2x49x2048xf32>
    %cst = arith.constant dense<0xFF800000> : vector<2x2048xf32>
    %1 = vector.multi_reduction <maximumf>, %0, %cst [1] : vector<2x49x2048xf32> to vector<2x2048xf32>
    %2 = arith.truncf %1 : vector<2x2048xf32> to vector<2x2048xbf16>
    %c0_2 = arith.constant 0 : index
    %c0_3 = arith.constant 0 : index
    %3 = vector.load %arg2[%c0_2, %c0_3] : memref<2048x512xbf16, #tpu.memory_space<vmem>>, vector<2048x512xbf16>
    %cst_4 = arith.constant dense<0.000000e+00> : vector<2x512xf32>
    %4 = tpu.matmul %2, %3, %cst_4 {dimension_numbers = #tpu.dot_dimension_numbers<[1], [0], [0], [1], [0, 0, 1, 1], [], []>} : vector<2x2048xbf16>, vector<2048x512xbf16>, vector<2x512xf32> -> vector<2x512xf32>
    %c0_5 = arith.constant 0 : index
    %c0_6 = arith.constant 0 : index
    %5 = vector.load %arg3[%c0_5, %c0_6] : memref<1x512xf32, #tpu.memory_space<vmem>>, vector<1x512xf32>
    %6 = vector.broadcast %5 : vector<1x512xf32> to vector<2x512xf32>
    %7 = arith.addf %4, %6 : vector<2x512xf32>
    %cst_7 = arith.constant 0.000000e+00 : f32
    %8 = vector.broadcast %cst_7 : f32 to vector<2x512xf32>
    %9 = arith.cmpf ogt, %7, %8 : vector<2x512xf32>
    %cst_8 = arith.constant 2.000000e-01 : f32
    %10 = vector.broadcast %cst_8 : f32 to vector<2x512xf32>
    %11 = arith.mulf %10, %7 : vector<2x512xf32>
    %12 = arith.select %9, %7, %11 : vector<2x512xi1>, vector<2x512xf32>
    %13 = arith.truncf %12 : vector<2x512xf32> to vector<2x512xbf16>
    %c0_9 = arith.constant 0 : index
    %c0_10 = arith.constant 0 : index
    %14 = vector.load %arg4[%c0_9, %c0_10] : memref<512x128xbf16, #tpu.memory_space<vmem>>, vector<512x128xbf16>
    %cst_11 = arith.constant dense<0.000000e+00> : vector<2x128xf32>
    %15 = tpu.matmul %13, %14, %cst_11 {dimension_numbers = #tpu.dot_dimension_numbers<[1], [0], [0], [1], [0, 0, 1, 1], [], []>} : vector<2x512xbf16>, vector<512x128xbf16>, vector<2x128xf32> -> vector<2x128xf32>
    %c0_12 = arith.constant 0 : index
    %c0_13 = arith.constant 0 : index
    %16 = vector.load %arg5[%c0_12, %c0_13] : memref<1x128xf32, #tpu.memory_space<vmem>>, vector<1x128xf32>
    %17 = vector.broadcast %16 : vector<1x128xf32> to vector<2x128xf32>
    %18 = arith.addf %15, %17 : vector<2x128xf32>
    %c0_14 = arith.constant 0 : index
    %c0_15 = arith.constant 0 : index
    %19 = vector.load %arg6[%c0_14, %c0_15] : memref<2x128xf32, #tpu.memory_space<vmem>>, vector<2x128xf32>
    tpu.vector_store %arg6[%c0_14, %c0_15], %18 {strides = array<i32>} : memref<2x128xf32, #tpu.memory_space<vmem>>, vector<2x128xf32>,
    return
  }
  func.func @transform_0(%arg0: i32) -> (i32, i32, i32) {
    %c0_i32 = arith.constant 0 : i32
    %c0_i32_0 = arith.constant 0 : i32
    %c0_i32_1 = arith.constant 0 : i32
    return %arg0, %c0_i32, %c0_i32_0 : i32, i32, i32
  }
  func.func @transform_1(%arg0: i32) -> (i32, i32) {
    %c0_i32 = arith.constant 0 : i32
    %c0_i32_0 = arith.constant 0 : i32
    %c0_i32_1 = arith.constant 0 : i32
    return %c0_i32, %c0_i32_0 : i32, i32
  }
  func.func @transform_2(%arg0: i32) -> (i32, i32) {
    %c0_i32 = arith.constant 0 : i32
    %c0_i32_0 = arith.constant 0 : i32
    %c0_i32_1 = arith.constant 0 : i32
    return %c0_i32, %c0_i32_0 : i32, i32
  }
  func.func @transform_3(%arg0: i32) -> (i32, i32) {
    %c0_i32 = arith.constant 0 : i32
    %c0_i32_0 = arith.constant 0 : i32
    %c0_i32_1 = arith.constant 0 : i32
    return %c0_i32, %c0_i32_0 : i32, i32
  }
  func.func @transform_4(%arg0: i32) -> (i32, i32) {
    %c0_i32 = arith.constant 0 : i32
    %c0_i32_0 = arith.constant 0 : i32
    %c0_i32_1 = arith.constant 0 : i32
    return %c0_i32, %c0_i32_0 : i32, i32
  }
  func.func @transform_5(%arg0: i32) -> (i32, i32) {
    %c0_i32 = arith.constant 0 : i32
    %c0_i32_0 = arith.constant 0 : i32
    return %arg0, %c0_i32 : i32, i32
  }
}

</mosaic_0001>

<llo_original>
// kernel: tpu_custom_call.1
$region0: #{tpu_custom_call.1}
  #allocation0 [shape = 'u32[]', space=smem, size = 0x4, offset = 0x4, fixed_abs, tag = 'smem constant byte address 0x4 - core index']
  #allocation1 [shape = 'u32[144,128]{1,0:T(1,128)}', space=vmem, size = 0x12000, scoped, tag = 'internal scratch']
  %s0 = inlined_call_operand.vmem [shape: f32[2,49,2048], index: 0, kind: input, shape index: {}]
  %s1 = inlined_call_operand.hbm [shape: bf16[2048,512], index: 1, kind: input, shape index: {}]
  %s2 = inlined_call_operand.hbm [shape: f32[1,512], index: 2, kind: input, shape index: {}]
  %s3 = inlined_call_operand.hbm [shape: bf16[512,128], index: 3, kind: input, shape index: {}]
  %s4 = inlined_call_operand.hbm [shape: f32[1,128], index: 4, kind: input, shape index: {}]
  %s5 = inlined_call_operand.hbm [shape: f32[2,128], index: 5, kind: output, shape index: {}]
  %s6 = sld [smem:[#allocation0]]
  $region46: #{tpu_custom_call.1} parent=0
    _
  %s8 = ssub.s32 1, %s6
  %s9 = scalar_select 0, %s8, %s6
  $region1: #{tpu_custom_call.1} parent=0
    #allocation2 [shape = 'u8[2097152]{0}', space=vmem, size = 0x200000, scoped, tag = 'input window, operand 1, single buffered']
    #allocation3 [shape = 's32[1]{0}', space=sflag, size = 0x4, scoped, tag = 'scoped memory for tpu_custom_call.1']
    #allocation4 [shape = 's32[1]{0}', space=sflag, size = 0x4, scoped, tag = 'scoped memory for tpu_custom_call.1']
    #allocation5 [shape = 'u8[2048]{0}', space=vmem, size = 0x800, scoped, tag = 'input window, operand 2, single buffered']
    #allocation6 [shape = 's32[1]{0}', space=sflag, size = 0x4, scoped, tag = 'scoped memory for tpu_custom_call.1']
    #allocation7 [shape = 'u8[131072]{0}', space=vmem, size = 0x20000, scoped, tag = 'input window, operand 3, single buffered']
    #allocation8 [shape = 'u8[512]{0}', space=vmem, size = 0x400, scoped, tag = 'input window, operand 4, single buffered']
    #allocation9 [shape = 's32[1]{0}', space=sflag, size = 0x4, scoped, tag = 'scoped memory for tpu_custom_call.1']
    #allocation10 [shape = 'u8[1024]{0}', space=vmem, size = 0x400, scoped, tag = 'output window, operand 0, single buffered']
    %10 = vsyncpa [#allocation3], 0
    %11 = vsyncpa [#allocation6], 0
    %12 = vsyncpa [#allocation9], 0
    %13 = vsyncpa [#allocation4], 0
    // Predicated region
    $region2: #{tpu_custom_call.1} parent=1 // pred_check
      _
    $region3: #{tpu_custom_call.1} parent=1 // pred_check_branch
      %15 = sbr.rel (0) target = $region5
    $region4: #{tpu_custom_call.1} parent=1 // pred_region
      _
    $region5: #{tpu_custom_call.1} parent=1 // pred_fallthru
      _
    // Predicated region
    $region6: #{tpu_custom_call.1} parent=1 // pred_check
      _
    $region7: #{tpu_custom_call.1} parent=1 // pred_check_branch
      %17 = sbr.rel (0) target = $region9
    $region8: #{tpu_custom_call.1} parent=1 // pred_region
      %s19 = ssub.s32 65536, 65536
      %20 = vsyncadd [#allocation3], %s19
      %s21 = sshll.u32 [#allocation2], 4
      %s22 = int_to_ptr.vmem [resolvable:$true] %s21
      %27 = dma.hbm_to_vmem [thread:$0]  %s1, 65536, %s22, [#allocation3], 256, 256, 16
    $region9: #{tpu_custom_call.1} parent=1 // pred_fallthru
      _
    // Predicated region
    $region10: #{tpu_custom_call.1} parent=1 // pred_check
      _
    $region11: #{tpu_custom_call.1} parent=1 // pred_check_branch
      %29 = sbr.rel (0) target = $region13
    $region12: #{tpu_custom_call.1} parent=1 // pred_region
      %s31 = ssub.s32 64, 64
      %32 = vsyncadd [#allocation6], %s31
      %s34 = sshll.u32 [#allocation5], 4
      %s35 = int_to_ptr.vmem [resolvable:$true] %s34
      %37 = dma.hbm_to_vmem [thread:$0]  %s2, 64, %s35, [#allocation6]
    $region13: #{tpu_custom_call.1} parent=1 // pred_fallthru
      _
    // Predicated region
    $region14: #{tpu_custom_call.1} parent=1 // pred_check
      _
    $region15: #{tpu_custom_call.1} parent=1 // pred_check_branch
      %39 = sbr.rel (0) target = $region17
    $region16: #{tpu_custom_call.1} parent=1 // pred_region
      %s41 = ssub.s32 4096, 4096
      %42 = vsyncadd [#allocation6], %s41
      %s43 = sshll.u32 [#allocation7], 4
      %s44 = int_to_ptr.vmem [resolvable:$true] %s43
      %49 = dma.hbm_to_vmem [thread:$0]  %s3, 4096, %s44, [#allocation6], 64, 64, 4
    $region17: #{tpu_custom_call.1} parent=1 // pred_fallthru
      _
    // Predicated region
    $region18: #{tpu_custom_call.1} parent=1 // pred_check
      _
    $region19: #{tpu_custom_call.1} parent=1 // pred_check_branch
      %51 = sbr.rel (0) target = $region21
    $region20: #{tpu_custom_call.1} parent=1 // pred_region
      %s53 = ssub.s32 16, 16
      %54 = vsyncadd [#allocation9], %s53
      %s56 = sshll.u32 [#allocation8], 4
      %s57 = int_to_ptr.vmem [resolvable:$true] %s56
      %59 = dma.hbm_to_vmem [thread:$0]  %s4, 16, %s57, [#allocation9]
    $region21: #{tpu_custom_call.1} parent=1 // pred_fallthru
      _
    // Predicated region
    $region22: #{tpu_custom_call.1} parent=1 // pred_check
      _
    $region23: #{tpu_custom_call.1} parent=1 // pred_check_branch
      %61 = sbr.rel (0) target = $region25
    $region24: #{tpu_custom_call.1} parent=1 // pred_region
      %62 = dma.done [#allocation3], 65536
    $region25: #{tpu_custom_call.1} parent=1 // pred_fallthru
      _
    // Predicated region
    $region26: #{tpu_custom_call.1} parent=1 // pred_check
      _
    $region27: #{tpu_custom_call.1} parent=1 // pred_check_branch
      %64 = sbr.rel (0) target = $region29
    $region28: #{tpu_custom_call.1} parent=1 // pred_region
      %65 = dma.done [#allocation6], 64
    $region29: #{tpu_custom_call.1} parent=1 // pred_fallthru
      _
    // Predicated region
    $region30: #{tpu_custom_call.1} parent=1 // pred_check
      _
    $region31: #{tpu_custom_call.1} parent=1 // pred_check_branch
      %67 = sbr.rel (0) target = $region33
    $region32: #{tpu_custom_call.1} parent=1 // pred_region
      %68 = dma.done [#allocation6], 4096
    $region33: #{tpu_custom_call.1} parent=1 // pred_fallthru
      _
    // Predicated region
    $region34: #{tpu_custom_call.1} parent=1 // pred_check
      _
    $region35: #{tpu_custom_call.1} parent=1 // pred_check_branch
      %70 = sbr.rel (0) target = $region37
    $region36: #{tpu_custom_call.1} parent=1 // pred_region
      %71 = dma.done [#allocation9], 16
    $region37: #{tpu_custom_call.1} parent=1 // pred_fallthru
      _
    %v73 = vld [vmem:[%s0] sm:$0xff]
    %v74 = vld [vmem:[%s0 + $0x8] sm:$0xff]
    %v75 = vld [vmem:[%s0 + $0x10] sm:$0xff]
    %v76 = vld [vmem:[%s0 + $0x18] sm:$0xff]
    %v77 = vld [vmem:[%s0 + $0x20] sm:$0xff]
    %v78 = vld [vmem:[%s0 + $0x28] sm:$0xff]
    %v79 = vld [vmem:[%s0 + $0x30] sm:$0xff]
    %v80 = vld [vmem:[%s0 + $0x38] sm:$0xff]
    %v81 = vld [vmem:[%s0 + $0x40] sm:$0xff]
    %v82 = vld [vmem:[%s0 + $0x48] sm:$0xff]
    %v83 = vld [vmem:[%s0 + $0x50] sm:$0xff]
    %v84 = vld [vmem:[%s0 + $0x58] sm:$0xff]
    %v85 = vld [vmem:[%s0 + $0x60] sm:$0xff]
    %v86 = vld [vmem:[%s0 + $0x68] sm:$0xff]
    %v87 = vld [vmem:[%s0 + $0x70] sm:$0xff]
    %v88 = vld [vmem:[%s0 + $0x78] sm:$0xff]
    %v89 = vld [vmem:[%s0 + $0x80] sm:$0xff]
    %v90 = vld [vmem:[%s0 + $0x88] sm:$0xff]
    %v91 = vld [vmem:[%s0 + $0x90] sm:$0xff]
    %v92 = vld [vmem:[%s0 + $0x98] sm:$0xff]
    %v93 = vld [vmem:[%s0 + $0xa0] sm:$0xff]
    %v94 = vld [vmem:[%s0 + $0xa8] sm:$0xff]
    %v95 = vld [vmem:[%s0 + $0xb0] sm:$0xff]
    %v96 = vld [vmem:[%s0 + $0xb8] sm:$0xff]
    %v97 = vld [vmem:[%s0 + $0xc0] sm:$0xff]
    %v98 = vld [vmem:[%s0 + $0xc8] sm:$0xff]
    %v99 = vld [vmem:[%s0 + $0xd0] sm:$0xff]
    %v100 = vld [vmem:[%s0 + $0xd8] sm:$0xff]
    %v101 = vld [vmem:[%s0 + $0xe0] sm:$0xff]
    %v102 = vld [vmem:[%s0 + $0xe8] sm:$0xff]
    %v103 = vld [vmem:[%s0 + $0xf0] sm:$0xff]
    %v104 = vld [vmem:[%s0 + $0xf8] sm:$0xff]
    %v105 = vld [vmem:[%s0 + $0x100] sm:$0xff]
    %v106 = vld [vmem:[%s0 + $0x108] sm:$0xff]
    %v107 = vld [vmem:[%s0 + $0x110] sm:$0xff]
    %v108 = vld [vmem:[%s0 + $0x118] sm:$0xff]
    %v109 = vld [vmem:[%s0 + $0x120] sm:$0xff]
    %v110 = vld [vmem:[%s0 + $0x128] sm:$0xff]
    %v111 = vld [vmem:[%s0 + $0x130] sm:$0xff]
    %v112 = vld [vmem:[%s0 + $0x138] sm:$0xff]
    %v113 = vld [vmem:[%s0 + $0x140] sm:$0xff]
    %v114 = vld [vmem:[%s0 + $0x148] sm:$0xff]
    %v115 = vld [vmem:[%s0 + $0x150] sm:$0xff]
    %v116 = vld [vmem:[%s0 + $0x158] sm:$0xff]
    %v117 = vld [vmem:[%s0 + $0x160] sm:$0xff]
    %v118 = vld [vmem:[%s0 + $0x168] sm:$0xff]
    %v119 = vld [vmem:[%s0 + $0x170] sm:$0xff]
    %v120 = vld [vmem:[%s0 + $0x178] sm:$0xff]
    %v121 = vld [vmem:[%s0 + $0x180] sm:$0xff]
    %v122 = vld [vmem:[%s0 + $0x188] sm:$0xff]
    %v123 = vld [vmem:[%s0 + $0x190] sm:$0xff]
    %v124 = vld [vmem:[%s0 + $0x198] sm:$0xff]
    %v125 = vld [vmem:[%s0 + $0x1a0] sm:$0xff]
    %v126 = vld [vmem:[%s0 + $0x1a8] sm:$0xff]
    %v127 = vld [vmem:[%s0 + $0x1b0] sm:$0xff]
    %v128 = vld [vmem:[%s0 + $0x1b8] sm:$0xff]
    %v129 = vld [vmem:[%s0 + $0x1c0] sm:$0xff]
    %v130 = vld [vmem:[%s0 + $0x1c8] sm:$0xff]
    %v131 = vld [vmem:[%s0 + $0x1d0] sm:$0xff]
    %v132 = vld [vmem:[%s0 + $0x1d8] sm:$0xff]
    %v133 = vld [vmem:[%s0 + $0x1e0] sm:$0xff]
    %v134 = vld [vmem:[%s0 + $0x1e8] sm:$0xff]
    %v135 = vld [vmem:[%s0 + $0x1f0] sm:$0xff]
    %v136 = vld [vmem:[%s0 + $0x1f8] sm:$0xff]
    %v137 = vld [vmem:[%s0 + $0x200] sm:$0xff]
    %v138 = vld [vmem:[%s0 + $0x208] sm:$0xff]
    %v139 = vld [vmem:[%s0 + $0x210] sm:$0xff]
    %v140 = vld [vmem:[%s0 + $0x218] sm:$0xff]
    %v141 = vld [vmem:[%s0 + $0x220] sm:$0xff]
    %v142 = vld [vmem:[%s0 + $0x228] sm:$0xff]
    %v143 = vld [vmem:[%s0 + $0x230] sm:$0xff]
    %v144 = vld [vmem:[%s0 + $0x238] sm:$0xff]
    %v145 = vld [vmem:[%s0 + $0x240] sm:$0xff]
    %v146 = vld [vmem:[%s0 + $0x248] sm:$0xff]
    %v147 = vld [vmem:[%s0 + $0x250] sm:$0xff]
    %v148 = vld [vmem:[%s0 + $0x258] sm:$0xff]
    %v149 = vld [vmem:[%s0 + $0x260] sm:$0xff]
    %v150 = vld [vmem:[%s0 + $0x268] sm:$0xff]
    %v151 = vld [vmem:[%s0 + $0x270] sm:$0xff]
    %v152 = vld [vmem:[%s0 + $0x278] sm:$0xff]
    %v153 = vld [vmem:[%s0 + $0x280] sm:$0xff]
    %v154 = vld [vmem:[%s0 + $0x288] sm:$0xff]
    %v155 = vld [vmem:[%s0 + $0x290] sm:$0xff]
    %v156 = vld [vmem:[%s0 + $0x298] sm:$0xff]
    %v157 = vld [vmem:[%s0 + $0x2a0] sm:$0xff]
    %v158 = vld [vmem:[%s0 + $0x2a8] sm:$0xff]
    %v159 = vld [vmem:[%s0 + $0x2b0] sm:$0xff]
    %v160 = vld [vmem:[%s0 + $0x2b8] sm:$0xff]
    %v161 = vld [vmem:[%s0 + $0x2c0] sm:$0xff]
    %v162 = vld [vmem:[%s0 + $0x2c8] sm:$0xff]
    %v163 = vld [vmem:[%s0 + $0x2d0] sm:$0xff]
    %v164 = vld [vmem:[%s0 + $0x2d8] sm:$0xff]
    %v165 = vld [vmem:[%s0 + $0x2e0] sm:$0xff]
    %v166 = vld [vmem:[%s0 + $0x2e8] sm:$0xff]
    %v167 = vld [vmem:[%s0 + $0x2f0] sm:$0xff]
    %v168 = vld [vmem:[%s0 + $0x2f8] sm:$0xff]
    %v169 = vld [vmem:[%s0 + $0x300] sm:$0x1]
    %v170 = vld [vmem:[%s0 + $0x308] sm:$0x1]
    %v171 = vld [vmem:[%s0 + $0x310] sm:$0x1]
    %v172 = vld [vmem:[%s0 + $0x318] sm:$0x1]
    %v173 = vld [vmem:[%s0 + $0x320] sm:$0x1]
    %v174 = vld [vmem:[%s0 + $0x328] sm:$0x1]
    %v175 = vld [vmem:[%s0 + $0x330] sm:$0x1]
    %v176 = vld [vmem:[%s0 + $0x338] sm:$0x1]
    %v177 = vld [vmem:[%s0 + $0x340] sm:$0x1]
    %v178 = vld [vmem:[%s0 + $0x348] sm:$0x1]
    %v179 = vld [vmem:[%s0 + $0x350] sm:$0x1]
    %v180 = vld [vmem:[%s0 + $0x358] sm:$0x1]
    %v181 = vld [vmem:[%s0 + $0x360] sm:$0x1]
    %v182 = vld [vmem:[%s0 + $0x368] sm:$0x1]
    %v183 = vld [vmem:[%s0 + $0x370] sm:$0x1]
    %v184 = vld [vmem:[%s0 + $0x378] sm:$0x1]
    %v185 = vld [vmem:[%s0 + $0x380] sm:$0xff]
    %v186 = vld [vmem:[%s0 + $0x388] sm:$0xff]
    %v187 = vld [vmem:[%s0 + $0x390] sm:$0xff]
    %v188 = vld [vmem:[%s0 + $0x398] sm:$0xff]
    %v189 = vld [vmem:[%s0 + $0x3a0] sm:$0xff]
    %v190 = vld [vmem:[%s0 + $0x3a8] sm:$0xff]
    %v191 = vld [vmem:[%s0 + $0x3b0] sm:$0xff]
    %v192 = vld [vmem:[%s0 + $0x3b8] sm:$0xff]
    %v193 = vld [vmem:[%s0 + $0x3c0] sm:$0xff]
    %v194 = vld [vmem:[%s0 + $0x3c8] sm:$0xff]
    %v195 = vld [vmem:[%s0 + $0x3d0] sm:$0xff]
    %v196 = vld [vmem:[%s0 + $0x3d8] sm:$0xff]
    %v197 = vld [vmem:[%s0 + $0x3e0] sm:$0xff]
    %v198 = vld [vmem:[%s0 + $0x3e8] sm:$0xff]
    %v199 = vld [vmem:[%s0 + $0x3f0] sm:$0xff]
    %v200 = vld [vmem:[%s0 + $0x3f8] sm:$0xff]
    %v201 = vld [vmem:[%s0 + $0x400] sm:$0xff]
    %v202 = vld [vmem:[%s0 + $0x408] sm:$0xff]
    %v203 = vld [vmem:[%s0 + $0x410] sm:$0xff]
    %v204 = vld [vmem:[%s0 + $0x418] sm:$0xff]
    %v205 = vld [vmem:[%s0 + $0x420] sm:$0xff]
    %v206 = vld [vmem:[%s0 + $0x428] sm:$0xff]
    %v207 = vld [vmem:[%s0 + $0x430] sm:$0xff]
    %v208 = vld [vmem:[%s0 + $0x438] sm:$0xff]
    %v209 = vld [vmem:[%s0 + $0x440] sm:$0xff]
    %v210 = vld [vmem:[%s0 + $0x448] sm:$0xff]
    %v211 = vld [vmem:[%s0 + $0x450] sm:$0xff]
    %v212 = vld [vmem:[%s0 + $0x458] sm:$0xff]
    %v213 = vld [vmem:[%s0 + $0x460] sm:$0xff]
    %v214 = vld [vmem:[%s0 + $0x468] sm:$0xff]
    %v215 = vld [vmem:[%s0 + $0x470] sm:$0xff]
    %v216 = vld [vmem:[%s0 + $0x478] sm:$0xff]
    %v217 = vld [vmem:[%s0 + $0x480] sm:$0xff]
    %v218 = vld [vmem:[%s0 + $0x488] sm:$0xff]
    %v219 = vld [vmem:[%s0 + $0x490] sm:$0xff]
    %v220 = vld [vmem:[%s0 + $0x498] sm:$0xff]
    %v221 = vld [vmem:[%s0 + $0x4a0] sm:$0xff]
    %v222 = vld [vmem:[%s0 + $0x4a8] sm:$0xff]
    %v223 = vld [vmem:[%s0 + $0x4b0] sm:$0xff]
    %v224 = vld [vmem:[%s0 + $0x4b8] sm:$0xff]
    %v225 = vld [vmem:[%s0 + $0x4c0] sm:$0xff]
    %v226 = vld [vmem:[%s0 + $0x4c8] sm:$0xff]
    %v227 = vld [vmem:[%s0 + $0x4d0] sm:$0xff]
    %v228 = vld [vmem:[%s0 + $0x4d8] sm:$0xff]
    %v229 = vld [vmem:[%s0 + $0x4e0] sm:$0xff]
    %v230 = vld [vmem:[%s0 + $0x4e8] sm:$0xff]
    %v231 = vld [vmem:[%s0 + $0x4f0] sm:$0xff]
    %v232 = vld [vmem:[%s0 + $0x4f8] sm:$0xff]
    %v233 = vld [vmem:[%s0 + $0x500] sm:$0xff]
    %v234 = vld [vmem:[%s0 + $0x508] sm:$0xff]
    %v235 = vld [vmem:[%s0 + $0x510] sm:$0xff]
    %v236 = vld [vmem:[%s0 + $0x518] sm:$0xff]
    %v237 = vld [vmem:[%s0 + $0x520] sm:$0xff]
    %v238 = vld [vmem:[%s0 + $0x528] sm:$0xff]
    %v239 = vld [vmem:[%s0 + $0x530] sm:$0xff]
    %v240 = vld [vmem:[%s0 + $0x538] sm:$0xff]
    %v241 = vld [vmem:[%s0 + $0x540] sm:$0xff]
    %v242 = vld [vmem:[%s0 + $0x548] sm:$0xff]
    %v243 = vld [vmem:[%s0 + $0x550] sm:$0xff]
    %v244 = vld [vmem:[%s0 + $0x558] sm:$0xff]
    %v245 = vld [vmem:[%s0 + $0x560] sm:$0xff]
    %v246 = vld [vmem:[%s0 + $0x568] sm:$0xff]
    %v247 = vld [vmem:[%s0 + $0x570] sm:$0xff]
    %v248 = vld [vmem:[%s0 + $0x578] sm:$0xff]
    %v249 = vld [vmem:[%s0 + $0x580] sm:$0xff]
    %v250 = vld [vmem:[%s0 + $0x588] sm:$0xff]
    %v251 = vld [vmem:[%s0 + $0x590] sm:$0xff]
    %v252 = vld [vmem:[%s0 + $0x598] sm:$0xff]
    %v253 = vld [vmem:[%s0 + $0x5a0] sm:$0xff]
    %v254 = vld [vmem:[%s0 + $0x5a8] sm:$0xff]
    %v255 = vld [vmem:[%s0 + $0x5b0] sm:$0xff]
    %v256 = vld [vmem:[%s0 + $0x5b8] sm:$0xff]
    %v257 = vld [vmem:[%s0 + $0x5c0] sm:$0xff]
    %v258 = vld [vmem:[%s0 + $0x5c8] sm:$0xff]
    %v259 = vld [vmem:[%s0 + $0x5d0] sm:$0xff]
    %v260 = vld [vmem:[%s0 + $0x5d8] sm:$0xff]
    %v261 = vld [vmem:[%s0 + $0x5e0] sm:$0xff]
    %v262 = vld [vmem:[%s0 + $0x5e8] sm:$0xff]
    %v263 = vld [vmem:[%s0 + $0x5f0] sm:$0xff]
    %v264 = vld [vmem:[%s0 + $0x5f8] sm:$0xff]
    %v265 = vld [vmem:[%s0 + $0x600] sm:$0xff]
    %v266 = vld [vmem:[%s0 + $0x608] sm:$0xff]
    %v267 = vld [vmem:[%s0 + $0x610] sm:$0xff]
    %v268 = vld [vmem:[%s0 + $0x618] sm:$0xff]
    %v269 = vld [vmem:[%s0 + $0x620] sm:$0xff]
    %v270 = vld [vmem:[%s0 + $0x628] sm:$0xff]
    %v271 = vld [vmem:[%s0 + $0x630] sm:$0xff]
    %v272 = vld [vmem:[%s0 + $0x638] sm:$0xff]
    %v273 = vld [vmem:[%s0 + $0x640] sm:$0xff]
    %v274 = vld [vmem:[%s0 + $0x648] sm:$0xff]
    %v275 = vld [vmem:[%s0 + $0x650] sm:$0xff]
    %v276 = vld [vmem:[%s0 + $0x658] sm:$0xff]
    %v277 = vld [vmem:[%s0 + $0x660] sm:$0xff]
    %v278 = vld [vmem:[%s0 + $0x668] sm:$0xff]
    %v279 = vld [vmem:[%s0 + $0x670] sm:$0xff]
    %v280 = vld [vmem:[%s0 + $0x678] sm:$0xff]
    %v281 = vld [vmem:[%s0 + $0x680] sm:$0x1]
    %v282 = vld [vmem:[%s0 + $0x688] sm:$0x1]
    %v283 = vld [vmem:[%s0 + $0x690] sm:$0x1]
    %v284 = vld [vmem:[%s0 + $0x698] sm:$0x1]
    %v285 = vld [vmem:[%s0 + $0x6a0] sm:$0x1]
    %v286 = vld [vmem:[%s0 + $0x6a8] sm:$0x1]
    %v287 = vld [vmem:[%s0 + $0x6b0] sm:$0x1]
    %v288 = vld [vmem:[%s0 + $0x6b8] sm:$0x1]
    %v289 = vld [vmem:[%s0 + $0x6c0] sm:$0x1]
    %v290 = vld [vmem:[%s0 + $0x6c8] sm:$0x1]
    %v291 = vld [vmem:[%s0 + $0x6d0] sm:$0x1]
    %v292 = vld [vmem:[%s0 + $0x6d8] sm:$0x1]
    %v293 = vld [vmem:[%s0 + $0x6e0] sm:$0x1]
    %v294 = vld [vmem:[%s0 + $0x6e8] sm:$0x1]
    %v295 = vld [vmem:[%s0 + $0x6f0] sm:$0x1]
    %v296 = vld [vmem:[%s0 + $0x6f8] sm:$0x1]
    %v297 = vmax.f32 %v73, %v89
    %v298 = vmax.f32 %v297, %v105
    %v299 = vmax.f32 %v298, %v121
    %v300 = vmax.f32 %v299, %v137
    %v301 = vmax.f32 %v300, %v153
    %vm302 = vcmask 1040384
    %v303 = vsel %vm302, %v169, -inf
    %v304 = vmax.f32 %v301, %v303
    %v305 = vrot.slane %v304, 4
    %v306 = vmax.f32 %v304, %v305
    %v307 = vrot.slane %v306, 2
    %v308 = vmax.f32 %v306, %v307
    %v309 = vrot.slane %v308, 1
    %v310 = vmax.f32 %v308, %v309
    %v311 = vmax.f32 %v74, %v90
    %v312 = vmax.f32 %v311, %v106
    %v313 = vmax.f32 %v312, %v122
    %v314 = vmax.f32 %v313, %v138
    %v315 = vmax.f32 %v314, %v154
    %v316 = vsel %vm302, %v170, -inf
    %v317 = vmax.f32 %v315, %v316
    %v318 = vrot.slane %v317, 4
    %v319 = vmax.f32 %v317, %v318
    %v320 = vrot.slane %v319, 2
    %v321 = vmax.f32 %v319, %v320
    %v322 = vrot.slane %v321, 1
    %v323 = vmax.f32 %v321, %v322
    %v324 = vmax.f32 %v75, %v91
    %v325 = vmax.f32 %v324, %v107
    %v326 = vmax.f32 %v325, %v123
    %v327 = vmax.f32 %v326, %v139
    %v328 = vmax.f32 %v327, %v155
    %v329 = vsel %vm302, %v171, -inf
    %v330 = vmax.f32 %v328, %v329
    %v331 = vrot.slane %v330, 4
    %v332 = vmax.f32 %v330, %v331
    %v333 = vrot.slane %v332, 2
    %v334 = vmax.f32 %v332, %v333
    %v335 = vrot.slane %v334, 1
    %v336 = vmax.f32 %v334, %v335
    %v337 = vmax.f32 %v76, %v92
    %v338 = vmax.f32 %v337, %v108
    %v339 = vmax.f32 %v338, %v124
    %v340 = vmax.f32 %v339, %v140
    %v341 = vmax.f32 %v340, %v156
    %v342 = vsel %vm302, %v172, -inf
    %v343 = vmax.f32 %v341, %v342
    %v344 = vrot.slane %v343, 4
    %v345 = vmax.f32 %v343, %v344
    %v346 = vrot.slane %v345, 2
    %v347 = vmax.f32 %v345, %v346
    %v348 = vrot.slane %v347, 1
    %v349 = vmax.f32 %v347, %v348
    %v350 = vmax.f32 %v77, %v93
    %v351 = vmax.f32 %v350, %v109
    %v352 = vmax.f32 %v351, %v125
    %v353 = vmax.f32 %v352, %v141
    %v354 = vmax.f32 %v353, %v157
    %v355 = vsel %vm302, %v173, -inf
    %v356 = vmax.f32 %v354, %v355
    %v357 = vrot.slane %v356, 4
    %v358 = vmax.f32 %v356, %v357
    %v359 = vrot.slane %v358, 2
    %v360 = vmax.f32 %v358, %v359
    %v361 = vrot.slane %v360, 1
    %v362 = vmax.f32 %v360, %v361
    %v363 = vmax.f32 %v78, %v94
    %v364 = vmax.f32 %v363, %v110
    %v365 = vmax.f32 %v364, %v126
    %v366 = vmax.f32 %v365, %v142
    %v367 = vmax.f32 %v366, %v158
    %v368 = vsel %vm302, %v174, -inf
    %v369 = vmax.f32 %v367, %v368
    %v370 = vrot.slane %v369, 4
    %v371 = vmax.f32 %v369, %v370
    %v372 = vrot.slane %v371, 2
    %v373 = vmax.f32 %v371, %v372
    %v374 = vrot.slane %v373, 1
    %v375 = vmax.f32 %v373, %v374
    %v376 = vmax.f32 %v79, %v95
    %v377 = vmax.f32 %v376, %v111
    %v378 = vmax.f32 %v377, %v127
    %v379 = vmax.f32 %v378, %v143
    %v380 = vmax.f32 %v379, %v159
    %v381 = vsel %vm302, %v175, -inf
    %v382 = vmax.f32 %v380, %v381
    %v383 = vrot.slane %v382, 4
    %v384 = vmax.f32 %v382, %v383
    %v385 = vrot.slane %v384, 2
    %v386 = vmax.f32 %v384, %v385
    %v387 = vrot.slane %v386, 1
    %v388 = vmax.f32 %v386, %v387
    %v389 = vmax.f32 %v80, %v96
    %v390 = vmax.f32 %v389, %v112
    %v391 = vmax.f32 %v390, %v128
    %v392 = vmax.f32 %v391, %v144
    %v393 = vmax.f32 %v392, %v160
    %v394 = vsel %vm302, %v176, -inf
    %v395 = vmax.f32 %v393, %v394
    %v396 = vrot.slane %v395, 4
    %v397 = vmax.f32 %v395, %v396
    %v398 = vrot.slane %v397, 2
    %v399 = vmax.f32 %v397, %v398
    %v400 = vrot.slane %v399, 1
    %v401 = vmax.f32 %v399, %v400
    %v402 = vmax.f32 %v81, %v97
    %v403 = vmax.f32 %v402, %v113
    %v404 = vmax.f32 %v403, %v129
    %v405 = vmax.f32 %v404, %v145
    %v406 = vmax.f32 %v405, %v161
    %v407 = vsel %vm302, %v177, -inf
    %v408 = vmax.f32 %v406, %v407
    %v409 = vrot.slane %v408, 4
    %v410 = vmax.f32 %v408, %v409
    %v411 = vrot.slane %v410, 2
    %v412 = vmax.f32 %v410, %v411
    %v413 = vrot.slane %v412, 1
    %v414 = vmax.f32 %v412, %v413
    %v415 = vmax.f32 %v82, %v98
    %v416 = vmax.f32 %v415, %v114
    %v417 = vmax.f32 %v416, %v130
    %v418 = vmax.f32 %v417, %v146
    %v419 = vmax.f32 %v418, %v162
    %v420 = vsel %vm302, %v178, -inf
    %v421 = vmax.f32 %v419, %v420
    %v422 = vrot.slane %v421, 4
    %v423 = vmax.f32 %v421, %v422
    %v424 = vrot.slane %v423, 2
    %v425 = vmax.f32 %v423, %v424
    %v426 = vrot.slane %v425, 1
    %v427 = vmax.f32 %v425, %v426
    %v428 = vmax.f32 %v83, %v99
    %v429 = vmax.f32 %v428, %v115
    %v430 = vmax.f32 %v429, %v131
    %v431 = vmax.f32 %v430, %v147
    %v432 = vmax.f32 %v431, %v163
    %v433 = vsel %vm302, %v179, -inf
    %v434 = vmax.f32 %v432, %v433
    %v435 = vrot.slane %v434, 4
    %v436 = vmax.f32 %v434, %v435
    %v437 = vrot.slane %v436, 2
    %v438 = vmax.f32 %v436, %v437
    %v439 = vrot.slane %v438, 1
    %v440 = vmax.f32 %v438, %v439
    %v441 = vmax.f32 %v84, %v100
    %v442 = vmax.f32 %v441, %v116
    %v443 = vmax.f32 %v442, %v132
    %v444 = vmax.f32 %v443, %v148
    %v445 = vmax.f32 %v444, %v164
    %v446 = vsel %vm302, %v180, -inf
    %v447 = vmax.f32 %v445, %v446
    %v448 = vrot.slane %v447, 4
    %v449 = vmax.f32 %v447, %v448
    %v450 = vrot.slane %v449, 2
    %v451 = vmax.f32 %v449, %v450
    %v452 = vrot.slane %v451, 1
    %v453 = vmax.f32 %v451, %v452
    %v454 = vmax.f32 %v85, %v101
    %v455 = vmax.f32 %v454, %v117
    %v456 = vmax.f32 %v455, %v133
    %v457 = vmax.f32 %v456, %v149
    %v458 = vmax.f32 %v457, %v165
    %v459 = vsel %vm302, %v181, -inf
    %v460 = vmax.f32 %v458, %v459
    %v461 = vrot.slane %v460, 4
    %v462 = vmax.f32 %v460, %v461
    %v463 = vrot.slane %v462, 2
    %v464 = vmax.f32 %v462, %v463
    %v465 = vrot.slane %v464, 1
    %v466 = vmax.f32 %v464, %v465
    %v467 = vmax.f32 %v86, %v102
    %v468 = vmax.f32 %v467, %v118
    %v469 = vmax.f32 %v468, %v134
    %v470 = vmax.f32 %v469, %v150
    %v471 = vmax.f32 %v470, %v166
    %v472 = vsel %vm302, %v182, -inf
    %v473 = vmax.f32 %v471, %v472
    %v474 = vrot.slane %v473, 4
    %v475 = vmax.f32 %v473, %v474
    %v476 = vrot.slane %v475, 2
    %v477 = vmax.f32 %v475, %v476
    %v478 = vrot.slane %v477, 1
    %v479 = vmax.f32 %v477, %v478
    %v480 = vmax.f32 %v87, %v103
    %v481 = vmax.f32 %v480, %v119
    %v482 = vmax.f32 %v481, %v135
    %v483 = vmax.f32 %v482, %v151
    %v484 = vmax.f32 %v483, %v167
    %v485 = vsel %vm302, %v183, -inf
    %v486 = vmax.f32 %v484, %v485
    %v487 = vrot.slane %v486, 4
    %v488 = vmax.f32 %v486, %v487
    %v489 = vrot.slane %v488, 2
    %v490 = vmax.f32 %v488, %v489
    %v491 = vrot.slane %v490, 1
    %v492 = vmax.f32 %v490, %v491
    %v493 = vmax.f32 %v88, %v104
    %v494 = vmax.f32 %v493, %v120
    %v495 = vmax.f32 %v494, %v136
    %v496 = vmax.f32 %v495, %v152
    %v497 = vmax.f32 %v496, %v168
    %v498 = vsel %vm302, %v184, -inf
    %v499 = vmax.f32 %v497, %v498
    %v500 = vrot.slane %v499, 4
    %v501 = vmax.f32 %v499, %v500
    %v502 = vrot.slane %v501, 2
    %v503 = vmax.f32 %v501, %v502
    %v504 = vrot.slane %v503, 1
    %v505 = vmax.f32 %v503, %v504
    %v506 = vmax.f32 %v185, %v201
    %v507 = vmax.f32 %v506, %v217
    %v508 = vmax.f32 %v507, %v233
    %v509 = vmax.f32 %v508, %v249
    %v510 = vmax.f32 %v509, %v265
    %v511 = vsel %vm302, %v281, -inf
    %v512 = vmax.f32 %v510, %v511
    %v513 = vrot.slane %v512, 4
    %v514 = vmax.f32 %v512, %v513
    %v515 = vrot.slane %v514, 2
    %v516 = vmax.f32 %v514, %v515
    %v517 = vrot.slane %v516, 1
    %v518 = vmax.f32 %v516, %v517
    %v519 = vmax.f32 %v186, %v202
    %v520 = vmax.f32 %v519, %v218
    %v521 = vmax.f32 %v520, %v234
    %v522 = vmax.f32 %v521, %v250
    %v523 = vmax.f32 %v522, %v266
    %v524 = vsel %vm302, %v282, -inf
    %v525 = vmax.f32 %v523, %v524
    %v526 = vrot.slane %v525, 4
    %v527 = vmax.f32 %v525, %v526
    %v528 = vrot.slane %v527, 2
    %v529 = vmax.f32 %v527, %v528
    %v530 = vrot.slane %v529, 1
    %v531 = vmax.f32 %v529, %v530
    %v532 = vmax.f32 %v187, %v203
    %v533 = vmax.f32 %v532, %v219
    %v534 = vmax.f32 %v533, %v235
    %v535 = vmax.f32 %v534, %v251
    %v536 = vmax.f32 %v535, %v267
    %v537 = vsel %vm302, %v283, -inf
    %v538 = vmax.f32 %v536, %v537
    %v539 = vrot.slane %v538, 4
    %v540 = vmax.f32 %v538, %v539
    %v541 = vrot.slane %v540, 2
    %v542 = vmax.f32 %v540, %v541
    %v543 = vrot.slane %v542, 1
    %v544 = vmax.f32 %v542, %v543
    %v545 = vmax.f32 %v188, %v204
    %v546 = vmax.f32 %v545, %v220
    %v547 = vmax.f32 %v546, %v236
    %v548 = vmax.f32 %v547, %v252
    %v549 = vmax.f32 %v548, %v268
    %v550 = vsel %vm302, %v284, -inf
    %v551 = vmax.f32 %v549, %v550
    %v552 = vrot.slane %v551, 4
    %v553 = vmax.f32 %v551, %v552
    %v554 = vrot.slane %v553, 2
    %v555 = vmax.f32 %v553, %v554
    %v556 = vrot.slane %v555, 1
    %v557 = vmax.f32 %v555, %v556
    %v558 = vmax.f32 %v189, %v205
    %v559 = vmax.f32 %v558, %v221
    %v560 = vmax.f32 %v559, %v237
    %v561 = vmax.f32 %v560, %v253
    %v562 = vmax.f32 %v561, %v269
    %v563 = vsel %vm302, %v285, -inf
    %v564 = vmax.f32 %v562, %v563
    %v565 = vrot.slane %v564, 4
    %v566 = vmax.f32 %v564, %v565
    %v567 = vrot.slane %v566, 2
    %v568 = vmax.f32 %v566, %v567
    %v569 = vrot.slane %v568, 1
    %v570 = vmax.f32 %v568, %v569
    %v571 = vmax.f32 %v190, %v206
    %v572 = vmax.f32 %v571, %v222
    %v573 = vmax.f32 %v572, %v238
    %v574 = vmax.f32 %v573, %v254
    %v575 = vmax.f32 %v574, %v270
    %v576 = vsel %vm302, %v286, -inf
    %v577 = vmax.f32 %v575, %v576
    %v578 = vrot.slane %v577, 4
    %v579 = vmax.f32 %v577, %v578
    %v580 = vrot.slane %v579, 2
    %v581 = vmax.f32 %v579, %v580
    %v582 = vrot.slane %v581, 1
    %v583 = vmax.f32 %v581, %v582
    %v584 = vmax.f32 %v191, %v207
    %v585 = vmax.f32 %v584, %v223
    %v586 = vmax.f32 %v585, %v239
    %v587 = vmax.f32 %v586, %v255
    %v588 = vmax.f32 %v587, %v271
    %v589 = vsel %vm302, %v287, -inf
    %v590 = vmax.f32 %v588, %v589
    %v591 = vrot.slane %v590, 4
    %v592 = vmax.f32 %v590, %v591
    %v593 = vrot.slane %v592, 2
    %v594 = vmax.f32 %v592, %v593
    %v595 = vrot.slane %v594, 1
    %v596 = vmax.f32 %v594, %v595
    %v597 = vmax.f32 %v192, %v208
    %v598 = vmax.f32 %v597, %v224
    %v599 = vmax.f32 %v598, %v240
    %v600 = vmax.f32 %v599, %v256
    %v601 = vmax.f32 %v600, %v272
    %v602 = vsel %vm302, %v288, -inf
    %v603 = vmax.f32 %v601, %v602
    %v604 = vrot.slane %v603, 4
    %v605 = vmax.f32 %v603, %v604
    %v606 = vrot.slane %v605, 2
    %v607 = vmax.f32 %v605, %v606
    %v608 = vrot.slane %v607, 1
    %v609 = vmax.f32 %v607, %v608
    %v610 = vmax.f32 %v193, %v209
    %v611 = vmax.f32 %v610, %v225
    %v612 = vmax.f32 %v611, %v241
    %v613 = vmax.f32 %v612, %v257
    %v614 = vmax.f32 %v613, %v273
    %v615 = vsel %vm302, %v289, -inf
    %v616 = vmax.f32 %v614, %v615
    %v617 = vrot.slane %v616, 4
    %v618 = vmax.f32 %v616, %v617
    %v619 = vrot.slane %v618, 2
    %v620 = vmax.f32 %v618, %v619
    %v621 = vrot.slane %v620, 1
    %v622 = vmax.f32 %v620, %v621
    %v623 = vmax.f32 %v194, %v210
    %v624 = vmax.f32 %v623, %v226
    %v625 = vmax.f32 %v624, %v242
    %v626 = vmax.f32 %v625, %v258
    %v627 = vmax.f32 %v626, %v274
    %v628 = vsel %vm302, %v290, -inf
    %v629 = vmax.f32 %v627, %v628
    %v630 = vrot.slane %v629, 4
    %v631 = vmax.f32 %v629, %v630
    %v632 = vrot.slane %v631, 2
    %v633 = vmax.f32 %v631, %v632
    %v634 = vrot.slane %v633, 1
    %v635 = vmax.f32 %v633, %v634
    %v636 = vmax.f32 %v195, %v211
    %v637 = vmax.f32 %v636, %v227
    %v638 = vmax.f32 %v637, %v243
    %v639 = vmax.f32 %v638, %v259
    %v640 = vmax.f32 %v639, %v275
    %v641 = vsel %vm302, %v291, -inf
    %v642 = vmax.f32 %v640, %v641
    %v643 = vrot.slane %v642, 4
    %v644 = vmax.f32 %v642, %v643
    %v645 = vrot.slane %v644, 2
    %v646 = vmax.f32 %v644, %v645
    %v647 = vrot.slane %v646, 1
    %v648 = vmax.f32 %v646, %v647
    %v649 = vmax.f32 %v196, %v212
    %v650 = vmax.f32 %v649, %v228
    %v651 = vmax.f32 %v650, %v244
    %v652 = vmax.f32 %v651, %v260
    %v653 = vmax.f32 %v652, %v276
    %v654 = vsel %vm302, %v292, -inf
    %v655 = vmax.f32 %v653, %v654
    %v656 = vrot.slane %v655, 4
    %v657 = vmax.f32 %v655, %v656
    %v658 = vrot.slane %v657, 2
    %v659 = vmax.f32 %v657, %v658
    %v660 = vrot.slane %v659, 1
    %v661 = vmax.f32 %v659, %v660
    %v662 = vmax.f32 %v197, %v213
    %v663 = vmax.f32 %v662, %v229
    %v664 = vmax.f32 %v663, %v245
    %v665 = vmax.f32 %v664, %v261
    %v666 = vmax.f32 %v665, %v277
    %v667 = vsel %vm302, %v293, -inf
    %v668 = vmax.f32 %v666, %v667
    %v669 = vrot.slane %v668, 4
    %v670 = vmax.f32 %v668, %v669
    %v671 = vrot.slane %v670, 2
    %v672 = vmax.f32 %v670, %v671
    %v673 = vrot.slane %v672, 1
    %v674 = vmax.f32 %v672, %v673
    %v675 = vmax.f32 %v198, %v214
    %v676 = vmax.f32 %v675, %v230
    %v677 = vmax.f32 %v676, %v246
    %v678 = vmax.f32 %v677, %v262
    %v679 = vmax.f32 %v678, %v278
    %v680 = vsel %vm302, %v294, -inf
    %v681 = vmax.f32 %v679, %v680
    %v682 = vrot.slane %v681, 4
    %v683 = vmax.f32 %v681, %v682
    %v684 = vrot.slane %v683, 2
    %v685 = vmax.f32 %v683, %v684
    %v686 = vrot.slane %v685, 1
    %v687 = vmax.f32 %v685, %v686
    %v688 = vmax.f32 %v199, %v215
    %v689 = vmax.f32 %v688, %v231
    %v690 = vmax.f32 %v689, %v247
    %v691 = vmax.f32 %v690, %v263
    %v692 = vmax.f32 %v691, %v279
    %v693 = vsel %vm302, %v295, -inf
    %v694 = vmax.f32 %v692, %v693
    %v695 = vrot.slane %v694, 4
    %v696 = vmax.f32 %v694, %v695
    %v697 = vrot.slane %v696, 2
    %v698 = vmax.f32 %v696, %v697
    %v699 = vrot.slane %v698, 1
    %v700 = vmax.f32 %v698, %v699
    %v701 = vmax.f32 %v200, %v216
    %v702 = vmax.f32 %v701, %v232
    %v703 = vmax.f32 %v702, %v248
    %v704 = vmax.f32 %v703, %v264
    %v705 = vmax.f32 %v704, %v280
    %v706 = vsel %vm302, %v296, -inf
    %v707 = vmax.f32 %v705, %v706
    %v708 = vrot.slane %v707, 4
    %v709 = vmax.f32 %v707, %v708
    %v710 = vrot.slane %v709, 2
    %v711 = vmax.f32 %v709, %v710
    %v712 = vrot.slane %v711, 1
    %v713 = vmax.f32 %v711, %v712
    %v714 = vpack.c.bf16 %v310, %v310
    %v715 = vpack.c.bf16 %v323, %v323
    %v716 = vpack.c.bf16 %v336, %v336
    %v717 = vpack.c.bf16 %v349, %v349
    %v718 = vpack.c.bf16 %v362, %v362
    %v719 = vpack.c.bf16 %v375, %v375
    %v720 = vpack.c.bf16 %v388, %v388
    %v721 = vpack.c.bf16 %v401, %v401
    %v722 = vpack.c.bf16 %v414, %v414
    %v723 = vpack.c.bf16 %v427, %v427
    %v724 = vpack.c.bf16 %v440, %v440
    %v725 = vpack.c.bf16 %v453, %v453
    %v726 = vpack.c.bf16 %v466, %v466
    %v727 = vpack.c.bf16 %v479, %v479
    %v728 = vpack.c.bf16 %v492, %v492
    %v729 = vpack.c.bf16 %v505, %v505
    %v730 = vpack.c.bf16 %v518, %v518
    %v731 = vpack.c.bf16 %v531, %v531
    %v732 = vpack.c.bf16 %v544, %v544
    %v733 = vpack.c.bf16 %v557, %v557
    %v734 = vpack.c.bf16 %v570, %v570
    %v735 = vpack.c.bf16 %v583, %v583
    %v736 = vpack.c.bf16 %v596, %v596
    %v737 = vpack.c.bf16 %v609, %v609
    %v738 = vpack.c.bf16 %v622, %v622
    %v739 = vpack.c.bf16 %v635, %v635
    %v740 = vpack.c.bf16 %v648, %v648
    %v741 = vpack.c.bf16 %v661, %v661
    %v742 = vpack.c.bf16 %v674, %v674
    %v743 = vpack.c.bf16 %v687, %v687
    %v744 = vpack.c.bf16 %v700, %v700
    %v745 = vpack.c.bf16 %v713, %v713
    %v746 = vld [vmem:[#allocation2] sm:$0xff]
    %v747 = vld [vmem:[#allocation2 + $0x8] sm:$0xff]
    %v748 = vld [vmem:[#allocation2 + $0x10] sm:$0xff]
    %v749 = vld [vmem:[#allocation2 + $0x18] sm:$0xff]
    %v750 = vld [vmem:[#allocation2 + $0x20] sm:$0xff]
    %v751 = vld [vmem:[#allocation2 + $0x28] sm:$0xff]
    %v752 = vld [vmem:[#allocation2 + $0x30] sm:$0xff]
    %v753 = vld [vmem:[#allocation2 + $0x38] sm:$0xff]
    %v754 = vld [vmem:[#allocation2 + $0x40] sm:$0xff]
    %v755 = vld [vmem:[#allocation2 + $0x48] sm:$0xff]
    %v756 = vld [vmem:[#allocation2 + $0x50] sm:$0xff]
    %v757 = vld [vmem:[#allocation2 + $0x58] sm:$0xff]
    %v758 = vld [vmem:[#allocation2 + $0x60] sm:$0xff]
    %v759 = vld [vmem:[#allocation2 + $0x68] sm:$0xff]
    %v760 = vld [vmem:[#allocation2 + $0x70] sm:$0xff]
    %v761 = vld [vmem:[#allocation2 + $0x78] sm:$0xff]
    %v762 = vld [vmem:[#allocation2 + $0x80] sm:$0xff]
    %v763 = vld [vmem:[#allocation2 + $0x88] sm:$0xff]
    %v764 = vld [vmem:[#allocation2 + $0x90] sm:$0xff]
    %v765 = vld [vmem:[#allocation2 + $0x98] sm:$0xff]
    %v766 = vld [vmem:[#allocation2 + $0xa0] sm:$0xff]
    %v767 = vld [vmem:[#allocation2 + $0xa8] sm:$0xff]
    %v768 = vld [vmem:[#allocation2 + $0xb0] sm:$0xff]
    %v769 = vld [vmem:[#allocation2 + $0xb8] sm:$0xff]
    %v770 = vld [vmem:[#allocation2 + $0xc0] sm:$0xff]
    %v771 = vld [vmem:[#allocation2 + $0xc8] sm:$0xff]
    %v772 = vld [vmem:[#allocation2 + $0xd0] sm:$0xff]
    %v773 = vld [vmem:[#allocation2 + $0xd8] sm:$0xff]
    %v774 = vld [vmem:[#allocation2 + $0xe0] sm:$0xff]
    %v775 = vld [vmem:[#allocation2 + $0xe8] sm:$0xff]
    %v776 = vld [vmem:[#allocation2 + $0xf0] sm:$0xff]
    %v777 = vld [vmem:[#allocation2 + $0xf8] sm:$0xff]
    %v778 = vld [vmem:[#allocation2 + $0x100] sm:$0xff]
    %v779 = vld [vmem:[#allocation2 + $0x108] sm:$0xff]
    %v780 = vld [vmem:[#allocation2 + $0x110] sm:$0xff]
    %v781 = vld [vmem:[#allocation2 + $0x118] sm:$0xff]
    %v782 = vld [vmem:[#allocation2 + $0x120] sm:$0xff]
    %v783 = vld [vmem:[#allocation2 + $0x128] sm:$0xff]
    %v784 = vld [vmem:[#allocation2 + $0x130] sm:$0xff]
    %v785 = vld [vmem:[#allocation2 + $0x138] sm:$0xff]
    %v786 = vld [vmem:[#allocation2 + $0x140] sm:$0xff]
    %v787 = vld [vmem:[#allocation2 + $0x148] sm:$0xff]
    %v788 = vld [vmem:[#allocation2 + $0x150] sm:$0xff]
    %v789 = vld [vmem:[#allocation2 + $0x158] sm:$0xff]
    %v790 = vld [vmem:[#allocation2 + $0x160] sm:$0xff]
    %v791 = vld [vmem:[#allocation2 + $0x168] sm:$0xff]
    %v792 = vld [vmem:[#allocation2 + $0x170] sm:$0xff]
    %v793 = vld [vmem:[#allocation2 + $0x178] sm:$0xff]
    %v794 = vld [vmem:[#allocation2 + $0x180] sm:$0xff]
    %v795 = vld [vmem:[#allocation2 + $0x188] sm:$0xff]
    %v796 = vld [vmem:[#allocation2 + $0x190] sm:$0xff]
    %v797 = vld [vmem:[#allocation2 + $0x198] sm:$0xff]
    %v798 = vld [vmem:[#allocation2 + $0x1a0] sm:$0xff]
    %v799 = vld [vmem:[#allocation2 + $0x1a8] sm:$0xff]
    %v800 = vld [vmem:[#allocation2 + $0x1b0] sm:$0xff]
    %v801 = vld [vmem:[#allocation2 + $0x1b8] sm:$0xff]
    %v802 = vld [vmem:[#allocation2 + $0x1c0] sm:$0xff]
    %v803 = vld [vmem:[#allocation2 + $0x1c8] sm:$0xff]
    %v804 = vld [vmem:[#allocation2 + $0x1d0] sm:$0xff]
    %v805 = vld [vmem:[#allocation2 + $0x1d8] sm:$0xff]
    %v806 = vld [vmem:[#allocation2 + $0x1e0] sm:$0xff]
    %v807 = vld [vmem:[#allocation2 + $0x1e8] sm:$0xff]
    %v808 = vld [vmem:[#allocation2 + $0x1f0] sm:$0xff]
    %v809 = vld [vmem:[#allocation2 + $0x1f8] sm:$0xff]
    %v810 = vld [vmem:[#allocation2 + $0x200] sm:$0xff]
    %v811 = vld [vmem:[#allocation2 + $0x208] sm:$0xff]
    %v812 = vld [vmem:[#allocation2 + $0x210] sm:$0xff]
    %v813 = vld [vmem:[#allocation2 + $0x218] sm:$0xff]
    %v814 = vld [vmem:[#allocation2 + $0x220] sm:$0xff]
    %v815 = vld [vmem:[#allocation2 + $0x228] sm:$0xff]
    %v816 = vld [vmem:[#allocation2 + $0x230] sm:$0xff]
    %v817 = vld [vmem:[#allocation2 + $0x238] sm:$0xff]
    %v818 = vld [vmem:[#allocation2 + $0x240] sm:$0xff]
    %v819 = vld [vmem:[#allocation2 + $0x248] sm:$0xff]
    %v820 = vld [vmem:[#allocation2 + $0x250] sm:$0xff]
    %v821 = vld [vmem:[#allocation2 + $0x258] sm:$0xff]
    %v822 = vld [vmem:[#allocation2 + $0x260] sm:$0xff]
    %v823 = vld [vmem:[#allocation2 + $0x268] sm:$0xff]
    %v824 = vld [vmem:[#allocation2 + $0x270] sm:$0xff]
    %v825 = vld [vmem:[#allocation2 + $0x278] sm:$0xff]
    %v826 = vld [vmem:[#allocation2 + $0x280] sm:$0xff]
    %v827 = vld [vmem:[#allocation2 + $0x288] sm:$0xff]
    %v828 = vld [vmem:[#allocation2 + $0x290] sm:$0xff]
    %v829 = vld [vmem:[#allocation2 + $0x298] sm:$0xff]
    %v830 = vld [vmem:[#allocation2 + $0x2a0] sm:$0xff]
    %v831 = vld [vmem:[#allocation2 + $0x2a8] sm:$0xff]
    %v832 = vld [vmem:[#allocation2 + $0x2b0] sm:$0xff]
    %v833 = vld [vmem:[#allocation2 + $0x2b8] sm:$0xff]
    %v834 = vld [vmem:[#allocation2 + $0x2c0] sm:$0xff]
    %v835 = vld [vmem:[#allocation2 + $0x2c8] sm:$0xff]
    %v836 = vld [vmem:[#allocation2 + $0x2d0] sm:$0xff]
    %v837 = vld [vmem:[#allocation2 + $0x2d8] sm:$0xff]
    %v838 = vld [vmem:[#allocation2 + $0x2e0] sm:$0xff]
    %v839 = vld [vmem:[#allocation2 + $0x2e8] sm:$0xff]
    %v840 = vld [vmem:[#allocation2 + $0x2f0] sm:$0xff]
    %v841 = vld [vmem:[#allocation2 + $0x2f8] sm:$0xff]
    %v842 = vld [vmem:[#allocation2 + $0x300] sm:$0xff]
    %v843 = vld [vmem:[#allocation2 + $0x308] sm:$0xff]
    %v844 = vld [vmem:[#allocation2 + $0x310] sm:$0xff]
    %v845 = vld [vmem:[#allocation2 + $0x318] sm:$0xff]
    %v846 = vld [vmem:[#allocation2 + $0x320] sm:$0xff]
    %v847 = vld [vmem:[#allocation2 + $0x328] sm:$0xff]
    %v848 = vld [vmem:[#allocation2 + $0x330] sm:$0xff]
    %v849 = vld [vmem:[#allocation2 + $0x338] sm:$0xff]
    %v850 = vld [vmem:[#allocation2 + $0x340] sm:$0xff]
    %v851 = vld [vmem:[#allocation2 + $0x348] sm:$0xff]
    %v852 = vld [vmem:[#allocation2 + $0x350] sm:$0xff]
    %v853 = vld [vmem:[#allocation2 + $0x358] sm:$0xff]
    %v854 = vld [vmem:[#allocation2 + $0x360] sm:$0xff]
    %v855 = vld [vmem:[#allocation2 + $0x368] sm:$0xff]
    %v856 = vld [vmem:[#allocation2 + $0x370] sm:$0xff]
    %v857 = vld [vmem:[#allocation2 + $0x378] sm:$0xff]
    %v858 = vld [vmem:[#allocation2 + $0x380] sm:$0xff]
    %v859 = vld [vmem:[#allocation2 + $0x388] sm:$0xff]
    %v860 = vld [vmem:[#allocation2 + $0x390] sm:$0xff]
    %v861 = vld [vmem:[#allocation2 + $0x398] sm:$0xff]
    %v862 = vld [vmem:[#allocation2 + $0x3a0] sm:$0xff]
    %v863 = vld [vmem:[#allocation2 + $0x3a8] sm:$0xff]
    %v864 = vld [vmem:[#allocation2 + $0x3b0] sm:$0xff]
    %v865 = vld [vmem:[#allocation2 + $0x3b8] sm:$0xff]
    %v866 = vld [vmem:[#allocation2 + $0x3c0] sm:$0xff]
    %v867 = vld [vmem:[#allocation2 + $0x3c8] sm:$0xff]
    %v868 = vld [vmem:[#allocation2 + $0x3d0] sm:$0xff]
    %v869 = vld [vmem:[#allocation2 + $0x3d8] sm:$0xff]
    %v870 = vld [vmem:[#allocation2 + $0x3e0] sm:$0xff]
    %v871 = vld [vmem:[#allocation2 + $0x3e8] sm:$0xff]
    %v872 = vld [vmem:[#allocation2 + $0x3f0] sm:$0xff]
    %v873 = vld [vmem:[#allocation2 + $0x3f8] sm:$0xff]
    %v874 = vld [vmem:[#allocation2 + $0x400] sm:$0xff]
    %v875 = vld [vmem:[#allocation2 + $0x408] sm:$0xff]
    %v876 = vld [vmem:[#allocation2 + $0x410] sm:$0xff]
    %v877 = vld [vmem:[#allocation2 + $0x418] sm:$0xff]
    %v878 = vld [vmem:[#allocation2 + $0x420] sm:$0xff]
    %v879 = vld [vmem:[#allocation2 + $0x428] sm:$0xff]
    %v880 = vld [vmem:[#allocation2 + $0x430] sm:$0xff]
    %v881 = vld [vmem:[#allocation2 + $0x438] sm:$0xff]
    %v882 = vld [vmem:[#allocation2 + $0x440] sm:$0xff]
    %v883 = vld [vmem:[#allocation2 + $0x448] sm:$0xff]
    %v884 = vld [vmem:[#allocation2 + $0x450] sm:$0xff]
    %v885 = vld [vmem:[#allocation2 + $0x458] sm:$0xff]
    %v886 = vld [vmem:[#allocation2 + $0x460] sm:$0xff]
    %v887 = vld [vmem:[#allocation2 + $0x468] sm:$0xff]
    %v888 = vld [vmem:[#allocation2 + $0x470] sm:$0xff]
    %v889 = vld [vmem:[#allocation2 + $0x478] sm:$0xff]
    %v890 = vld [vmem:[#allocation2 + $0x480] sm:$0xff]
    %v891 = vld [vmem:[#allocation2 + $0x488] sm:$0xff]
    %v892 = vld [vmem:[#allocation2 + $0x490] sm:$0xff]
    %v893 = vld [vmem:[#allocation2 + $0x498] sm:$0xff]
    %v894 = vld [vmem:[#allocation2 + $0x4a0] sm:$0xff]
    %v895 = vld [vmem:[#allocation2 + $0x4a8] sm:$0xff]
    %v896 = vld [vmem:[#allocation2 + $0x4b0] sm:$0xff]
    %v897 = vld [vmem:[#allocation2 + $0x4b8] sm:$0xff]
    %v898 = vld [vmem:[#allocation2 + $0x4c0] sm:$0xff]
    %v899 = vld [vmem:[#allocation2 + $0x4c8] sm:$0xff]
    %v900 = vld [vmem:[#allocation2 + $0x4d0] sm:$0xff]
    %v901 = vld [vmem:[#allocation2 + $0x4d8] sm:$0xff]
    %v902 = vld [vmem:[#allocation2 + $0x4e0] sm:$0xff]
    %v903 = vld [vmem:[#allocation2 + $0x4e8] sm:$0xff]
    %v904 = vld [vmem:[#allocation2 + $0x4f0] sm:$0xff]
    %v905 = vld [vmem:[#allocation2 + $0x4f8] sm:$0xff]
    %v906 = vld [vmem:[#allocation2 + $0x500] sm:$0xff]
    %v907 = vld [vmem:[#allocation2 + $0x508] sm:$0xff]
    %v908 = vld [vmem:[#allocation2 + $0x510] sm:$0xff]
    %v909 = vld [vmem:[#allocation2 + $0x518] sm:$0xff]
    %v910 = vld [vmem:[#allocation2 + $0x520] sm:$0xff]
    %v911 = vld [vmem:[#allocation2 + $0x528] sm:$0xff]
    %v912 = vld [vmem:[#allocation2 + $0x530] sm:$0xff]
    %v913 = vld [vmem:[#allocation2 + $0x538] sm:$0xff]
    %v914 = vld [vmem:[#allocation2 + $0x540] sm:$0xff]
    %v915 = vld [vmem:[#allocation2 + $0x548] sm:$0xff]
    %v916 = vld [vmem:[#allocation2 + $0x550] sm:$0xff]
    %v917 = vld [vmem:[#allocation2 + $0x558] sm:$0xff]
    %v918 = vld [vmem:[#allocation2 + $0x560] sm:$0xff]
    %v919 = vld [vmem:[#allocation2 + $0x568] sm:$0xff]
    %v920 = vld [vmem:[#allocation2 + $0x570] sm:$0xff]
    %v921 = vld [vmem:[#allocation2 + $0x578] sm:$0xff]
    %v922 = vld [vmem:[#allocation2 + $0x580] sm:$0xff]
    %v923 = vld [vmem:[#allocation2 + $0x588] sm:$0xff]
    %v924 = vld [vmem:[#allocation2 + $0x590] sm:$0xff]
    %v925 = vld [vmem:[#allocation2 + $0x598] sm:$0xff]
    %v926 = vld [vmem:[#allocation2 + $0x5a0] sm:$0xff]
    %v927 = vld [vmem:[#allocation2 + $0x5a8] sm:$0xff]
    %v928 = vld [vmem:[#allocation2 + $0x5b0] sm:$0xff]
    %v929 = vld [vmem:[#allocation2 + $0x5b8] sm:$0xff]
    %v930 = vld [vmem:[#allocation2 + $0x5c0] sm:$0xff]
    %v931 = vld [vmem:[#allocation2 + $0x5c8] sm:$0xff]
    %v932 = vld [vmem:[#allocation2 + $0x5d0] sm:$0xff]
    %v933 = vld [vmem:[#allocation2 + $0x5d8] sm:$0xff]
    %v934 = vld [vmem:[#allocation2 + $0x5e0] sm:$0xff]
    %v935 = vld [vmem:[#allocation2 + $0x5e8] sm:$0xff]
    %v936 = vld [vmem:[#allocation2 + $0x5f0] sm:$0xff]
    %v937 = vld [vmem:[#allocation2 + $0x5f8] sm:$0xff]
    %v938 = vld [vmem:[#allocation2 + $0x600] sm:$0xff]
    %v939 = vld [vmem:[#allocation2 + $0x608] sm:$0xff]
    %v940 = vld [vmem:[#allocation2 + $0x610] sm:$0xff]
    %v941 = vld [vmem:[#allocation2 + $0x618] sm:$0xff]
    %v942 = vld [vmem:[#allocation2 + $0x620] sm:$0xff]
    %v943 = vld [vmem:[#allocation2 + $0x628] sm:$0xff]
    %v944 = vld [vmem:[#allocation2 + $0x630] sm:$0xff]
    %v945 = vld [vmem:[#allocation2 + $0x638] sm:$0xff]
    %v946 = vld [vmem:[#allocation2 + $0x640] sm:$0xff]
    %v947 = vld [vmem:[#allocation2 + $0x648] sm:$0xff]
    %v948 = vld [vmem:[#allocation2 + $0x650] sm:$0xff]
    %v949 = vld [vmem:[#allocation2 + $0x658] sm:$0xff]
    %v950 = vld [vmem:[#allocation2 + $0x660] sm:$0xff]
    %v951 = vld [vmem:[#allocation2 + $0x668] sm:$0xff]
    %v952 = vld [vmem:[#allocation2 + $0x670] sm:$0xff]
    %v953 = vld [vmem:[#allocation2 + $0x678] sm:$0xff]
    %v954 = vld [vmem:[#allocation2 + $0x680] sm:$0xff]
    %v955 = vld [vmem:[#allocation2 + $0x688] sm:$0xff]
    %v956 = vld [vmem:[#allocation2 + $0x690] sm:$0xff]
    %v957 = vld [vmem:[#allocation2 + $0x698] sm:$0xff]
    %v958 = vld [vmem:[#allocation2 + $0x6a0] sm:$0xff]
    %v959 = vld [vmem:[#allocation2 + $0x6a8] sm:$0xff]
    %v960 = vld [vmem:[#allocation2 + $0x6b0] sm:$0xff]
    %v961 = vld [vmem:[#allocation2 + $0x6b8] sm:$0xff]
    %v962 = vld [vmem:[#allocation2 + $0x6c0] sm:$0xff]
    %v963 = vld [vmem:[#allocation2 + $0x6c8] sm:$0xff]
    %v964 = vld [vmem:[#allocation2 + $0x6d0] sm:$0xff]
    %v965 = vld [vmem:[#allocation2 + $0x6d8] sm:$0xff]
    %v966 = vld [vmem:[#allocation2 + $0x6e0] sm:$0xff]
    %v967 = vld [vmem:[#allocation2 + $0x6e8] sm:$0xff]
    %v968 = vld [vmem:[#allocation2 + $0x6f0] sm:$0xff]
    %v969 = vld [vmem:[#allocation2 + $0x6f8] sm:$0xff]
    %v970 = vld [vmem:[#allocation2 + $0x700] sm:$0xff]
    %v971 = vld [vmem:[#allocation2 + $0x708] sm:$0xff]
    %v972 = vld [vmem:[#allocation2 + $0x710] sm:$0xff]
    %v973 = vld [vmem:[#allocation2 + $0x718] sm:$0xff]
    %v974 = vld [vmem:[#allocation2 + $0x720] sm:$0xff]
    %v975 = vld [vmem:[#allocation2 + $0x728] sm:$0xff]
    %v976 = vld [vmem:[#allocation2 + $0x730] sm:$0xff]
    %v977 = vld [vmem:[#allocation2 + $0x738] sm:$0xff]
    %v978 = vld [vmem:[#allocation2 + $0x740] sm:$0xff]
    %v979 = vld [vmem:[#allocation2 + $0x748] sm:$0xff]
    %v980 = vld [vmem:[#allocation2 + $0x750] sm:$0xff]
    %v981 = vld [vmem:[#allocation2 + $0x758] sm:$0xff]
    %v982 = vld [vmem:[#allocation2 + $0x760] sm:$0xff]
    %v983 = vld [vmem:[#allocation2 + $0x768] sm:$0xff]
    %v984 = vld [vmem:[#allocation2 + $0x770] sm:$0xff]
    %v985 = vld [vmem:[#allocation2 + $0x778] sm:$0xff]
    %v986 = vld [vmem:[#allocation2 + $0x780] sm:$0xff]
    %v987 = vld [vmem:[#allocation2 + $0x788] sm:$0xff]
    %v988 = vld [vmem:[#allocation2 + $0x790] sm:$0xff]
    %v989 = vld [vmem:[#allocation2 + $0x798] sm:$0xff]
    %v990 = vld [vmem:[#allocation2 + $0x7a0] sm:$0xff]
    %v991 = vld [vmem:[#allocation2 + $0x7a8] sm:$0xff]
    %v992 = vld [vmem:[#allocation2 + $0x7b0] sm:$0xff]
    %v993 = vld [vmem:[#allocation2 + $0x7b8] sm:$0xff]
    %v994 = vld [vmem:[#allocation2 + $0x7c0] sm:$0xff]
    %v995 = vld [vmem:[#allocation2 + $0x7c8] sm:$0xff]
    %v996 = vld [vmem:[#allocation2 + $0x7d0] sm:$0xff]
    %v997 = vld [vmem:[#allocation2 + $0x7d8] sm:$0xff]
    %v998 = vld [vmem:[#allocation2 + $0x7e0] sm:$0xff]
    %v999 = vld [vmem:[#allocation2 + $0x7e8] sm:$0xff]
    %v1000 = vld [vmem:[#allocation2 + $0x7f0] sm:$0xff]
    %v1001 = vld [vmem:[#allocation2 + $0x7f8] sm:$0xff]
    %v1002 = vld [vmem:[#allocation2 + $0x800] sm:$0xff]
    %v1003 = vld [vmem:[#allocation2 + $0x808] sm:$0xff]
    %v1004 = vld [vmem:[#allocation2 + $0x810] sm:$0xff]
    %v1005 = vld [vmem:[#allocation2 + $0x818] sm:$0xff]
    %v1006 = vld [vmem:[#allocation2 + $0x820] sm:$0xff]
    %v1007 = vld [vmem:[#allocation2 + $0x828] sm:$0xff]
    %v1008 = vld [vmem:[#allocation2 + $0x830] sm:$0xff]
    %v1009 = vld [vmem:[#allocation2 + $0x838] sm:$0xff]
    %v1010 = vld [vmem:[#allocation2 + $0x840] sm:$0xff]
    %v1011 = vld [vmem:[#allocation2 + $0x848] sm:$0xff]
    %v1012 = vld [vmem:[#allocation2 + $0x850] sm:$0xff]
    %v1013 = vld [vmem:[#allocation2 + $0x858] sm:$0xff]
    %v1014 = vld [vmem:[#allocation2 + $0x860] sm:$0xff]
    %v1015 = vld [vmem:[#allocation2 + $0x868] sm:$0xff]
    %v1016 = vld [vmem:[#allocation2 + $0x870] sm:$0xff]
    %v1017 = vld [vmem:[#allocation2 + $0x878] sm:$0xff]
    %v1018 = vld [vmem:[#allocation2 + $0x880] sm:$0xff]
    %v1019 = vld [vmem:[#allocation2 + $0x888] sm:$0xff]
    %v1020 = vld [vmem:[#allocation2 + $0x890] sm:$0xff]
    %v1021 = vld [vmem:[#allocation2 + $0x898] sm:$0xff]
    %v1022 = vld [vmem:[#allocation2 + $0x8a0] sm:$0xff]
    %v1023 = vld [vmem:[#allocation2 + $0x8a8] sm:$0xff]
    %v1024 = vld [vmem:[#allocation2 + $0x8b0] sm:$0xff]
    %v1025 = vld [vmem:[#allocation2 + $0x8b8] sm:$0xff]
    %v1026 = vld [vmem:[#allocation2 + $0x8c0] sm:$0xff]
    %v1027 = vld [vmem:[#allocation2 + $0x8c8] sm:$0xff]
    %v1028 = vld [vmem:[#allocation2 + $0x8d0] sm:$0xff]
    %v1029 = vld [vmem:[#allocation2 + $0x8d8] sm:$0xff]
    %v1030 = vld [vmem:[#allocation2 + $0x8e0] sm:$0xff]
    %v1031 = vld [vmem:[#allocation2 + $0x8e8] sm:$0xff]
    %v1032 = vld [vmem:[#allocation2 + $0x8f0] sm:$0xff]
    %v1033 = vld [vmem:[#allocation2 + $0x8f8] sm:$0xff]
    %v1034 = vld [vmem:[#allocation2 + $0x900] sm:$0xff]
    %v1035 = vld [vmem:[#allocation2 + $0x908] sm:$0xff]
    %v1036 = vld [vmem:[#allocation2 + $0x910] sm:$0xff]
    %v1037 = vld [vmem:[#allocation2 + $0x918] sm:$0xff]
    %v1038 = vld [vmem:[#allocation2 + $0x920] sm:$0xff]
    %v1039 = vld [vmem:[#allocation2 + $0x928] sm:$0xff]
    %v1040 = vld [vmem:[#allocation2 + $0x930] sm:$0xff]
    %v1041 = vld [vmem:[#allocation2 + $0x938] sm:$0xff]
    %v1042 = vld [vmem:[#allocation2 + $0x940] sm:$0xff]
    %v1043 = vld [vmem:[#allocation2 + $0x948] sm:$0xff]
    %v1044 = vld [vmem:[#allocation2 + $0x950] sm:$0xff]
    %v1045 = vld [vmem:[#allocation2 + $0x958] sm:$0xff]
    %v1046 = vld [vmem:[#allocation2 + $0x960] sm:$0xff]
    %v1047 = vld [vmem:[#allocation2 + $0x968] sm:$0xff]
    %v1048 = vld [vmem:[#allocation2 + $0x970] sm:$0xff]
    %v1049 = vld [vmem:[#allocation2 + $0x978] sm:$0xff]
    %v1050 = vld [vmem:[#allocation2 + $0x980] sm:$0xff]
    %v1051 = vld [vmem:[#allocation2 + $0x988] sm:$0xff]
    %v1052 = vld [vmem:[#allocation2 + $0x990] sm:$0xff]
    %v1053 = vld [vmem:[#allocation2 + $0x998] sm:$0xff]
    %v1054 = vld [vmem:[#allocation2 + $0x9a0] sm:$0xff]
    %v1055 = vld [vmem:[#allocation2 + $0x9a8] sm:$0xff]
    %v1056 = vld [vmem:[#allocation2 + $0x9b0] sm:$0xff]
    %v1057 = vld [vmem:[#allocation2 + $0x9b8] sm:$0xff]
    %v1058 = vld [vmem:[#allocation2 + $0x9c0] sm:$0xff]
    %v1059 = vld [vmem:[#allocation2 + $0x9c8] sm:$0xff]
    %v1060 = vld [vmem:[#allocation2 + $0x9d0] sm:$0xff]
    %v1061 = vld [vmem:[#allocation2 + $0x9d8] sm:$0xff]
    %v1062 = vld [vmem:[#allocation2 + $0x9e0] sm:$0xff]
    %v1063 = vld [vmem:[#allocation2 + $0x9e8] sm:$0xff]
    %v1064 = vld [vmem:[#allocation2 + $0x9f0] sm:$0xff]
    %v1065 = vld [vmem:[#allocation2 + $0x9f8] sm:$0xff]
    %v1066 = vld [vmem:[#allocation2 + $0xa00] sm:$0xff]
    %v1067 = vld [vmem:[#allocation2 + $0xa08] sm:$0xff]
    %v1068 = vld [vmem:[#allocation2 + $0xa10] sm:$0xff]
    %v1069 = vld [vmem:[#allocation2 + $0xa18] sm:$0xff]
    %v1070 = vld [vmem:[#allocation2 + $0xa20] sm:$0xff]
    %v1071 = vld [vmem:[#allocation2 + $0xa28] sm:$0xff]
    %v1072 = vld [vmem:[#allocation2 + $0xa30] sm:$0xff]
    %v1073 = vld [vmem:[#allocation2 + $0xa38] sm:$0xff]
    %v1074 = vld [vmem:[#allocation2 + $0xa40] sm:$0xff]
    %v1075 = vld [vmem:[#allocation2 + $0xa48] sm:$0xff]
    %v1076 = vld [vmem:[#allocation2 + $0xa50] sm:$0xff]
    %v1077 = vld [vmem:[#allocation2 + $0xa58] sm:$0xff]
    %v1078 = vld [vmem:[#allocation2 + $0xa60] sm:$0xff]
    %v1079 = vld [vmem:[#allocation2 + $0xa68] sm:$0xff]
    %v1080 = vld [vmem:[#allocation2 + $0xa70] sm:$0xff]
    %v1081 = vld [vmem:[#allocation2 + $0xa78] sm:$0xff]
    %v1082 = vld [vmem:[#allocation2 + $0xa80] sm:$0xff]
    %v1083 = vld [vmem:[#allocation2 + $0xa88] sm:$0xff]
    %v1084 = vld [vmem:[#allocation2 + $0xa90] sm:$0xff]
    %v1085 = vld [vmem:[#allocation2 + $0xa98] sm:$0xff]
    %v1086 = vld [vmem:[#allocation2 + $0xaa0] sm:$0xff]
    %v1087 = vld [vmem:[#allocation2 + $0xaa8] sm:$0xff]
    %v1088 = vld [vmem:[#allocation2 + $0xab0] sm:$0xff]
    %v1089 = vld [vmem:[#allocation2 + $0xab8] sm:$0xff]
    %v1090 = vld [vmem:[#allocation2 + $0xac0] sm:$0xff]
    %v1091 = vld [vmem:[#allocation2 + $0xac8] sm:$0xff]
    %v1092 = vld [vmem:[#allocation2 + $0xad0] sm:$0xff]
    %v1093 = vld [vmem:[#allocation2 + $0xad8] sm:$0xff]
    %v1094 = vld [vmem:[#allocation2 + $0xae0] sm:$0xff]
    %v1095 = vld [vmem:[#allocation2 + $0xae8] sm:$0xff]
    %v1096 = vld [vmem:[#allocation2 + $0xaf0] sm:$0xff]
    %v1097 = vld [vmem:[#allocation2 + $0xaf8] sm:$0xff]
    %v1098 = vld [vmem:[#allocation2 + $0xb00] sm:$0xff]
    %v1099 = vld [vmem:[#allocation2 + $0xb08] sm:$0xff]
    %v1100 = vld [vmem:[#allocation2 + $0xb10] sm:$0xff]
    %v1101 = vld [vmem:[#allocation2 + $0xb18] sm:$0xff]
    %v1102 = vld [vmem:[#allocation2 + $0xb20] sm:$0xff]
    %v1103 = vld [vmem:[#allocation2 + $0xb28] sm:$0xff]
    %v1104 = vld [vmem:[#allocation2 + $0xb30] sm:$0xff]
    %v1105 = vld [vmem:[#allocation2 + $0xb38] sm:$0xff]
    %v1106 = vld [vmem:[#allocation2 + $0xb40] sm:$0xff]
    %v1107 = vld [vmem:[#allocation2 + $0xb48] sm:$0xff]
    %v1108 = vld [vmem:[#allocation2 + $0xb50] sm:$0xff]
    %v1109 = vld [vmem:[#allocation2 + $0xb58] sm:$0xff]
    %v1110 = vld [vmem:[#allocation2 + $0xb60] sm:$0xff]
    %v1111 = vld [vmem:[#allocation2 + $0xb68] sm:$0xff]
    %v1112 = vld [vmem:[#allocation2 + $0xb70] sm:$0xff]
    %v1113 = vld [vmem:[#allocation2 + $0xb78] sm:$0xff]
    %v1114 = vld [vmem:[#allocation2 + $0xb80] sm:$0xff]
    %v1115 = vld [vmem:[#allocation2 + $0xb88] sm:$0xff]
    %v1116 = vld [vmem:[#allocation2 + $0xb90] sm:$0xff]
    %v1117 = vld [vmem:[#allocation2 + $0xb98] sm:$0xff]
    %v1118 = vld [vmem:[#allocation2 + $0xba0] sm:$0xff]
    %v1119 = vld [vmem:[#allocation2 + $0xba8] sm:$0xff]
    %v1120 = vld [vmem:[#allocation2 + $0xbb0] sm:$0xff]
    %v1121 = vld [vmem:[#allocation2 + $0xbb8] sm:$0xff]
    %v1122 = vld [vmem:[#allocation2 + $0xbc0] sm:$0xff]
    %v1123 = vld [vmem:[#allocation2 + $0xbc8] sm:$0xff]
    %v1124 = vld [vmem:[#allocation2 + $0xbd0] sm:$0xff]
    %v1125 = vld [vmem:[#allocation2 + $0xbd8] sm:$0xff]
    %v1126 = vld [vmem:[#allocation2 + $0xbe0] sm:$0xff]
    %v1127 = vld [vmem:[#allocation2 + $0xbe8] sm:$0xff]
    %v1128 = vld [vmem:[#allocation2 + $0xbf0] sm:$0xff]
    %v1129 = vld [vmem:[#allocation2 + $0xbf8] sm:$0xff]
    %v1130 = vld [vmem:[#allocation2 + $0xc00] sm:$0xff]
    %v1131 = vld [vmem:[#allocation2 + $0xc08] sm:$0xff]
    %v1132 = vld [vmem:[#allocation2 + $0xc10] sm:$0xff]
    %v1133 = vld [vmem:[#allocation2 + $0xc18] sm:$0xff]
    %v1134 = vld [vmem:[#allocation2 + $0xc20] sm:$0xff]
    %v1135 = vld [vmem:[#allocation2 + $0xc28] sm:$0xff]
    %v1136 = vld [vmem:[#allocation2 + $0xc30] sm:$0xff]
    %v1137 = vld [vmem:[#allocation2 + $0xc38] sm:$0xff]
    %v1138 = vld [vmem:[#allocation2 + $0xc40] sm:$0xff]
    %v1139 = vld [vmem:[#allocation2 + $0xc48] sm:$0xff]
    %v1140 = vld [vmem:[#allocation2 + $0xc50] sm:$0xff]
    %v1141 = vld [vmem:[#allocation2 + $0xc58] sm:$0xff]
    %v1142 = vld [vmem:[#allocation2 + $0xc60] sm:$0xff]
    %v1143 = vld [vmem:[#allocation2 + $0xc68] sm:$0xff]
    %v1144 = vld [vmem:[#allocation2 + $0xc70] sm:$0xff]
    %v1145 = vld [vmem:[#allocation2 + $0xc78] sm:$0xff]
    %v1146 = vld [vmem:[#allocation2 + $0xc80] sm:$0xff]
    %v1147 = vld [vmem:[#allocation2 + $0xc88] sm:$0xff]
    %v1148 = vld [vmem:[#allocation2 + $0xc90] sm:$0xff]
    %v1149 = vld [vmem:[#allocation2 + $0xc98] sm:$0xff]
    %v1150 = vld [vmem:[#allocation2 + $0xca0] sm:$0xff]
    %v1151 = vld [vmem:[#allocation2 + $0xca8] sm:$0xff]
    %v1152 = vld [vmem:[#allocation2 + $0xcb0] sm:$0xff]
    %v1153 = vld [vmem:[#allocation2 + $0xcb8] sm:$0xff]
    %v1154 = vld [vmem:[#allocation2 + $0xcc0] sm:$0xff]
    %v1155 = vld [vmem:[#allocation2 + $0xcc8] sm:$0xff]
    %v1156 = vld [vmem:[#allocation2 + $0xcd0] sm:$0xff]
    %v1157 = vld [vmem:[#allocation2 + $0xcd8] sm:$0xff]
    %v1158 = vld [vmem:[#allocation2 + $0xce0] sm:$0xff]
    %v1159 = vld [vmem:[#allocation2 + $0xce8] sm:$0xff]
    %v1160 = vld [vmem:[#allocation2 + $0xcf0] sm:$0xff]
    %v1161 = vld [vmem:[#allocation2 + $0xcf8] sm:$0xff]
    %v1162 = vld [vmem:[#allocation2 + $0xd00] sm:$0xff]
    %v1163 = vld [vmem:[#allocation2 + $0xd08] sm:$0xff]
    %v1164 = vld [vmem:[#allocation2 + $0xd10] sm:$0xff]
    %v1165 = vld [vmem:[#allocation2 + $0xd18] sm:$0xff]
    %v1166 = vld [vmem:[#allocation2 + $0xd20] sm:$0xff]
    %v1167 = vld [vmem:[#allocation2 + $0xd28] sm:$0xff]
    %v1168 = vld [vmem:[#allocation2 + $0xd30] sm:$0xff]
    %v1169 = vld [vmem:[#allocation2 + $0xd38] sm:$0xff]
    %v1170 = vld [vmem:[#allocation2 + $0xd40] sm:$0xff]
    %v1171 = vld [vmem:[#allocation2 + $0xd48] sm:$0xff]
    %v1172 = vld [vmem:[#allocation2 + $0xd50] sm:$0xff]
    %v1173 = vld [vmem:[#allocation2 + $0xd58] sm:$0xff]
    %v1174 = vld [vmem:[#allocation2 + $0xd60] sm:$0xff]
    %v1175 = vld [vmem:[#allocation2 + $0xd68] sm:$0xff]
    %v1176 = vld [vmem:[#allocation2 + $0xd70] sm:$0xff]
    %v1177 = vld [vmem:[#allocation2 + $0xd78] sm:$0xff]
    %v1178 = vld [vmem:[#allocation2 + $0xd80] sm:$0xff]
    %v1179 = vld [vmem:[#allocation2 + $0xd88] sm:$0xff]
    %v1180 = vld [vmem:[#allocation2 + $0xd90] sm:$0xff]
    %v1181 = vld [vmem:[#allocation2 + $0xd98] sm:$0xff]
    %v1182 = vld [vmem:[#allocation2 + $0xda0] sm:$0xff]
    %v1183 = vld [vmem:[#allocation2 + $0xda8] sm:$0xff]
    %v1184 = vld [vmem:[#allocation2 + $0xdb0] sm:$0xff]
    %v1185 = vld [vmem:[#allocation2 + $0xdb8] sm:$0xff]
    %v1186 = vld [vmem:[#allocation2 + $0xdc0] sm:$0xff]
    %v1187 = vld [vmem:[#allocation2 + $0xdc8] sm:$0xff]
    %v1188 = vld [vmem:[#allocation2 + $0xdd0] sm:$0xff]
    %v1189 = vld [vmem:[#allocation2 + $0xdd8] sm:$0xff]
    %v1190 = vld [vmem:[#allocation2 + $0xde0] sm:$0xff]
    %v1191 = vld [vmem:[#allocation2 + $0xde8] sm:$0xff]
    %v1192 = vld [vmem:[#allocation2 + $0xdf0] sm:$0xff]
    %v1193 = vld [vmem:[#allocation2 + $0xdf8] sm:$0xff]
    %v1194 = vld [vmem:[#allocation2 + $0xe00] sm:$0xff]
    %v1195 = vld [vmem:[#allocation2 + $0xe08] sm:$0xff]
    %v1196 = vld [vmem:[#allocation2 + $0xe10] sm:$0xff]
    %v1197 = vld [vmem:[#allocation2 + $0xe18] sm:$0xff]
    %v1198 = vld [vmem:[#allocation2 + $0xe20] sm:$0xff]
    %v1199 = vld [vmem:[#allocation2 + $0xe28] sm:$0xff]
    %v1200 = vld [vmem:[#allocation2 + $0xe30] sm:$0xff]
    %v1201 = vld [vmem:[#allocation2 + $0xe38] sm:$0xff]
    %v1202 = vld [vmem:[#allocation2 + $0xe40] sm:$0xff]
    %v1203 = vld [vmem:[#allocation2 + $0xe48] sm:$0xff]
    %v1204 = vld [vmem:[#allocation2 + $0xe50] sm:$0xff]
    %v1205 = vld [vmem:[#allocation2 + $0xe58] sm:$0xff]
    %v1206 = vld [vmem:[#allocation2 + $0xe60] sm:$0xff]
    %v1207 = vld [vmem:[#allocation2 + $0xe68] sm:$0xff]
    %v1208 = vld [vmem:[#allocation2 + $0xe70] sm:$0xff]
    %v1209 = vld [vmem:[#allocation2 + $0xe78] sm:$0xff]
    %v1210 = vld [vmem:[#allocation2 + $0xe80] sm:$0xff]
    %v1211 = vld [vmem:[#allocation2 + $0xe88] sm:$0xff]
    %v1212 = vld [vmem:[#allocation2 + $0xe90] sm:$0xff]
    %v1213 = vld [vmem:[#allocation2 + $0xe98] sm:$0xff]
    %v1214 = vld [vmem:[#allocation2 + $0xea0] sm:$0xff]
    %v1215 = vld [vmem:[#allocation2 + $0xea8] sm:$0xff]
    %v1216 = vld [vmem:[#allocation2 + $0xeb0] sm:$0xff]
    %v1217 = vld [vmem:[#allocation2 + $0xeb8] sm:$0xff]
    %v1218 = vld [vmem:[#allocation2 + $0xec0] sm:$0xff]
    %v1219 = vld [vmem:[#allocation2 + $0xec8] sm:$0xff]
    %v1220 = vld [vmem:[#allocation2 + $0xed0] sm:$0xff]
    %v1221 = vld [vmem:[#allocation2 + $0xed8] sm:$0xff]
    %v1222 = vld [vmem:[#allocation2 + $0xee0] sm:$0xff]
    %v1223 = vld [vmem:[#allocation2 + $0xee8] sm:$0xff]
    %v1224 = vld [vmem:[#allocation2 + $0xef0] sm:$0xff]
    %v1225 = vld [vmem:[#allocation2 + $0xef8] sm:$0xff]
    %v1226 = vld [vmem:[#allocation2 + $0xf00] sm:$0xff]
    %v1227 = vld [vmem:[#allocation2 + $0xf08] sm:$0xff]
    %v1228 = vld [vmem:[#allocation2 + $0xf10] sm:$0xff]
    %v1229 = vld [vmem:[#allocation2 + $0xf18] sm:$0xff]
    %v1230 = vld [vmem:[#allocation2 + $0xf20] sm:$0xff]
    %v1231 = vld [vmem:[#allocation2 + $0xf28] sm:$0xff]
    %v1232 = vld [vmem:[#allocation2 + $0xf30] sm:$0xff]
    %v1233 = vld [vmem:[#allocation2 + $0xf38] sm:$0xff]
    %v1234 = vld [vmem:[#allocation2 + $0xf40] sm:$0xff]
    %v1235 = vld [vmem:[#allocation2 + $0xf48] sm:$0xff]
    %v1236 = vld [vmem:[#allocation2 + $0xf50] sm:$0xff]
    %v1237 = vld [vmem:[#allocation2 + $0xf58] sm:$0xff]
    %v1238 = vld [vmem:[#allocation2 + $0xf60] sm:$0xff]
    %v1239 = vld [vmem:[#allocation2 + $0xf68] sm:$0xff]
    %v1240 = vld [vmem:[#allocation2 + $0xf70] sm:$0xff]
    %v1241 = vld [vmem:[#allocation2 + $0xf78] sm:$0xff]
    %v1242 = vld [vmem:[#allocation2 + $0xf80] sm:$0xff]
    %v1243 = vld [vmem:[#allocation2 + $0xf88] sm:$0xff]
    %v1244 = vld [vmem:[#allocation2 + $0xf90] sm:$0xff]
    %v1245 = vld [vmem:[#allocation2 + $0xf98] sm:$0xff]
    %v1246 = vld [vmem:[#allocation2 + $0xfa0] sm:$0xff]
    %v1247 = vld [vmem:[#allocation2 + $0xfa8] sm:$0xff]
    %v1248 = vld [vmem:[#allocation2 + $0xfb0] sm:$0xff]
    %v1249 = vld [vmem:[#allocation2 + $0xfb8] sm:$0xff]
    %v1250 = vld [vmem:[#allocation2 + $0xfc0] sm:$0xff]
    %v1251 = vld [vmem:[#allocation2 + $0xfc8] sm:$0xff]
    %v1252 = vld [vmem:[#allocation2 + $0xfd0] sm:$0xff]
    %v1253 = vld [vmem:[#allocation2 + $0xfd8] sm:$0xff]
    %v1254 = vld [vmem:[#allocation2 + $0xfe0] sm:$0xff]
    %v1255 = vld [vmem:[#allocation2 + $0xfe8] sm:$0xff]
    %v1256 = vld [vmem:[#allocation2 + $0xff0] sm:$0xff]
    %v1257 = vld [vmem:[#allocation2 + $0xff8] sm:$0xff]
    %v1258 = vld [vmem:[#allocation5] sm:$0xf]
    %v1260 = vlaneseq
    %v1261 = vshrl.u32 %v1260, 7
    %v1262 = vsub.s32 0, %v1261
    %v1263 = vrot.slane %v1258, %v1262
    %v1264 = vlaneseq
    %v1265 = vshrl.u32 %v1264, 7
    %v1266 = vsub.s32 1, %v1265
    %v1267 = vrot.slane %v1258, %v1266
    %v1268 = vlaneseq
    %v1269 = vshrl.u32 %v1268, 7
    %v1270 = vsub.s32 2, %v1269
    %v1271 = vrot.slane %v1258, %v1270
    %v1272 = vlaneseq
    %v1273 = vshrl.u32 %v1272, 7
    %v1274 = vsub.s32 3, %v1273
    %v1275 = vrot.slane %v1258, %v1274
    %v1312 = vunpack.c.l.b16 %v714
    %v1313 = vunpack.c.l.b16 %v715
    %v1314 = vunpack.c.l.b16 %v716
    %v1315 = vunpack.c.l.b16 %v717
    %v1316 = vunpack.c.l.b16 %v718
    %v1317 = vunpack.c.l.b16 %v719
    %v1318 = vunpack.c.l.b16 %v720
    %v1319 = vunpack.c.l.b16 %v721
    %v1320 = vunpack.c.l.b16 %v722
    %v1321 = vunpack.c.l.b16 %v723
    %v1322 = vunpack.c.l.b16 %v724
    %v1323 = vunpack.c.l.b16 %v725
    %v1324 = vunpack.c.l.b16 %v726
    %v1325 = vunpack.c.l.b16 %v727
    %v1326 = vunpack.c.l.b16 %v728
    %v1327 = vunpack.c.l.b16 %v729
    %v1328 = vunpack.c.l.b16 %v730
    %v1329 = vunpack.c.l.b16 %v731
    %v1330 = vunpack.c.l.b16 %v732
    %v1331 = vunpack.c.l.b16 %v733
    %v1332 = vunpack.c.l.b16 %v734
    %v1333 = vunpack.c.l.b16 %v735
    %v1334 = vunpack.c.l.b16 %v736
    %v1335 = vunpack.c.l.b16 %v737
    %v1336 = vunpack.c.l.b16 %v738
    %v1337 = vunpack.c.l.b16 %v739
    %v1338 = vunpack.c.l.b16 %v740
    %v1339 = vunpack.c.l.b16 %v741
    %v1340 = vunpack.c.l.b16 %v742
    %v1341 = vunpack.c.l.b16 %v743
    %v1342 = vunpack.c.l.b16 %v744
    %v1343 = vunpack.c.l.b16 %v745
    %vm1344 = vcmask 1041409
    %v1345 = vsel %vm1344, %v1328, %v1312
    %v1346 = vsel %vm1344, %v1329, %v1313
    %v1347 = vsel %vm1344, %v1330, %v1314
    %v1348 = vsel %vm1344, %v1331, %v1315
    %v1349 = vsel %vm1344, %v1332, %v1316
    %v1350 = vsel %vm1344, %v1333, %v1317
    %v1351 = vsel %vm1344, %v1334, %v1318
    %v1352 = vsel %vm1344, %v1335, %v1319
    %v1353 = vsel %vm1344, %v1336, %v1320
    %v1354 = vsel %vm1344, %v1337, %v1321
    %v1355 = vsel %vm1344, %v1338, %v1322
    %v1356 = vsel %vm1344, %v1339, %v1323
    %v1357 = vsel %vm1344, %v1340, %v1324
    %v1358 = vsel %vm1344, %v1341, %v1325
    %v1359 = vsel %vm1344, %v1342, %v1326
    %v1360 = vsel %vm1344, %v1343, %v1327
    %v1361 = vpack.c.b16 %v1345, %v1345
    %v1362 = vpack.c.b16 %v1346, %v1346
    %v1363 = vpack.c.b16 %v1347, %v1347
    %v1364 = vpack.c.b16 %v1348, %v1348
    %v1365 = vpack.c.b16 %v1349, %v1349
    %v1366 = vpack.c.b16 %v1350, %v1350
    %v1367 = vpack.c.b16 %v1351, %v1351
    %v1368 = vpack.c.b16 %v1352, %v1352
    %v1369 = vpack.c.b16 %v1353, %v1353
    %v1370 = vpack.c.b16 %v1354, %v1354
    %v1371 = vpack.c.b16 %v1355, %v1355
    %v1372 = vpack.c.b16 %v1356, %v1356
    %v1373 = vpack.c.b16 %v1357, %v1357
    %v1374 = vpack.c.b16 %v1358, %v1358
    %v1375 = vpack.c.b16 %v1359, %v1359
    %v1376 = vpack.c.b16 %v1360, %v1360
    %v1905 = vunpack.c.l.b16 %v746
    %v1906 = vunpack.c.h.b16 %v746
    %v1907 = vunpack.c.l.b16 %v747
    %v1908 = vunpack.c.h.b16 %v747
    %v1909 = vunpack.c.l.b16 %v748
    %v1910 = vunpack.c.h.b16 %v748
    %v1911 = vunpack.c.l.b16 %v749
    %v1912 = vunpack.c.h.b16 %v749
    %v1913 = vunpack.c.l.b16 %v750
    %v1914 = vunpack.c.h.b16 %v750
    %v1915 = vunpack.c.l.b16 %v751
    %v1916 = vunpack.c.h.b16 %v751
    %v1917 = vunpack.c.l.b16 %v752
    %v1918 = vunpack.c.h.b16 %v752
    %v1919 = vunpack.c.l.b16 %v753
    %v1920 = vunpack.c.h.b16 %v753
    %v1921 = vunpack.c.l.b16 %v754
    %v1922 = vunpack.c.h.b16 %v754
    %v1923 = vunpack.c.l.b16 %v755
    %v1924 = vunpack.c.h.b16 %v755
    %v1925 = vunpack.c.l.b16 %v756
    %v1926 = vunpack.c.h.b16 %v756
    %v1927 = vunpack.c.l.b16 %v757
    %v1928 = vunpack.c.h.b16 %v757
    %v1929 = vunpack.c.l.b16 %v758
    %v1930 = vunpack.c.h.b16 %v758
    %v1931 = vunpack.c.l.b16 %v759
    %v1932 = vunpack.c.h.b16 %v759
    %v1933 = vunpack.c.l.b16 %v760
    %v1934 = vunpack.c.h.b16 %v760
    %v1935 = vunpack.c.l.b16 %v761
    %v1936 = vunpack.c.h.b16 %v761
    %v1937 = vunpack.c.l.b16 %v762
    %v1938 = vunpack.c.h.b16 %v762
    %v1939 = vunpack.c.l.b16 %v763
    %v1940 = vunpack.c.h.b16 %v763
    %v1941 = vunpack.c.l.b16 %v764
    %v1942 = vunpack.c.h.b16 %v764
    %v1943 = vunpack.c.l.b16 %v765
    %v1944 = vunpack.c.h.b16 %v765
    %v1945 = vunpack.c.l.b16 %v766
    %v1946 = vunpack.c.h.b16 %v766
    %v1947 = vunpack.c.l.b16 %v767
    %v1948 = vunpack.c.h.b16 %v767
    %v1949 = vunpack.c.l.b16 %v768
    %v1950 = vunpack.c.h.b16 %v768
    %v1951 = vunpack.c.l.b16 %v769
    %v1952 = vunpack.c.h.b16 %v769
    %v1953 = vunpack.c.l.b16 %v770
    %v1954 = vunpack.c.h.b16 %v770
    %v1955 = vunpack.c.l.b16 %v771
    %v1956 = vunpack.c.h.b16 %v771
    %v1957 = vunpack.c.l.b16 %v772
    %v1958 = vunpack.c.h.b16 %v772
    %v1959 = vunpack.c.l.b16 %v773
    %v1960 = vunpack.c.h.b16 %v773
    %v1961 = vunpack.c.l.b16 %v774
    %v1962 = vunpack.c.h.b16 %v774
    %v1963 = vunpack.c.l.b16 %v775
    %v1964 = vunpack.c.h.b16 %v775
    %v1965 = vunpack.c.l.b16 %v776
    %v1966 = vunpack.c.h.b16 %v776
    %v1967 = vunpack.c.l.b16 %v777
    %v1968 = vunpack.c.h.b16 %v777
    %v1969 = vunpack.c.l.b16 %v778
    %v1970 = vunpack.c.h.b16 %v778
    %v1971 = vunpack.c.l.b16 %v779
    %v1972 = vunpack.c.h.b16 %v779
    %v1973 = vunpack.c.l.b16 %v780
    %v1974 = vunpack.c.h.b16 %v780
    %v1975 = vunpack.c.l.b16 %v781
    %v1976 = vunpack.c.h.b16 %v781
    %v1977 = vunpack.c.l.b16 %v782
    %v1978 = vunpack.c.h.b16 %v782
    %v1979 = vunpack.c.l.b16 %v783
    %v1980 = vunpack.c.h.b16 %v783
    %v1981 = vunpack.c.l.b16 %v784
    %v1982 = vunpack.c.h.b16 %v784
    %v1983 = vunpack.c.l.b16 %v785
    %v1984 = vunpack.c.h.b16 %v785
    %v1985 = vunpack.c.l.b16 %v786
    %v1986 = vunpack.c.h.b16 %v786
    %v1987 = vunpack.c.l.b16 %v787
    %v1988 = vunpack.c.h.b16 %v787
    %v1989 = vunpack.c.l.b16 %v788
    %v1990 = vunpack.c.h.b16 %v788
    %v1991 = vunpack.c.l.b16 %v789
    %v1992 = vunpack.c.h.b16 %v789
    %v1993 = vunpack.c.l.b16 %v790
    %v1994 = vunpack.c.h.b16 %v790
    %v1995 = vunpack.c.l.b16 %v791
    %v1996 = vunpack.c.h.b16 %v791
    %v1997 = vunpack.c.l.b16 %v792
    %v1998 = vunpack.c.h.b16 %v792
    %v1999 = vunpack.c.l.b16 %v793
    %v2000 = vunpack.c.h.b16 %v793
    %v2001 = vunpack.c.l.b16 %v794
    %v2002 = vunpack.c.h.b16 %v794
    %v2003 = vunpack.c.l.b16 %v795
    %v2004 = vunpack.c.h.b16 %v795
    %v2005 = vunpack.c.l.b16 %v796
    %v2006 = vunpack.c.h.b16 %v796
    %v2007 = vunpack.c.l.b16 %v797
    %v2008 = vunpack.c.h.b16 %v797
    %v2009 = vunpack.c.l.b16 %v798
    %v2010 = vunpack.c.h.b16 %v798
    %v2011 = vunpack.c.l.b16 %v799
    %v2012 = vunpack.c.h.b16 %v799
    %v2013 = vunpack.c.l.b16 %v800
    %v2014 = vunpack.c.h.b16 %v800
    %v2015 = vunpack.c.l.b16 %v801
    %v2016 = vunpack.c.h.b16 %v801
    %v2017 = vunpack.c.l.b16 %v802
    %v2018 = vunpack.c.h.b16 %v802
    %v2019 = vunpack.c.l.b16 %v803
    %v2020 = vunpack.c.h.b16 %v803
    %v2021 = vunpack.c.l.b16 %v804
    %v2022 = vunpack.c.h.b16 %v804
    %v2023 = vunpack.c.l.b16 %v805
    %v2024 = vunpack.c.h.b16 %v805
    %v2025 = vunpack.c.l.b16 %v806
    %v2026 = vunpack.c.h.b16 %v806
    %v2027 = vunpack.c.l.b16 %v807
    %v2028 = vunpack.c.h.b16 %v807
    %v2029 = vunpack.c.l.b16 %v808
    %v2030 = vunpack.c.h.b16 %v808
    %v2031 = vunpack.c.l.b16 %v809
    %v2032 = vunpack.c.h.b16 %v809
    %v2033 = vunpack.c.l.b16 %v810
    %v2034 = vunpack.c.h.b16 %v810
    %v2035 = vunpack.c.l.b16 %v811
    %v2036 = vunpack.c.h.b16 %v811
    %v2037 = vunpack.c.l.b16 %v812
    %v2038 = vunpack.c.h.b16 %v812
    %v2039 = vunpack.c.l.b16 %v813
    %v2040 = vunpack.c.h.b16 %v813
    %v2041 = vunpack.c.l.b16 %v814
    %v2042 = vunpack.c.h.b16 %v814
    %v2043 = vunpack.c.l.b16 %v815
    %v2044 = vunpack.c.h.b16 %v815
    %v2045 = vunpack.c.l.b16 %v816
    %v2046 = vunpack.c.h.b16 %v816
    %v2047 = vunpack.c.l.b16 %v817
    %v2048 = vunpack.c.h.b16 %v817
    %v2049 = vunpack.c.l.b16 %v818
    %v2050 = vunpack.c.h.b16 %v818
    %v2051 = vunpack.c.l.b16 %v819
    %v2052 = vunpack.c.h.b16 %v819
    %v2053 = vunpack.c.l.b16 %v820
    %v2054 = vunpack.c.h.b16 %v820
    %v2055 = vunpack.c.l.b16 %v821
    %v2056 = vunpack.c.h.b16 %v821
    %v2057 = vunpack.c.l.b16 %v822
    %v2058 = vunpack.c.h.b16 %v822
    %v2059 = vunpack.c.l.b16 %v823
    %v2060 = vunpack.c.h.b16 %v823
    %v2061 = vunpack.c.l.b16 %v824
    %v2062 = vunpack.c.h.b16 %v824
    %v2063 = vunpack.c.l.b16 %v825
    %v2064 = vunpack.c.h.b16 %v825
    %v2065 = vunpack.c.l.b16 %v826
    %v2066 = vunpack.c.h.b16 %v826
    %v2067 = vunpack.c.l.b16 %v827
    %v2068 = vunpack.c.h.b16 %v827
    %v2069 = vunpack.c.l.b16 %v828
    %v2070 = vunpack.c.h.b16 %v828
    %v2071 = vunpack.c.l.b16 %v829
    %v2072 = vunpack.c.h.b16 %v829
    %v2073 = vunpack.c.l.b16 %v830
    %v2074 = vunpack.c.h.b16 %v830
    %v2075 = vunpack.c.l.b16 %v831
    %v2076 = vunpack.c.h.b16 %v831
    %v2077 = vunpack.c.l.b16 %v832
    %v2078 = vunpack.c.h.b16 %v832
    %v2079 = vunpack.c.l.b16 %v833
    %v2080 = vunpack.c.h.b16 %v833
    %v2081 = vunpack.c.l.b16 %v834
    %v2082 = vunpack.c.h.b16 %v834
    %v2083 = vunpack.c.l.b16 %v835
    %v2084 = vunpack.c.h.b16 %v835
    %v2085 = vunpack.c.l.b16 %v836
    %v2086 = vunpack.c.h.b16 %v836
    %v2087 = vunpack.c.l.b16 %v837
    %v2088 = vunpack.c.h.b16 %v837
    %v2089 = vunpack.c.l.b16 %v838
    %v2090 = vunpack.c.h.b16 %v838
    %v2091 = vunpack.c.l.b16 %v839
    %v2092 = vunpack.c.h.b16 %v839
    %v2093 = vunpack.c.l.b16 %v840
    %v2094 = vunpack.c.h.b16 %v840
    %v2095 = vunpack.c.l.b16 %v841
    %v2096 = vunpack.c.h.b16 %v841
    %v2097 = vunpack.c.l.b16 %v842
    %v2098 = vunpack.c.h.b16 %v842
    %v2099 = vunpack.c.l.b16 %v843
    %v2100 = vunpack.c.h.b16 %v843
    %v2101 = vunpack.c.l.b16 %v844
    %v2102 = vunpack.c.h.b16 %v844
    %v2103 = vunpack.c.l.b16 %v845
    %v2104 = vunpack.c.h.b16 %v845
    %v2105 = vunpack.c.l.b16 %v846
    %v2106 = vunpack.c.h.b16 %v846
    %v2107 = vunpack.c.l.b16 %v847
    %v2108 = vunpack.c.h.b16 %v847
    %v2109 = vunpack.c.l.b16 %v848
    %v2110 = vunpack.c.h.b16 %v848
    %v2111 = vunpack.c.l.b16 %v849
    %v2112 = vunpack.c.h.b16 %v849
    %v2113 = vunpack.c.l.b16 %v850
    %v2114 = vunpack.c.h.b16 %v850
    %v2115 = vunpack.c.l.b16 %v851
    %v2116 = vunpack.c.h.b16 %v851
    %v2117 = vunpack.c.l.b16 %v852
    %v2118 = vunpack.c.h.b16 %v852
    %v2119 = vunpack.c.l.b16 %v853
    %v2120 = vunpack.c.h.b16 %v853
    %v2121 = vunpack.c.l.b16 %v854
    %v2122 = vunpack.c.h.b16 %v854
    %v2123 = vunpack.c.l.b16 %v855
    %v2124 = vunpack.c.h.b16 %v855
    %v2125 = vunpack.c.l.b16 %v856
    %v2126 = vunpack.c.h.b16 %v856
    %v2127 = vunpack.c.l.b16 %v857
    %v2128 = vunpack.c.h.b16 %v857
    %v2129 = vunpack.c.l.b16 %v858
    %v2130 = vunpack.c.h.b16 %v858
    %v2131 = vunpack.c.l.b16 %v859
    %v2132 = vunpack.c.h.b16 %v859
    %v2133 = vunpack.c.l.b16 %v860
    %v2134 = vunpack.c.h.b16 %v860
    %v2135 = vunpack.c.l.b16 %v861
    %v2136 = vunpack.c.h.b16 %v861
    %v2137 = vunpack.c.l.b16 %v862
    %v2138 = vunpack.c.h.b16 %v862
    %v2139 = vunpack.c.l.b16 %v863
    %v2140 = vunpack.c.h.b16 %v863
    %v2141 = vunpack.c.l.b16 %v864
    %v2142 = vunpack.c.h.b16 %v864
    %v2143 = vunpack.c.l.b16 %v865
    %v2144 = vunpack.c.h.b16 %v865
    %v2145 = vunpack.c.l.b16 %v866
    %v2146 = vunpack.c.h.b16 %v866
    %v2147 = vunpack.c.l.b16 %v867
    %v2148 = vunpack.c.h.b16 %v867
    %v2149 = vunpack.c.l.b16 %v868
    %v2150 = vunpack.c.h.b16 %v868
    %v2151 = vunpack.c.l.b16 %v869
    %v2152 = vunpack.c.h.b16 %v869
    %v2153 = vunpack.c.l.b16 %v870
    %v2154 = vunpack.c.h.b16 %v870
    %v2155 = vunpack.c.l.b16 %v871
    %v2156 = vunpack.c.h.b16 %v871
    %v2157 = vunpack.c.l.b16 %v872
    %v2158 = vunpack.c.h.b16 %v872
    %v2159 = vunpack.c.l.b16 %v873
    %v2160 = vunpack.c.h.b16 %v873
    %v2161 = vunpack.c.l.b16 %v874
    %v2162 = vunpack.c.h.b16 %v874
    %v2163 = vunpack.c.l.b16 %v875
    %v2164 = vunpack.c.h.b16 %v875
    %v2165 = vunpack.c.l.b16 %v876
    %v2166 = vunpack.c.h.b16 %v876
    %v2167 = vunpack.c.l.b16 %v877
    %v2168 = vunpack.c.h.b16 %v877
    %v2169 = vunpack.c.l.b16 %v878
    %v2170 = vunpack.c.h.b16 %v878
    %v2171 = vunpack.c.l.b16 %v879
    %v2172 = vunpack.c.h.b16 %v879
    %v2173 = vunpack.c.l.b16 %v880
    %v2174 = vunpack.c.h.b16 %v880
    %v2175 = vunpack.c.l.b16 %v881
    %v2176 = vunpack.c.h.b16 %v881
    %v2177 = vunpack.c.l.b16 %v882
    %v2178 = vunpack.c.h.b16 %v882
    %v2179 = vunpack.c.l.b16 %v883
    %v2180 = vunpack.c.h.b16 %v883
    %v2181 = vunpack.c.l.b16 %v884
    %v2182 = vunpack.c.h.b16 %v884
    %v2183 = vunpack.c.l.b16 %v885
    %v2184 = vunpack.c.h.b16 %v885
    %v2185 = vunpack.c.l.b16 %v886
    %v2186 = vunpack.c.h.b16 %v886
    %v2187 = vunpack.c.l.b16 %v887
    %v2188 = vunpack.c.h.b16 %v887
    %v2189 = vunpack.c.l.b16 %v888
    %v2190 = vunpack.c.h.b16 %v888
    %v2191 = vunpack.c.l.b16 %v889
    %v2192 = vunpack.c.h.b16 %v889
    %v2193 = vunpack.c.l.b16 %v890
    %v2194 = vunpack.c.h.b16 %v890
    %v2195 = vunpack.c.l.b16 %v891
    %v2196 = vunpack.c.h.b16 %v891
    %v2197 = vunpack.c.l.b16 %v892
    %v2198 = vunpack.c.h.b16 %v892
    %v2199 = vunpack.c.l.b16 %v893
    %v2200 = vunpack.c.h.b16 %v893
    %v2201 = vunpack.c.l.b16 %v894
    %v2202 = vunpack.c.h.b16 %v894
    %v2203 = vunpack.c.l.b16 %v895
    %v2204 = vunpack.c.h.b16 %v895
    %v2205 = vunpack.c.l.b16 %v896
    %v2206 = vunpack.c.h.b16 %v896
    %v2207 = vunpack.c.l.b16 %v897
    %v2208 = vunpack.c.h.b16 %v897
    %v2209 = vunpack.c.l.b16 %v898
    %v2210 = vunpack.c.h.b16 %v898
    %v2211 = vunpack.c.l.b16 %v899
    %v2212 = vunpack.c.h.b16 %v899
    %v2213 = vunpack.c.l.b16 %v900
    %v2214 = vunpack.c.h.b16 %v900
    %v2215 = vunpack.c.l.b16 %v901
    %v2216 = vunpack.c.h.b16 %v901
    %v2217 = vunpack.c.l.b16 %v902
    %v2218 = vunpack.c.h.b16 %v902
    %v2219 = vunpack.c.l.b16 %v903
    %v2220 = vunpack.c.h.b16 %v903
    %v2221 = vunpack.c.l.b16 %v904
    %v2222 = vunpack.c.h.b16 %v904
    %v2223 = vunpack.c.l.b16 %v905
    %v2224 = vunpack.c.h.b16 %v905
    %v2225 = vunpack.c.l.b16 %v906
    %v2226 = vunpack.c.h.b16 %v906
    %v2227 = vunpack.c.l.b16 %v907
    %v2228 = vunpack.c.h.b16 %v907
    %v2229 = vunpack.c.l.b16 %v908
    %v2230 = vunpack.c.h.b16 %v908
    %v2231 = vunpack.c.l.b16 %v909
    %v2232 = vunpack.c.h.b16 %v909
    %v2233 = vunpack.c.l.b16 %v910
    %v2234 = vunpack.c.h.b16 %v910
    %v2235 = vunpack.c.l.b16 %v911
    %v2236 = vunpack.c.h.b16 %v911
    %v2237 = vunpack.c.l.b16 %v912
    %v2238 = vunpack.c.h.b16 %v912
    %v2239 = vunpack.c.l.b16 %v913
    %v2240 = vunpack.c.h.b16 %v913
    %v2241 = vunpack.c.l.b16 %v914
    %v2242 = vunpack.c.h.b16 %v914
    %v2243 = vunpack.c.l.b16 %v915
    %v2244 = vunpack.c.h.b16 %v915
    %v2245 = vunpack.c.l.b16 %v916
    %v2246 = vunpack.c.h.b16 %v916
    %v2247 = vunpack.c.l.b16 %v917
    %v2248 = vunpack.c.h.b16 %v917
    %v2249 = vunpack.c.l.b16 %v918
    %v2250 = vunpack.c.h.b16 %v918
    %v2251 = vunpack.c.l.b16 %v919
    %v2252 = vunpack.c.h.b16 %v919
    %v2253 = vunpack.c.l.b16 %v920
    %v2254 = vunpack.c.h.b16 %v920
    %v2255 = vunpack.c.l.b16 %v921
    %v2256 = vunpack.c.h.b16 %v921
    %v2257 = vunpack.c.l.b16 %v922
    %v2258 = vunpack.c.h.b16 %v922
    %v2259 = vunpack.c.l.b16 %v923
    %v2260 = vunpack.c.h.b16 %v923
    %v2261 = vunpack.c.l.b16 %v924
    %v2262 = vunpack.c.h.b16 %v924
    %v2263 = vunpack.c.l.b16 %v925
    %v2264 = vunpack.c.h.b16 %v925
    %v2265 = vunpack.c.l.b16 %v926
    %v2266 = vunpack.c.h.b16 %v926
    %v2267 = vunpack.c.l.b16 %v927
    %v2268 = vunpack.c.h.b16 %v927
    %v2269 = vunpack.c.l.b16 %v928
    %v2270 = vunpack.c.h.b16 %v928
    %v2271 = vunpack.c.l.b16 %v929
    %v2272 = vunpack.c.h.b16 %v929
    %v2273 = vunpack.c.l.b16 %v930
    %v2274 = vunpack.c.h.b16 %v930
    %v2275 = vunpack.c.l.b16 %v931
    %v2276 = vunpack.c.h.b16 %v931
    %v2277 = vunpack.c.l.b16 %v932
    %v2278 = vunpack.c.h.b16 %v932
    %v2279 = vunpack.c.l.b16 %v933
    %v2280 = vunpack.c.h.b16 %v933
    %v2281 = vunpack.c.l.b16 %v934
    %v2282 = vunpack.c.h.b16 %v934
    %v2283 = vunpack.c.l.b16 %v935
    %v2284 = vunpack.c.h.b16 %v935
    %v2285 = vunpack.c.l.b16 %v936
    %v2286 = vunpack.c.h.b16 %v936
    %v2287 = vunpack.c.l.b16 %v937
    %v2288 = vunpack.c.h.b16 %v937
    %v2289 = vunpack.c.l.b16 %v938
    %v2290 = vunpack.c.h.b16 %v938
    %v2291 = vunpack.c.l.b16 %v939
    %v2292 = vunpack.c.h.b16 %v939
    %v2293 = vunpack.c.l.b16 %v940
    %v2294 = vunpack.c.h.b16 %v940
    %v2295 = vunpack.c.l.b16 %v941
    %v2296 = vunpack.c.h.b16 %v941
    %v2297 = vunpack.c.l.b16 %v942
    %v2298 = vunpack.c.h.b16 %v942
    %v2299 = vunpack.c.l.b16 %v943
    %v2300 = vunpack.c.h.b16 %v943
    %v2301 = vunpack.c.l.b16 %v944
    %v2302 = vunpack.c.h.b16 %v944
    %v2303 = vunpack.c.l.b16 %v945
    %v2304 = vunpack.c.h.b16 %v945
    %v2305 = vunpack.c.l.b16 %v946
    %v2306 = vunpack.c.h.b16 %v946
    %v2307 = vunpack.c.l.b16 %v947
    %v2308 = vunpack.c.h.b16 %v947
    %v2309 = vunpack.c.l.b16 %v948
    %v2310 = vunpack.c.h.b16 %v948
    %v2311 = vunpack.c.l.b16 %v949
    %v2312 = vunpack.c.h.b16 %v949
    %v2313 = vunpack.c.l.b16 %v950
    %v2314 = vunpack.c.h.b16 %v950
    %v2315 = vunpack.c.l.b16 %v951
    %v2316 = vunpack.c.h.b16 %v951
    %v2317 = vunpack.c.l.b16 %v952
    %v2318 = vunpack.c.h.b16 %v952
    %v2319 = vunpack.c.l.b16 %v953
    %v2320 = vunpack.c.h.b16 %v953
    %v2321 = vunpack.c.l.b16 %v954
    %v2322 = vunpack.c.h.b16 %v954
    %v2323 = vunpack.c.l.b16 %v955
    %v2324 = vunpack.c.h.b16 %v955
    %v2325 = vunpack.c.l.b16 %v956
    %v2326 = vunpack.c.h.b16 %v956
    %v2327 = vunpack.c.l.b16 %v957
    %v2328 = vunpack.c.h.b16 %v957
    %v2329 = vunpack.c.l.b16 %v958
    %v2330 = vunpack.c.h.b16 %v958
    %v2331 = vunpack.c.l.b16 %v959
    %v2332 = vunpack.c.h.b16 %v959
    %v2333 = vunpack.c.l.b16 %v960
    %v2334 = vunpack.c.h.b16 %v960
    %v2335 = vunpack.c.l.b16 %v961
    %v2336 = vunpack.c.h.b16 %v961
    %v2337 = vunpack.c.l.b16 %v962
    %v2338 = vunpack.c.h.b16 %v962
    %v2339 = vunpack.c.l.b16 %v963
    %v2340 = vunpack.c.h.b16 %v963
    %v2341 = vunpack.c.l.b16 %v964
    %v2342 = vunpack.c.h.b16 %v964
    %v2343 = vunpack.c.l.b16 %v965
    %v2344 = vunpack.c.h.b16 %v965
    %v2345 = vunpack.c.l.b16 %v966
    %v2346 = vunpack.c.h.b16 %v966
    %v2347 = vunpack.c.l.b16 %v967
    %v2348 = vunpack.c.h.b16 %v967
    %v2349 = vunpack.c.l.b16 %v968
    %v2350 = vunpack.c.h.b16 %v968
    %v2351 = vunpack.c.l.b16 %v969
    %v2352 = vunpack.c.h.b16 %v969
    %v2353 = vunpack.c.l.b16 %v970
    %v2354 = vunpack.c.h.b16 %v970
    %v2355 = vunpack.c.l.b16 %v971
    %v2356 = vunpack.c.h.b16 %v971
    %v2357 = vunpack.c.l.b16 %v972
    %v2358 = vunpack.c.h.b16 %v972
    %v2359 = vunpack.c.l.b16 %v973
    %v2360 = vunpack.c.h.b16 %v973
    %v2361 = vunpack.c.l.b16 %v974
    %v2362 = vunpack.c.h.b16 %v974
    %v2363 = vunpack.c.l.b16 %v975
    %v2364 = vunpack.c.h.b16 %v975
    %v2365 = vunpack.c.l.b16 %v976
    %v2366 = vunpack.c.h.b16 %v976
    %v2367 = vunpack.c.l.b16 %v977
    %v2368 = vunpack.c.h.b16 %v977
    %v2369 = vunpack.c.l.b16 %v978
    %v2370 = vunpack.c.h.b16 %v978
    %v2371 = vunpack.c.l.b16 %v979
    %v2372 = vunpack.c.h.b16 %v979
    %v2373 = vunpack.c.l.b16 %v980
    %v2374 = vunpack.c.h.b16 %v980
    %v2375 = vunpack.c.l.b16 %v981
    %v2376 = vunpack.c.h.b16 %v981
    %v2377 = vunpack.c.l.b16 %v982
    %v2378 = vunpack.c.h.b16 %v982
    %v2379 = vunpack.c.l.b16 %v983
    %v2380 = vunpack.c.h.b16 %v983
    %v2381 = vunpack.c.l.b16 %v984
    %v2382 = vunpack.c.h.b16 %v984
    %v2383 = vunpack.c.l.b16 %v985
    %v2384 = vunpack.c.h.b16 %v985
    %v2385 = vunpack.c.l.b16 %v986
    %v2386 = vunpack.c.h.b16 %v986
    %v2387 = vunpack.c.l.b16 %v987
    %v2388 = vunpack.c.h.b16 %v987
    %v2389 = vunpack.c.l.b16 %v988
    %v2390 = vunpack.c.h.b16 %v988
    %v2391 = vunpack.c.l.b16 %v989
    %v2392 = vunpack.c.h.b16 %v989
    %v2393 = vunpack.c.l.b16 %v990
    %v2394 = vunpack.c.h.b16 %v990
    %v2395 = vunpack.c.l.b16 %v991
    %v2396 = vunpack.c.h.b16 %v991
    %v2397 = vunpack.c.l.b16 %v992
    %v2398 = vunpack.c.h.b16 %v992
    %v2399 = vunpack.c.l.b16 %v993
    %v2400 = vunpack.c.h.b16 %v993
    %v2401 = vunpack.c.l.b16 %v994
    %v2402 = vunpack.c.h.b16 %v994
    %v2403 = vunpack.c.l.b16 %v995
    %v2404 = vunpack.c.h.b16 %v995
    %v2405 = vunpack.c.l.b16 %v996
    %v2406 = vunpack.c.h.b16 %v996
    %v2407 = vunpack.c.l.b16 %v997
    %v2408 = vunpack.c.h.b16 %v997
    %v2409 = vunpack.c.l.b16 %v998
    %v2410 = vunpack.c.h.b16 %v998
    %v2411 = vunpack.c.l.b16 %v999
    %v2412 = vunpack.c.h.b16 %v999
    %v2413 = vunpack.c.l.b16 %v1000
    %v2414 = vunpack.c.h.b16 %v1000
    %v2415 = vunpack.c.l.b16 %v1001
    %v2416 = vunpack.c.h.b16 %v1001
    %v2417 = vunpack.c.l.b16 %v1002
    %v2418 = vunpack.c.h.b16 %v1002
    %v2419 = vunpack.c.l.b16 %v1003
    %v2420 = vunpack.c.h.b16 %v1003
    %v2421 = vunpack.c.l.b16 %v1004
    %v2422 = vunpack.c.h.b16 %v1004
    %v2423 = vunpack.c.l.b16 %v1005
    %v2424 = vunpack.c.h.b16 %v1005
    %v2425 = vunpack.c.l.b16 %v1006
    %v2426 = vunpack.c.h.b16 %v1006
    %v2427 = vunpack.c.l.b16 %v1007
    %v2428 = vunpack.c.h.b16 %v1007
    %v2429 = vunpack.c.l.b16 %v1008
    %v2430 = vunpack.c.h.b16 %v1008
    %v2431 = vunpack.c.l.b16 %v1009
    %v2432 = vunpack.c.h.b16 %v1009
    %v2433 = vunpack.c.l.b16 %v1010
    %v2434 = vunpack.c.h.b16 %v1010
    %v2435 = vunpack.c.l.b16 %v1011
    %v2436 = vunpack.c.h.b16 %v1011
    %v2437 = vunpack.c.l.b16 %v1012
    %v2438 = vunpack.c.h.b16 %v1012
    %v2439 = vunpack.c.l.b16 %v1013
    %v2440 = vunpack.c.h.b16 %v1013
    %v2441 = vunpack.c.l.b16 %v1014
    %v2442 = vunpack.c.h.b16 %v1014
    %v2443 = vunpack.c.l.b16 %v1015
    %v2444 = vunpack.c.h.b16 %v1015
    %v2445 = vunpack.c.l.b16 %v1016
    %v2446 = vunpack.c.h.b16 %v1016
    %v2447 = vunpack.c.l.b16 %v1017
    %v2448 = vunpack.c.h.b16 %v1017
    %v2449 = vunpack.c.l.b16 %v1018
    %v2450 = vunpack.c.h.b16 %v1018
    %v2451 = vunpack.c.l.b16 %v1019
    %v2452 = vunpack.c.h.b16 %v1019
    %v2453 = vunpack.c.l.b16 %v1020
    %v2454 = vunpack.c.h.b16 %v1020
    %v2455 = vunpack.c.l.b16 %v1021
    %v2456 = vunpack.c.h.b16 %v1021
    %v2457 = vunpack.c.l.b16 %v1022
    %v2458 = vunpack.c.h.b16 %v1022
    %v2459 = vunpack.c.l.b16 %v1023
    %v2460 = vunpack.c.h.b16 %v1023
    %v2461 = vunpack.c.l.b16 %v1024
    %v2462 = vunpack.c.h.b16 %v1024
    %v2463 = vunpack.c.l.b16 %v1025
    %v2464 = vunpack.c.h.b16 %v1025
    %v2465 = vunpack.c.l.b16 %v1026
    %v2466 = vunpack.c.h.b16 %v1026
    %v2467 = vunpack.c.l.b16 %v1027
    %v2468 = vunpack.c.h.b16 %v1027
    %v2469 = vunpack.c.l.b16 %v1028
    %v2470 = vunpack.c.h.b16 %v1028
    %v2471 = vunpack.c.l.b16 %v1029
    %v2472 = vunpack.c.h.b16 %v1029
    %v2473 = vunpack.c.l.b16 %v1030
    %v2474 = vunpack.c.h.b16 %v1030
    %v2475 = vunpack.c.l.b16 %v1031
    %v2476 = vunpack.c.h.b16 %v1031
    %v2477 = vunpack.c.l.b16 %v1032
    %v2478 = vunpack.c.h.b16 %v1032
    %v2479 = vunpack.c.l.b16 %v1033
    %v2480 = vunpack.c.h.b16 %v1033
    %v2481 = vunpack.c.l.b16 %v1034
    %v2482 = vunpack.c.h.b16 %v1034
    %v2483 = vunpack.c.l.b16 %v1035
    %v2484 = vunpack.c.h.b16 %v1035
    %v2485 = vunpack.c.l.b16 %v1036
    %v2486 = vunpack.c.h.b16 %v1036
    %v2487 = vunpack.c.l.b16 %v1037
    %v2488 = vunpack.c.h.b16 %v1037
    %v2489 = vunpack.c.l.b16 %v1038
    %v2490 = vunpack.c.h.b16 %v1038
    %v2491 = vunpack.c.l.b16 %v1039
    %v2492 = vunpack.c.h.b16 %v1039
    %v2493 = vunpack.c.l.b16 %v1040
    %v2494 = vunpack.c.h.b16 %v1040
    %v2495 = vunpack.c.l.b16 %v1041
    %v2496 = vunpack.c.h.b16 %v1041
    %v2497 = vunpack.c.l.b16 %v1042
    %v2498 = vunpack.c.h.b16 %v1042
    %v2499 = vunpack.c.l.b16 %v1043
    %v2500 = vunpack.c.h.b16 %v1043
    %v2501 = vunpack.c.l.b16 %v1044
    %v2502 = vunpack.c.h.b16 %v1044
    %v2503 = vunpack.c.l.b16 %v1045
    %v2504 = vunpack.c.h.b16 %v1045
    %v2505 = vunpack.c.l.b16 %v1046
    %v2506 = vunpack.c.h.b16 %v1046
    %v2507 = vunpack.c.l.b16 %v1047
    %v2508 = vunpack.c.h.b16 %v1047
    %v2509 = vunpack.c.l.b16 %v1048
    %v2510 = vunpack.c.h.b16 %v1048
    %v2511 = vunpack.c.l.b16 %v1049
    %v2512 = vunpack.c.h.b16 %v1049
    %v2513 = vunpack.c.l.b16 %v1050
    %v2514 = vunpack.c.h.b16 %v1050
    %v2515 = vunpack.c.l.b16 %v1051
    %v2516 = vunpack.c.h.b16 %v1051
    %v2517 = vunpack.c.l.b16 %v1052
    %v2518 = vunpack.c.h.b16 %v1052
    %v2519 = vunpack.c.l.b16 %v1053
    %v2520 = vunpack.c.h.b16 %v1053
    %v2521 = vunpack.c.l.b16 %v1054
    %v2522 = vunpack.c.h.b16 %v1054
    %v2523 = vunpack.c.l.b16 %v1055
    %v2524 = vunpack.c.h.b16 %v1055
    %v2525 = vunpack.c.l.b16 %v1056
    %v2526 = vunpack.c.h.b16 %v1056
    %v2527 = vunpack.c.l.b16 %v1057
    %v2528 = vunpack.c.h.b16 %v1057
    %v2529 = vunpack.c.l.b16 %v1058
    %v2530 = vunpack.c.h.b16 %v1058
    %v2531 = vunpack.c.l.b16 %v1059
    %v2532 = vunpack.c.h.b16 %v1059
    %v2533 = vunpack.c.l.b16 %v1060
    %v2534 = vunpack.c.h.b16 %v1060
    %v2535 = vunpack.c.l.b16 %v1061
    %v2536 = vunpack.c.h.b16 %v1061
    %v2537 = vunpack.c.l.b16 %v1062
    %v2538 = vunpack.c.h.b16 %v1062
    %v2539 = vunpack.c.l.b16 %v1063
    %v2540 = vunpack.c.h.b16 %v1063
    %v2541 = vunpack.c.l.b16 %v1064
    %v2542 = vunpack.c.h.b16 %v1064
    %v2543 = vunpack.c.l.b16 %v1065
    %v2544 = vunpack.c.h.b16 %v1065
    %v2545 = vunpack.c.l.b16 %v1066
    %v2546 = vunpack.c.h.b16 %v1066
    %v2547 = vunpack.c.l.b16 %v1067
    %v2548 = vunpack.c.h.b16 %v1067
    %v2549 = vunpack.c.l.b16 %v1068
    %v2550 = vunpack.c.h.b16 %v1068
    %v2551 = vunpack.c.l.b16 %v1069
    %v2552 = vunpack.c.h.b16 %v1069
    %v2553 = vunpack.c.l.b16 %v1070
    %v2554 = vunpack.c.h.b16 %v1070
    %v2555 = vunpack.c.l.b16 %v1071
    %v2556 = vunpack.c.h.b16 %v1071
    %v2557 = vunpack.c.l.b16 %v1072
    %v2558 = vunpack.c.h.b16 %v1072
    %v2559 = vunpack.c.l.b16 %v1073
    %v2560 = vunpack.c.h.b16 %v1073
    %v2561 = vunpack.c.l.b16 %v1074
    %v2562 = vunpack.c.h.b16 %v1074
    %v2563 = vunpack.c.l.b16 %v1075
    %v2564 = vunpack.c.h.b16 %v1075
    %v2565 = vunpack.c.l.b16 %v1076
    %v2566 = vunpack.c.h.b16 %v1076
    %v2567 = vunpack.c.l.b16 %v1077
    %v2568 = vunpack.c.h.b16 %v1077
    %v2569 = vunpack.c.l.b16 %v1078
    %v2570 = vunpack.c.h.b16 %v1078
    %v2571 = vunpack.c.l.b16 %v1079
    %v2572 = vunpack.c.h.b16 %v1079
    %v2573 = vunpack.c.l.b16 %v1080
    %v2574 = vunpack.c.h.b16 %v1080
    %v2575 = vunpack.c.l.b16 %v1081
    %v2576 = vunpack.c.h.b16 %v1081
    %v2577 = vunpack.c.l.b16 %v1082
    %v2578 = vunpack.c.h.b16 %v1082
    %v2579 = vunpack.c.l.b16 %v1083
    %v2580 = vunpack.c.h.b16 %v1083
    %v2581 = vunpack.c.l.b16 %v1084
    %v2582 = vunpack.c.h.b16 %v1084
    %v2583 = vunpack.c.l.b16 %v1085
    %v2584 = vunpack.c.h.b16 %v1085
    %v2585 = vunpack.c.l.b16 %v1086
    %v2586 = vunpack.c.h.b16 %v1086
    %v2587 = vunpack.c.l.b16 %v1087
    %v2588 = vunpack.c.h.b16 %v1087
    %v2589 = vunpack.c.l.b16 %v1088
    %v2590 = vunpack.c.h.b16 %v1088
    %v2591 = vunpack.c.l.b16 %v1089
    %v2592 = vunpack.c.h.b16 %v1089
    %v2593 = vunpack.c.l.b16 %v1090
    %v2594 = vunpack.c.h.b16 %v1090
    %v2595 = vunpack.c.l.b16 %v1091
    %v2596 = vunpack.c.h.b16 %v1091
    %v2597 = vunpack.c.l.b16 %v1092
    %v2598 = vunpack.c.h.b16 %v1092
    %v2599 = vunpack.c.l.b16 %v1093
    %v2600 = vunpack.c.h.b16 %v1093
    %v2601 = vunpack.c.l.b16 %v1094
    %v2602 = vunpack.c.h.b16 %v1094
    %v2603 = vunpack.c.l.b16 %v1095
    %v2604 = vunpack.c.h.b16 %v1095
    %v2605 = vunpack.c.l.b16 %v1096
    %v2606 = vunpack.c.h.b16 %v1096
    %v2607 = vunpack.c.l.b16 %v1097
    %v2608 = vunpack.c.h.b16 %v1097
    %v2609 = vunpack.c.l.b16 %v1098
    %v2610 = vunpack.c.h.b16 %v1098
    %v2611 = vunpack.c.l.b16 %v1099
    %v2612 = vunpack.c.h.b16 %v1099
    %v2613 = vunpack.c.l.b16 %v1100
    %v2614 = vunpack.c.h.b16 %v1100
    %v2615 = vunpack.c.l.b16 %v1101
    %v2616 = vunpack.c.h.b16 %v1101
    %v2617 = vunpack.c.l.b16 %v1102
    %v2618 = vunpack.c.h.b16 %v1102
    %v2619 = vunpack.c.l.b16 %v1103
    %v2620 = vunpack.c.h.b16 %v1103
    %v2621 = vunpack.c.l.b16 %v1104
    %v2622 = vunpack.c.h.b16 %v1104
    %v2623 = vunpack.c.l.b16 %v1105
    %v2624 = vunpack.c.h.b16 %v1105
    %v2625 = vunpack.c.l.b16 %v1106
    %v2626 = vunpack.c.h.b16 %v1106
    %v2627 = vunpack.c.l.b16 %v1107
    %v2628 = vunpack.c.h.b16 %v1107
    %v2629 = vunpack.c.l.b16 %v1108
    %v2630 = vunpack.c.h.b16 %v1108
    %v2631 = vunpack.c.l.b16 %v1109
    %v2632 = vunpack.c.h.b16 %v1109
    %v2633 = vunpack.c.l.b16 %v1110
    %v2634 = vunpack.c.h.b16 %v1110
    %v2635 = vunpack.c.l.b16 %v1111
    %v2636 = vunpack.c.h.b16 %v1111
    %v2637 = vunpack.c.l.b16 %v1112
    %v2638 = vunpack.c.h.b16 %v1112
    %v2639 = vunpack.c.l.b16 %v1113
    %v2640 = vunpack.c.h.b16 %v1113
    %v2641 = vunpack.c.l.b16 %v1114
    %v2642 = vunpack.c.h.b16 %v1114
    %v2643 = vunpack.c.l.b16 %v1115
    %v2644 = vunpack.c.h.b16 %v1115
    %v2645 = vunpack.c.l.b16 %v1116
    %v2646 = vunpack.c.h.b16 %v1116
    %v2647 = vunpack.c.l.b16 %v1117
    %v2648 = vunpack.c.h.b16 %v1117
    %v2649 = vunpack.c.l.b16 %v1118
    %v2650 = vunpack.c.h.b16 %v1118
    %v2651 = vunpack.c.l.b16 %v1119
    %v2652 = vunpack.c.h.b16 %v1119
    %v2653 = vunpack.c.l.b16 %v1120
    %v2654 = vunpack.c.h.b16 %v1120
    %v2655 = vunpack.c.l.b16 %v1121
    %v2656 = vunpack.c.h.b16 %v1121
    %v2657 = vunpack.c.l.b16 %v1122
    %v2658 = vunpack.c.h.b16 %v1122
    %v2659 = vunpack.c.l.b16 %v1123
    %v2660 = vunpack.c.h.b16 %v1123
    %v2661 = vunpack.c.l.b16 %v1124
    %v2662 = vunpack.c.h.b16 %v1124
    %v2663 = vunpack.c.l.b16 %v1125
    %v2664 = vunpack.c.h.b16 %v1125
    %v2665 = vunpack.c.l.b16 %v1126
    %v2666 = vunpack.c.h.b16 %v1126
    %v2667 = vunpack.c.l.b16 %v1127
    %v2668 = vunpack.c.h.b16 %v1127
    %v2669 = vunpack.c.l.b16 %v1128
    %v2670 = vunpack.c.h.b16 %v1128
    %v2671 = vunpack.c.l.b16 %v1129
    %v2672 = vunpack.c.h.b16 %v1129
    %v2673 = vunpack.c.l.b16 %v1130
    %v2674 = vunpack.c.h.b16 %v1130
    %v2675 = vunpack.c.l.b16 %v1131
    %v2676 = vunpack.c.h.b16 %v1131
    %v2677 = vunpack.c.l.b16 %v1132
    %v2678 = vunpack.c.h.b16 %v1132
    %v2679 = vunpack.c.l.b16 %v1133
    %v2680 = vunpack.c.h.b16 %v1133
    %v2681 = vunpack.c.l.b16 %v1134
    %v2682 = vunpack.c.h.b16 %v1134
    %v2683 = vunpack.c.l.b16 %v1135
    %v2684 = vunpack.c.h.b16 %v1135
    %v2685 = vunpack.c.l.b16 %v1136
    %v2686 = vunpack.c.h.b16 %v1136
    %v2687 = vunpack.c.l.b16 %v1137
    %v2688 = vunpack.c.h.b16 %v1137
    %v2689 = vunpack.c.l.b16 %v1138
    %v2690 = vunpack.c.h.b16 %v1138
    %v2691 = vunpack.c.l.b16 %v1139
    %v2692 = vunpack.c.h.b16 %v1139
    %v2693 = vunpack.c.l.b16 %v1140
    %v2694 = vunpack.c.h.b16 %v1140
    %v2695 = vunpack.c.l.b16 %v1141
    %v2696 = vunpack.c.h.b16 %v1141
    %v2697 = vunpack.c.l.b16 %v1142
    %v2698 = vunpack.c.h.b16 %v1142
    %v2699 = vunpack.c.l.b16 %v1143
    %v2700 = vunpack.c.h.b16 %v1143
    %v2701 = vunpack.c.l.b16 %v1144
    %v2702 = vunpack.c.h.b16 %v1144
    %v2703 = vunpack.c.l.b16 %v1145
    %v2704 = vunpack.c.h.b16 %v1145
    %v2705 = vunpack.c.l.b16 %v1146
    %v2706 = vunpack.c.h.b16 %v1146
    %v2707 = vunpack.c.l.b16 %v1147
    %v2708 = vunpack.c.h.b16 %v1147
    %v2709 = vunpack.c.l.b16 %v1148
    %v2710 = vunpack.c.h.b16 %v1148
    %v2711 = vunpack.c.l.b16 %v1149
    %v2712 = vunpack.c.h.b16 %v1149
    %v2713 = vunpack.c.l.b16 %v1150
    %v2714 = vunpack.c.h.b16 %v1150
    %v2715 = vunpack.c.l.b16 %v1151
    %v2716 = vunpack.c.h.b16 %v1151
    %v2717 = vunpack.c.l.b16 %v1152
    %v2718 = vunpack.c.h.b16 %v1152
    %v2719 = vunpack.c.l.b16 %v1153
    %v2720 = vunpack.c.h.b16 %v1153
    %v2721 = vunpack.c.l.b16 %v1154
    %v2722 = vunpack.c.h.b16 %v1154
    %v2723 = vunpack.c.l.b16 %v1155
    %v2724 = vunpack.c.h.b16 %v1155
    %v2725 = vunpack.c.l.b16 %v1156
    %v2726 = vunpack.c.h.b16 %v1156
    %v2727 = vunpack.c.l.b16 %v1157
    %v2728 = vunpack.c.h.b16 %v1157
    %v2729 = vunpack.c.l.b16 %v1158
    %v2730 = vunpack.c.h.b16 %v1158
    %v2731 = vunpack.c.l.b16 %v1159
    %v2732 = vunpack.c.h.b16 %v1159
    %v2733 = vunpack.c.l.b16 %v1160
    %v2734 = vunpack.c.h.b16 %v1160
    %v2735 = vunpack.c.l.b16 %v1161
    %v2736 = vunpack.c.h.b16 %v1161
    %v2737 = vunpack.c.l.b16 %v1162
    %v2738 = vunpack.c.h.b16 %v1162
    %v2739 = vunpack.c.l.b16 %v1163
    %v2740 = vunpack.c.h.b16 %v1163
    %v2741 = vunpack.c.l.b16 %v1164
    %v2742 = vunpack.c.h.b16 %v1164
    %v2743 = vunpack.c.l.b16 %v1165
    %v2744 = vunpack.c.h.b16 %v1165
    %v2745 = vunpack.c.l.b16 %v1166
    %v2746 = vunpack.c.h.b16 %v1166
    %v2747 = vunpack.c.l.b16 %v1167
    %v2748 = vunpack.c.h.b16 %v1167
    %v2749 = vunpack.c.l.b16 %v1168
    %v2750 = vunpack.c.h.b16 %v1168
    %v2751 = vunpack.c.l.b16 %v1169
    %v2752 = vunpack.c.h.b16 %v1169
    %v2753 = vunpack.c.l.b16 %v1170
    %v2754 = vunpack.c.h.b16 %v1170
    %v2755 = vunpack.c.l.b16 %v1171
    %v2756 = vunpack.c.h.b16 %v1171
    %v2757 = vunpack.c.l.b16 %v1172
    %v2758 = vunpack.c.h.b16 %v1172
    %v2759 = vunpack.c.l.b16 %v1173
    %v2760 = vunpack.c.h.b16 %v1173
    %v2761 = vunpack.c.l.b16 %v1174
    %v2762 = vunpack.c.h.b16 %v1174
    %v2763 = vunpack.c.l.b16 %v1175
    %v2764 = vunpack.c.h.b16 %v1175
    %v2765 = vunpack.c.l.b16 %v1176
    %v2766 = vunpack.c.h.b16 %v1176
    %v2767 = vunpack.c.l.b16 %v1177
    %v2768 = vunpack.c.h.b16 %v1177
    %v2769 = vunpack.c.l.b16 %v1178
    %v2770 = vunpack.c.h.b16 %v1178
    %v2771 = vunpack.c.l.b16 %v1179
    %v2772 = vunpack.c.h.b16 %v1179
    %v2773 = vunpack.c.l.b16 %v1180
    %v2774 = vunpack.c.h.b16 %v1180
    %v2775 = vunpack.c.l.b16 %v1181
    %v2776 = vunpack.c.h.b16 %v1181
    %v2777 = vunpack.c.l.b16 %v1182
    %v2778 = vunpack.c.h.b16 %v1182
    %v2779 = vunpack.c.l.b16 %v1183
    %v2780 = vunpack.c.h.b16 %v1183
    %v2781 = vunpack.c.l.b16 %v1184
    %v2782 = vunpack.c.h.b16 %v1184
    %v2783 = vunpack.c.l.b16 %v1185
    %v2784 = vunpack.c.h.b16 %v1185
    %v2785 = vunpack.c.l.b16 %v1186
    %v2786 = vunpack.c.h.b16 %v1186
    %v2787 = vunpack.c.l.b16 %v1187
    %v2788 = vunpack.c.h.b16 %v1187
    %v2789 = vunpack.c.l.b16 %v1188
    %v2790 = vunpack.c.h.b16 %v1188
    %v2791 = vunpack.c.l.b16 %v1189
    %v2792 = vunpack.c.h.b16 %v1189
    %v2793 = vunpack.c.l.b16 %v1190
    %v2794 = vunpack.c.h.b16 %v1190
    %v2795 = vunpack.c.l.b16 %v1191
    %v2796 = vunpack.c.h.b16 %v1191
    %v2797 = vunpack.c.l.b16 %v1192
    %v2798 = vunpack.c.h.b16 %v1192
    %v2799 = vunpack.c.l.b16 %v1193
    %v2800 = vunpack.c.h.b16 %v1193
    %v2801 = vunpack.c.l.b16 %v1194
    %v2802 = vunpack.c.h.b16 %v1194
    %v2803 = vunpack.c.l.b16 %v1195
    %v2804 = vunpack.c.h.b16 %v1195
    %v2805 = vunpack.c.l.b16 %v1196
    %v2806 = vunpack.c.h.b16 %v1196
    %v2807 = vunpack.c.l.b16 %v1197
    %v2808 = vunpack.c.h.b16 %v1197
    %v2809 = vunpack.c.l.b16 %v1198
    %v2810 = vunpack.c.h.b16 %v1198
    %v2811 = vunpack.c.l.b16 %v1199
    %v2812 = vunpack.c.h.b16 %v1199
    %v2813 = vunpack.c.l.b16 %v1200
    %v2814 = vunpack.c.h.b16 %v1200
    %v2815 = vunpack.c.l.b16 %v1201
    %v2816 = vunpack.c.h.b16 %v1201
    %v2817 = vunpack.c.l.b16 %v1202
    %v2818 = vunpack.c.h.b16 %v1202
    %v2819 = vunpack.c.l.b16 %v1203
    %v2820 = vunpack.c.h.b16 %v1203
    %v2821 = vunpack.c.l.b16 %v1204
    %v2822 = vunpack.c.h.b16 %v1204
    %v2823 = vunpack.c.l.b16 %v1205
    %v2824 = vunpack.c.h.b16 %v1205
    %v2825 = vunpack.c.l.b16 %v1206
    %v2826 = vunpack.c.h.b16 %v1206
    %v2827 = vunpack.c.l.b16 %v1207
    %v2828 = vunpack.c.h.b16 %v1207
    %v2829 = vunpack.c.l.b16 %v1208
    %v2830 = vunpack.c.h.b16 %v1208
    %v2831 = vunpack.c.l.b16 %v1209
    %v2832 = vunpack.c.h.b16 %v1209
    %v2833 = vunpack.c.l.b16 %v1210
    %v2834 = vunpack.c.h.b16 %v1210
    %v2835 = vunpack.c.l.b16 %v1211
    %v2836 = vunpack.c.h.b16 %v1211
    %v2837 = vunpack.c.l.b16 %v1212
    %v2838 = vunpack.c.h.b16 %v1212
    %v2839 = vunpack.c.l.b16 %v1213
    %v2840 = vunpack.c.h.b16 %v1213
    %v2841 = vunpack.c.l.b16 %v1214
    %v2842 = vunpack.c.h.b16 %v1214
    %v2843 = vunpack.c.l.b16 %v1215
    %v2844 = vunpack.c.h.b16 %v1215
    %v2845 = vunpack.c.l.b16 %v1216
    %v2846 = vunpack.c.h.b16 %v1216
    %v2847 = vunpack.c.l.b16 %v1217
    %v2848 = vunpack.c.h.b16 %v1217
    %v2849 = vunpack.c.l.b16 %v1218
    %v2850 = vunpack.c.h.b16 %v1218
    %v2851 = vunpack.c.l.b16 %v1219
    %v2852 = vunpack.c.h.b16 %v1219
    %v2853 = vunpack.c.l.b16 %v1220
    %v2854 = vunpack.c.h.b16 %v1220
    %v2855 = vunpack.c.l.b16 %v1221
    %v2856 = vunpack.c.h.b16 %v1221
    %v2857 = vunpack.c.l.b16 %v1222
    %v2858 = vunpack.c.h.b16 %v1222
    %v2859 = vunpack.c.l.b16 %v1223
    %v2860 = vunpack.c.h.b16 %v1223
    %v2861 = vunpack.c.l.b16 %v1224
    %v2862 = vunpack.c.h.b16 %v1224
    %v2863 = vunpack.c.l.b16 %v1225
    %v2864 = vunpack.c.h.b16 %v1225
    %v2865 = vunpack.c.l.b16 %v1226
    %v2866 = vunpack.c.h.b16 %v1226
    %v2867 = vunpack.c.l.b16 %v1227
    %v2868 = vunpack.c.h.b16 %v1227
    %v2869 = vunpack.c.l.b16 %v1228
    %v2870 = vunpack.c.h.b16 %v1228
    %v2871 = vunpack.c.l.b16 %v1229
    %v2872 = vunpack.c.h.b16 %v1229
    %v2873 = vunpack.c.l.b16 %v1230
    %v2874 = vunpack.c.h.b16 %v1230
    %v2875 = vunpack.c.l.b16 %v1231
    %v2876 = vunpack.c.h.b16 %v1231
    %v2877 = vunpack.c.l.b16 %v1232
    %v2878 = vunpack.c.h.b16 %v1232
    %v2879 = vunpack.c.l.b16 %v1233
    %v2880 = vunpack.c.h.b16 %v1233
    %v2881 = vunpack.c.l.b16 %v1234
    %v2882 = vunpack.c.h.b16 %v1234
    %v2883 = vunpack.c.l.b16 %v1235
    %v2884 = vunpack.c.h.b16 %v1235
    %v2885 = vunpack.c.l.b16 %v1236
    %v2886 = vunpack.c.h.b16 %v1236
    %v2887 = vunpack.c.l.b16 %v1237
    %v2888 = vunpack.c.h.b16 %v1237
    %v2889 = vunpack.c.l.b16 %v1238
    %v2890 = vunpack.c.h.b16 %v1238
    %v2891 = vunpack.c.l.b16 %v1239
    %v2892 = vunpack.c.h.b16 %v1239
    %v2893 = vunpack.c.l.b16 %v1240
    %v2894 = vunpack.c.h.b16 %v1240
    %v2895 = vunpack.c.l.b16 %v1241
    %v2896 = vunpack.c.h.b16 %v1241
    %v2897 = vunpack.c.l.b16 %v1242
    %v2898 = vunpack.c.h.b16 %v1242
    %v2899 = vunpack.c.l.b16 %v1243
    %v2900 = vunpack.c.h.b16 %v1243
    %v2901 = vunpack.c.l.b16 %v1244
    %v2902 = vunpack.c.h.b16 %v1244
    %v2903 = vunpack.c.l.b16 %v1245
    %v2904 = vunpack.c.h.b16 %v1245
    %v2905 = vunpack.c.l.b16 %v1246
    %v2906 = vunpack.c.h.b16 %v1246
    %v2907 = vunpack.c.l.b16 %v1247
    %v2908 = vunpack.c.h.b16 %v1247
    %v2909 = vunpack.c.l.b16 %v1248
    %v2910 = vunpack.c.h.b16 %v1248
    %v2911 = vunpack.c.l.b16 %v1249
    %v2912 = vunpack.c.h.b16 %v1249
    %v2913 = vunpack.c.l.b16 %v1250
    %v2914 = vunpack.c.h.b16 %v1250
    %v2915 = vunpack.c.l.b16 %v1251
    %v2916 = vunpack.c.h.b16 %v1251
    %v2917 = vunpack.c.l.b16 %v1252
    %v2918 = vunpack.c.h.b16 %v1252
    %v2919 = vunpack.c.l.b16 %v1253
    %v2920 = vunpack.c.h.b16 %v1253
    %v2921 = vunpack.c.l.b16 %v1254
    %v2922 = vunpack.c.h.b16 %v1254
    %v2923 = vunpack.c.l.b16 %v1255
    %v2924 = vunpack.c.h.b16 %v1255
    %v2925 = vunpack.c.l.b16 %v1256
    %v2926 = vunpack.c.h.b16 %v1256
    %v2927 = vunpack.c.l.b16 %v1257
    %v2928 = vunpack.c.h.b16 %v1257
    %v2929 = vpack.c.b16 %v1909, %v1905
    %v2930 = vpack.c.b16 %v1910, %v1906
    %v2931 = vpack.c.b16 %v1911, %v1907
    %v2932 = vpack.c.b16 %v1912, %v1908
    %v2933 = vpack.c.b16 %v1917, %v1913
    %v2934 = vpack.c.b16 %v1918, %v1914
    %v2935 = vpack.c.b16 %v1919, %v1915
    %v2936 = vpack.c.b16 %v1920, %v1916
    %v2937 = vpack.c.b16 %v1925, %v1921
    %v2938 = vpack.c.b16 %v1926, %v1922
    %v2939 = vpack.c.b16 %v1927, %v1923
    %v2940 = vpack.c.b16 %v1928, %v1924
    %v2941 = vpack.c.b16 %v1933, %v1929
    %v2942 = vpack.c.b16 %v1934, %v1930
    %v2943 = vpack.c.b16 %v1935, %v1931
    %v2944 = vpack.c.b16 %v1936, %v1932
    %v2945 = vpack.c.b16 %v1941, %v1937
    %v2946 = vpack.c.b16 %v1942, %v1938
    %v2947 = vpack.c.b16 %v1943, %v1939
    %v2948 = vpack.c.b16 %v1944, %v1940
    %v2949 = vpack.c.b16 %v1949, %v1945
    %v2950 = vpack.c.b16 %v1950, %v1946
    %v2951 = vpack.c.b16 %v1951, %v1947
    %v2952 = vpack.c.b16 %v1952, %v1948
    %v2953 = vpack.c.b16 %v1957, %v1953
    %v2954 = vpack.c.b16 %v1958, %v1954
    %v2955 = vpack.c.b16 %v1959, %v1955
    %v2956 = vpack.c.b16 %v1960, %v1956
    %v2957 = vpack.c.b16 %v1965, %v1961
    %v2958 = vpack.c.b16 %v1966, %v1962
    %v2959 = vpack.c.b16 %v1967, %v1963
    %v2960 = vpack.c.b16 %v1968, %v1964
    %v2961 = vpack.c.b16 %v1973, %v1969
    %v2962 = vpack.c.b16 %v1974, %v1970
    %v2963 = vpack.c.b16 %v1975, %v1971
    %v2964 = vpack.c.b16 %v1976, %v1972
    %v2965 = vpack.c.b16 %v1981, %v1977
    %v2966 = vpack.c.b16 %v1982, %v1978
    %v2967 = vpack.c.b16 %v1983, %v1979
    %v2968 = vpack.c.b16 %v1984, %v1980
    %v2969 = vpack.c.b16 %v1989, %v1985
    %v2970 = vpack.c.b16 %v1990, %v1986
    %v2971 = vpack.c.b16 %v1991, %v1987
    %v2972 = vpack.c.b16 %v1992, %v1988
    %v2973 = vpack.c.b16 %v1997, %v1993
    %v2974 = vpack.c.b16 %v1998, %v1994
    %v2975 = vpack.c.b16 %v1999, %v1995
    %v2976 = vpack.c.b16 %v2000, %v1996
    %v2977 = vpack.c.b16 %v2005, %v2001
    %v2978 = vpack.c.b16 %v2006, %v2002
    %v2979 = vpack.c.b16 %v2007, %v2003
    %v2980 = vpack.c.b16 %v2008, %v2004
    %v2981 = vpack.c.b16 %v2013, %v2009
    %v2982 = vpack.c.b16 %v2014, %v2010
    %v2983 = vpack.c.b16 %v2015, %v2011
    %v2984 = vpack.c.b16 %v2016, %v2012
    %v2985 = vpack.c.b16 %v2021, %v2017
    %v2986 = vpack.c.b16 %v2022, %v2018
    %v2987 = vpack.c.b16 %v2023, %v2019
    %v2988 = vpack.c.b16 %v2024, %v2020
    %v2989 = vpack.c.b16 %v2029, %v2025
    %v2990 = vpack.c.b16 %v2030, %v2026
    %v2991 = vpack.c.b16 %v2031, %v2027
    %v2992 = vpack.c.b16 %v2032, %v2028
    %v2993 = vpack.c.b16 %v2037, %v2033
    %v2994 = vpack.c.b16 %v2038, %v2034
    %v2995 = vpack.c.b16 %v2039, %v2035
    %v2996 = vpack.c.b16 %v2040, %v2036
    %v2997 = vpack.c.b16 %v2045, %v2041
    %v2998 = vpack.c.b16 %v2046, %v2042
    %v2999 = vpack.c.b16 %v2047, %v2043
    %v3000 = vpack.c.b16 %v2048, %v2044
    %v3001 = vpack.c.b16 %v2053, %v2049
    %v3002 = vpack.c.b16 %v2054, %v2050
    %v3003 = vpack.c.b16 %v2055, %v2051
    %v3004 = vpack.c.b16 %v2056, %v2052
    %v3005 = vpack.c.b16 %v2061, %v2057
    %v3006 = vpack.c.b16 %v2062, %v2058
    %v3007 = vpack.c.b16 %v2063, %v2059
    %v3008 = vpack.c.b16 %v2064, %v2060
    %v3009 = vpack.c.b16 %v2069, %v2065
    %v3010 = vpack.c.b16 %v2070, %v2066
    %v3011 = vpack.c.b16 %v2071, %v2067
    %v3012 = vpack.c.b16 %v2072, %v2068
    %v3013 = vpack.c.b16 %v2077, %v2073
    %v3014 = vpack.c.b16 %v2078, %v2074
    %v3015 = vpack.c.b16 %v2079, %v2075
    %v3016 = vpack.c.b16 %v2080, %v2076
    %v3017 = vpack.c.b16 %v2085, %v2081
    %v3018 = vpack.c.b16 %v2086, %v2082
    %v3019 = vpack.c.b16 %v2087, %v2083
    %v3020 = vpack.c.b16 %v2088, %v2084
    %v3021 = vpack.c.b16 %v2093, %v2089
    %v3022 = vpack.c.b16 %v2094, %v2090
    %v3023 = vpack.c.b16 %v2095, %v2091
    %v3024 = vpack.c.b16 %v2096, %v2092
    %v3025 = vpack.c.b16 %v2101, %v2097
    %v3026 = vpack.c.b16 %v2102, %v2098
    %v3027 = vpack.c.b16 %v2103, %v2099
    %v3028 = vpack.c.b16 %v2104, %v2100
    %v3029 = vpack.c.b16 %v2109, %v2105
    %v3030 = vpack.c.b16 %v2110, %v2106
    %v3031 = vpack.c.b16 %v2111, %v2107
    %v3032 = vpack.c.b16 %v2112, %v2108
    %v3033 = vpack.c.b16 %v2117, %v2113
    %v3034 = vpack.c.b16 %v2118, %v2114
    %v3035 = vpack.c.b16 %v2119, %v2115
    %v3036 = vpack.c.b16 %v2120, %v2116
    %v3037 = vpack.c.b16 %v2125, %v2121
    %v3038 = vpack.c.b16 %v2126, %v2122
    %v3039 = vpack.c.b16 %v2127, %v2123
    %v3040 = vpack.c.b16 %v2128, %v2124
    %v3041 = vpack.c.b16 %v2133, %v2129
    %v3042 = vpack.c.b16 %v2134, %v2130
    %v3043 = vpack.c.b16 %v2135, %v2131
    %v3044 = vpack.c.b16 %v2136, %v2132
    %v3045 = vpack.c.b16 %v2141, %v2137
    %v3046 = vpack.c.b16 %v2142, %v2138
    %v3047 = vpack.c.b16 %v2143, %v2139
    %v3048 = vpack.c.b16 %v2144, %v2140
    %v3049 = vpack.c.b16 %v2149, %v2145
    %v3050 = vpack.c.b16 %v2150, %v2146
    %v3051 = vpack.c.b16 %v2151, %v2147
    %v3052 = vpack.c.b16 %v2152, %v2148
    %v3053 = vpack.c.b16 %v2157, %v2153
    %v3054 = vpack.c.b16 %v2158, %v2154
    %v3055 = vpack.c.b16 %v2159, %v2155
    %v3056 = vpack.c.b16 %v2160, %v2156
    %v3057 = vpack.c.b16 %v2165, %v2161
    %v3058 = vpack.c.b16 %v2166, %v2162
    %v3059 = vpack.c.b16 %v2167, %v2163
    %v3060 = vpack.c.b16 %v2168, %v2164
    %v3061 = vpack.c.b16 %v2173, %v2169
    %v3062 = vpack.c.b16 %v2174, %v2170
    %v3063 = vpack.c.b16 %v2175, %v2171
    %v3064 = vpack.c.b16 %v2176, %v2172
    %v3065 = vpack.c.b16 %v2181, %v2177
    %v3066 = vpack.c.b16 %v2182, %v2178
    %v3067 = vpack.c.b16 %v2183, %v2179
    %v3068 = vpack.c.b16 %v2184, %v2180
    %v3069 = vpack.c.b16 %v2189, %v2185
    %v3070 = vpack.c.b16 %v2190, %v2186
    %v3071 = vpack.c.b16 %v2191, %v2187
    %v3072 = vpack.c.b16 %v2192, %v2188
    %v3073 = vpack.c.b16 %v2197, %v2193
    %v3074 = vpack.c.b16 %v2198, %v2194
    %v3075 = vpack.c.b16 %v2199, %v2195
    %v3076 = vpack.c.b16 %v2200, %v2196
    %v3077 = vpack.c.b16 %v2205, %v2201
    %v3078 = vpack.c.b16 %v2206, %v2202
    %v3079 = vpack.c.b16 %v2207, %v2203
    %v3080 = vpack.c.b16 %v2208, %v2204
    %v3081 = vpack.c.b16 %v2213, %v2209
    %v3082 = vpack.c.b16 %v2214, %v2210
    %v3083 = vpack.c.b16 %v2215, %v2211
    %v3084 = vpack.c.b16 %v2216, %v2212
    %v3085 = vpack.c.b16 %v2221, %v2217
    %v3086 = vpack.c.b16 %v2222, %v2218
    %v3087 = vpack.c.b16 %v2223, %v2219
    %v3088 = vpack.c.b16 %v2224, %v2220
    %v3089 = vpack.c.b16 %v2229, %v2225
    %v3090 = vpack.c.b16 %v2230, %v2226
    %v3091 = vpack.c.b16 %v2231, %v2227
    %v3092 = vpack.c.b16 %v2232, %v2228
    %v3093 = vpack.c.b16 %v2237, %v2233
    %v3094 = vpack.c.b16 %v2238, %v2234
    %v3095 = vpack.c.b16 %v2239, %v2235
    %v3096 = vpack.c.b16 %v2240, %v2236
    %v3097 = vpack.c.b16 %v2245, %v2241
    %v3098 = vpack.c.b16 %v2246, %v2242
    %v3099 = vpack.c.b16 %v2247, %v2243
    %v3100 = vpack.c.b16 %v2248, %v2244
    %v3101 = vpack.c.b16 %v2253, %v2249
    %v3102 = vpack.c.b16 %v2254, %v2250
    %v3103 = vpack.c.b16 %v2255, %v2251
    %v3104 = vpack.c.b16 %v2256, %v2252
    %v3105 = vpack.c.b16 %v2261, %v2257
    %v3106 = vpack.c.b16 %v2262, %v2258
    %v3107 = vpack.c.b16 %v2263, %v2259
    %v3108 = vpack.c.b16 %v2264, %v2260
    %v3109 = vpack.c.b16 %v2269, %v2265
    %v3110 = vpack.c.b16 %v2270, %v2266
    %v3111 = vpack.c.b16 %v2271, %v2267
    %v3112 = vpack.c.b16 %v2272, %v2268
    %v3113 = vpack.c.b16 %v2277, %v2273
    %v3114 = vpack.c.b16 %v2278, %v2274
    %v3115 = vpack.c.b16 %v2279, %v2275
    %v3116 = vpack.c.b16 %v2280, %v2276
    %v3117 = vpack.c.b16 %v2285, %v2281
    %v3118 = vpack.c.b16 %v2286, %v2282
    %v3119 = vpack.c.b16 %v2287, %v2283
    %v3120 = vpack.c.b16 %v2288, %v2284
    %v3121 = vpack.c.b16 %v2293, %v2289
    %v3122 = vpack.c.b16 %v2294, %v2290
    %v3123 = vpack.c.b16 %v2295, %v2291
    %v3124 = vpack.c.b16 %v2296, %v2292
    %v3125 = vpack.c.b16 %v2301, %v2297
    %v3126 = vpack.c.b16 %v2302, %v2298
    %v3127 = vpack.c.b16 %v2303, %v2299
    %v3128 = vpack.c.b16 %v2304, %v2300
    %v3129 = vpack.c.b16 %v2309, %v2305
    %v3130 = vpack.c.b16 %v2310, %v2306
    %v3131 = vpack.c.b16 %v2311, %v2307
    %v3132 = vpack.c.b16 %v2312, %v2308
    %v3133 = vpack.c.b16 %v2317, %v2313
    %v3134 = vpack.c.b16 %v2318, %v2314
    %v3135 = vpack.c.b16 %v2319, %v2315
    %v3136 = vpack.c.b16 %v2320, %v2316
    %v3137 = vpack.c.b16 %v2325, %v2321
    %v3138 = vpack.c.b16 %v2326, %v2322
    %v3139 = vpack.c.b16 %v2327, %v2323
    %v3140 = vpack.c.b16 %v2328, %v2324
    %v3141 = vpack.c.b16 %v2333, %v2329
    %v3142 = vpack.c.b16 %v2334, %v2330
    %v3143 = vpack.c.b16 %v2335, %v2331
    %v3144 = vpack.c.b16 %v2336, %v2332
    %v3145 = vpack.c.b16 %v2341, %v2337
    %v3146 = vpack.c.b16 %v2342, %v2338
    %v3147 = vpack.c.b16 %v2343, %v2339
    %v3148 = vpack.c.b16 %v2344, %v2340
    %v3149 = vpack.c.b16 %v2349, %v2345
    %v3150 = vpack.c.b16 %v2350, %v2346
    %v3151 = vpack.c.b16 %v2351, %v2347
    %v3152 = vpack.c.b16 %v2352, %v2348
    %v3153 = vpack.c.b16 %v2357, %v2353
    %v3154 = vpack.c.b16 %v2358, %v2354
    %v3155 = vpack.c.b16 %v2359, %v2355
    %v3156 = vpack.c.b16 %v2360, %v2356
    %v3157 = vpack.c.b16 %v2365, %v2361
    %v3158 = vpack.c.b16 %v2366, %v2362
    %v3159 = vpack.c.b16 %v2367, %v2363
    %v3160 = vpack.c.b16 %v2368, %v2364
    %v3161 = vpack.c.b16 %v2373, %v2369
    %v3162 = vpack.c.b16 %v2374, %v2370
    %v3163 = vpack.c.b16 %v2375, %v2371
    %v3164 = vpack.c.b16 %v2376, %v2372
    %v3165 = vpack.c.b16 %v2381, %v2377
    %v3166 = vpack.c.b16 %v2382, %v2378
    %v3167 = vpack.c.b16 %v2383, %v2379
    %v3168 = vpack.c.b16 %v2384, %v2380
    %v3169 = vpack.c.b16 %v2389, %v2385
    %v3170 = vpack.c.b16 %v2390, %v2386
    %v3171 = vpack.c.b16 %v2391, %v2387
    %v3172 = vpack.c.b16 %v2392, %v2388
    %v3173 = vpack.c.b16 %v2397, %v2393
    %v3174 = vpack.c.b16 %v2398, %v2394
    %v3175 = vpack.c.b16 %v2399, %v2395
    %v3176 = vpack.c.b16 %v2400, %v2396
    %v3177 = vpack.c.b16 %v2405, %v2401
    %v3178 = vpack.c.b16 %v2406, %v2402
    %v3179 = vpack.c.b16 %v2407, %v2403
    %v3180 = vpack.c.b16 %v2408, %v2404
    %v3181 = vpack.c.b16 %v2413, %v2409
    %v3182 = vpack.c.b16 %v2414, %v2410
    %v3183 = vpack.c.b16 %v2415, %v2411
    %v3184 = vpack.c.b16 %v2416, %v2412
    %v3185 = vpack.c.b16 %v2421, %v2417
    %v3186 = vpack.c.b16 %v2422, %v2418
    %v3187 = vpack.c.b16 %v2423, %v2419
    %v3188 = vpack.c.b16 %v2424, %v2420
    %v3189 = vpack.c.b16 %v2429, %v2425
    %v3190 = vpack.c.b16 %v2430, %v2426
    %v3191 = vpack.c.b16 %v2431, %v2427
    %v3192 = vpack.c.b16 %v2432, %v2428
    %v3193 = vpack.c.b16 %v2437, %v2433
    %v3194 = vpack.c.b16 %v2438, %v2434
    %v3195 = vpack.c.b16 %v2439, %v2435
    %v3196 = vpack.c.b16 %v2440, %v2436
    %v3197 = vpack.c.b16 %v2445, %v2441
    %v3198 = vpack.c.b16 %v2446, %v2442
    %v3199 = vpack.c.b16 %v2447, %v2443
    %v3200 = vpack.c.b16 %v2448, %v2444
    %v3201 = vpack.c.b16 %v2453, %v2449
    %v3202 = vpack.c.b16 %v2454, %v2450
    %v3203 = vpack.c.b16 %v2455, %v2451
    %v3204 = vpack.c.b16 %v2456, %v2452
    %v3205 = vpack.c.b16 %v2461, %v2457
    %v3206 = vpack.c.b16 %v2462, %v2458
    %v3207 = vpack.c.b16 %v2463, %v2459
    %v3208 = vpack.c.b16 %v2464, %v2460
    %v3209 = vpack.c.b16 %v2469, %v2465
    %v3210 = vpack.c.b16 %v2470, %v2466
    %v3211 = vpack.c.b16 %v2471, %v2467
    %v3212 = vpack.c.b16 %v2472, %v2468
    %v3213 = vpack.c.b16 %v2477, %v2473
    %v3214 = vpack.c.b16 %v2478, %v2474
    %v3215 = vpack.c.b16 %v2479, %v2475
    %v3216 = vpack.c.b16 %v2480, %v2476
    %v3217 = vpack.c.b16 %v2485, %v2481
    %v3218 = vpack.c.b16 %v2486, %v2482
    %v3219 = vpack.c.b16 %v2487, %v2483
    %v3220 = vpack.c.b16 %v2488, %v2484
    %v3221 = vpack.c.b16 %v2493, %v2489
    %v3222 = vpack.c.b16 %v2494, %v2490
    %v3223 = vpack.c.b16 %v2495, %v2491
    %v3224 = vpack.c.b16 %v2496, %v2492
    %v3225 = vpack.c.b16 %v2501, %v2497
    %v3226 = vpack.c.b16 %v2502, %v2498
    %v3227 = vpack.c.b16 %v2503, %v2499
    %v3228 = vpack.c.b16 %v2504, %v2500
    %v3229 = vpack.c.b16 %v2509, %v2505
    %v3230 = vpack.c.b16 %v2510, %v2506
    %v3231 = vpack.c.b16 %v2511, %v2507
    %v3232 = vpack.c.b16 %v2512, %v2508
    %v3233 = vpack.c.b16 %v2517, %v2513
    %v3234 = vpack.c.b16 %v2518, %v2514
    %v3235 = vpack.c.b16 %v2519, %v2515
    %v3236 = vpack.c.b16 %v2520, %v2516
    %v3237 = vpack.c.b16 %v2525, %v2521
    %v3238 = vpack.c.b16 %v2526, %v2522
    %v3239 = vpack.c.b16 %v2527, %v2523
    %v3240 = vpack.c.b16 %v2528, %v2524
    %v3241 = vpack.c.b16 %v2533, %v2529
    %v3242 = vpack.c.b16 %v2534, %v2530
    %v3243 = vpack.c.b16 %v2535, %v2531
    %v3244 = vpack.c.b16 %v2536, %v2532
    %v3245 = vpack.c.b16 %v2541, %v2537
    %v3246 = vpack.c.b16 %v2542, %v2538
    %v3247 = vpack.c.b16 %v2543, %v2539
    %v3248 = vpack.c.b16 %v2544, %v2540
    %v3249 = vpack.c.b16 %v2549, %v2545
    %v3250 = vpack.c.b16 %v2550, %v2546
    %v3251 = vpack.c.b16 %v2551, %v2547
    %v3252 = vpack.c.b16 %v2552, %v2548
    %v3253 = vpack.c.b16 %v2557, %v2553
    %v3254 = vpack.c.b16 %v2558, %v2554
    %v3255 = vpack.c.b16 %v2559, %v2555
    %v3256 = vpack.c.b16 %v2560, %v2556
    %v3257 = vpack.c.b16 %v2565, %v2561
    %v3258 = vpack.c.b16 %v2566, %v2562
    %v3259 = vpack.c.b16 %v2567, %v2563
    %v3260 = vpack.c.b16 %v2568, %v2564
    %v3261 = vpack.c.b16 %v2573, %v2569
    %v3262 = vpack.c.b16 %v2574, %v2570
    %v3263 = vpack.c.b16 %v2575, %v2571
    %v3264 = vpack.c.b16 %v2576, %v2572
    %v3265 = vpack.c.b16 %v2581, %v2577
    %v3266 = vpack.c.b16 %v2582, %v2578
    %v3267 = vpack.c.b16 %v2583, %v2579
    %v3268 = vpack.c.b16 %v2584, %v2580
    %v3269 = vpack.c.b16 %v2589, %v2585
    %v3270 = vpack.c.b16 %v2590, %v2586
    %v3271 = vpack.c.b16 %v2591, %v2587
    %v3272 = vpack.c.b16 %v2592, %v2588
    %v3273 = vpack.c.b16 %v2597, %v2593
    %v3274 = vpack.c.b16 %v2598, %v2594
    %v3275 = vpack.c.b16 %v2599, %v2595
    %v3276 = vpack.c.b16 %v2600, %v2596
    %v3277 = vpack.c.b16 %v2605, %v2601
    %v3278 = vpack.c.b16 %v2606, %v2602
    %v3279 = vpack.c.b16 %v2607, %v2603
    %v3280 = vpack.c.b16 %v2608, %v2604
    %v3281 = vpack.c.b16 %v2613, %v2609
    %v3282 = vpack.c.b16 %v2614, %v2610
    %v3283 = vpack.c.b16 %v2615, %v2611
    %v3284 = vpack.c.b16 %v2616, %v2612
    %v3285 = vpack.c.b16 %v2621, %v2617
    %v3286 = vpack.c.b16 %v2622, %v2618
    %v3287 = vpack.c.b16 %v2623, %v2619
    %v3288 = vpack.c.b16 %v2624, %v2620
    %v3289 = vpack.c.b16 %v2629, %v2625
    %v3290 = vpack.c.b16 %v2630, %v2626
    %v3291 = vpack.c.b16 %v2631, %v2627
    %v3292 = vpack.c.b16 %v2632, %v2628
    %v3293 = vpack.c.b16 %v2637, %v2633
    %v3294 = vpack.c.b16 %v2638, %v2634
    %v3295 = vpack.c.b16 %v2639, %v2635
    %v3296 = vpack.c.b16 %v2640, %v2636
    %v3297 = vpack.c.b16 %v2645, %v2641
    %v3298 = vpack.c.b16 %v2646, %v2642
    %v3299 = vpack.c.b16 %v2647, %v2643
    %v3300 = vpack.c.b16 %v2648, %v2644
    %v3301 = vpack.c.b16 %v2653, %v2649
    %v3302 = vpack.c.b16 %v2654, %v2650
    %v3303 = vpack.c.b16 %v2655, %v2651
    %v3304 = vpack.c.b16 %v2656, %v2652
    %v3305 = vpack.c.b16 %v2661, %v2657
    %v3306 = vpack.c.b16 %v2662, %v2658
    %v3307 = vpack.c.b16 %v2663, %v2659
    %v3308 = vpack.c.b16 %v2664, %v2660
    %v3309 = vpack.c.b16 %v2669, %v2665
    %v3310 = vpack.c.b16 %v2670, %v2666
    %v3311 = vpack.c.b16 %v2671, %v2667
    %v3312 = vpack.c.b16 %v2672, %v2668
    %v3313 = vpack.c.b16 %v2677, %v2673
    %v3314 = vpack.c.b16 %v2678, %v2674
    %v3315 = vpack.c.b16 %v2679, %v2675
    %v3316 = vpack.c.b16 %v2680, %v2676
    %v3317 = vpack.c.b16 %v2685, %v2681
    %v3318 = vpack.c.b16 %v2686, %v2682
    %v3319 = vpack.c.b16 %v2687, %v2683
    %v3320 = vpack.c.b16 %v2688, %v2684
    %v3321 = vpack.c.b16 %v2693, %v2689
    %v3322 = vpack.c.b16 %v2694, %v2690
    %v3323 = vpack.c.b16 %v2695, %v2691
    %v3324 = vpack.c.b16 %v2696, %v2692
    %v3325 = vpack.c.b16 %v2701, %v2697
    %v3326 = vpack.c.b16 %v2702, %v2698
    %v3327 = vpack.c.b16 %v2703, %v2699
    %v3328 = vpack.c.b16 %v2704, %v2700
    %v3329 = vpack.c.b16 %v2709, %v2705
    %v3330 = vpack.c.b16 %v2710, %v2706
    %v3331 = vpack.c.b16 %v2711, %v2707
    %v3332 = vpack.c.b16 %v2712, %v2708
    %v3333 = vpack.c.b16 %v2717, %v2713
    %v3334 = vpack.c.b16 %v2718, %v2714
    %v3335 = vpack.c.b16 %v2719, %v2715
    %v3336 = vpack.c.b16 %v2720, %v2716
    %v3337 = vpack.c.b16 %v2725, %v2721
    %v3338 = vpack.c.b16 %v2726, %v2722
    %v3339 = vpack.c.b16 %v2727, %v2723
    %v3340 = vpack.c.b16 %v2728, %v2724
    %v3341 = vpack.c.b16 %v2733, %v2729
    %v3342 = vpack.c.b16 %v2734, %v2730
    %v3343 = vpack.c.b16 %v2735, %v2731
    %v3344 = vpack.c.b16 %v2736, %v2732
    %v3345 = vpack.c.b16 %v2741, %v2737
    %v3346 = vpack.c.b16 %v2742, %v2738
    %v3347 = vpack.c.b16 %v2743, %v2739
    %v3348 = vpack.c.b16 %v2744, %v2740
    %v3349 = vpack.c.b16 %v2749, %v2745
    %v3350 = vpack.c.b16 %v2750, %v2746
    %v3351 = vpack.c.b16 %v2751, %v2747
    %v3352 = vpack.c.b16 %v2752, %v2748
    %v3353 = vpack.c.b16 %v2757, %v2753
    %v3354 = vpack.c.b16 %v2758, %v2754
    %v3355 = vpack.c.b16 %v2759, %v2755
    %v3356 = vpack.c.b16 %v2760, %v2756
    %v3357 = vpack.c.b16 %v2765, %v2761
    %v3358 = vpack.c.b16 %v2766, %v2762
    %v3359 = vpack.c.b16 %v2767, %v2763
    %v3360 = vpack.c.b16 %v2768, %v2764
    %v3361 = vpack.c.b16 %v2773, %v2769
    %v3362 = vpack.c.b16 %v2774, %v2770
    %v3363 = vpack.c.b16 %v2775, %v2771
    %v3364 = vpack.c.b16 %v2776, %v2772
    %v3365 = vpack.c.b16 %v2781, %v2777
    %v3366 = vpack.c.b16 %v2782, %v2778
    %v3367 = vpack.c.b16 %v2783, %v2779
    %v3368 = vpack.c.b16 %v2784, %v2780
    %v3369 = vpack.c.b16 %v2789, %v2785
    %v3370 = vpack.c.b16 %v2790, %v2786
    %v3371 = vpack.c.b16 %v2791, %v2787
    %v3372 = vpack.c.b16 %v2792, %v2788
    %v3373 = vpack.c.b16 %v2797, %v2793
    %v3374 = vpack.c.b16 %v2798, %v2794
    %v3375 = vpack.c.b16 %v2799, %v2795
    %v3376 = vpack.c.b16 %v2800, %v2796
    %v3377 = vpack.c.b16 %v2805, %v2801
    %v3378 = vpack.c.b16 %v2806, %v2802
    %v3379 = vpack.c.b16 %v2807, %v2803
    %v3380 = vpack.c.b16 %v2808, %v2804
    %v3381 = vpack.c.b16 %v2813, %v2809
    %v3382 = vpack.c.b16 %v2814, %v2810
    %v3383 = vpack.c.b16 %v2815, %v2811
    %v3384 = vpack.c.b16 %v2816, %v2812
    %v3385 = vpack.c.b16 %v2821, %v2817
    %v3386 = vpack.c.b16 %v2822, %v2818
    %v3387 = vpack.c.b16 %v2823, %v2819
    %v3388 = vpack.c.b16 %v2824, %v2820
    %v3389 = vpack.c.b16 %v2829, %v2825
    %v3390 = vpack.c.b16 %v2830, %v2826
    %v3391 = vpack.c.b16 %v2831, %v2827
    %v3392 = vpack.c.b16 %v2832, %v2828
    %v3393 = vpack.c.b16 %v2837, %v2833
    %v3394 = vpack.c.b16 %v2838, %v2834
    %v3395 = vpack.c.b16 %v2839, %v2835
    %v3396 = vpack.c.b16 %v2840, %v2836
    %v3397 = vpack.c.b16 %v2845, %v2841
    %v3398 = vpack.c.b16 %v2846, %v2842
    %v3399 = vpack.c.b16 %v2847, %v2843
    %v3400 = vpack.c.b16 %v2848, %v2844
    %v3401 = vpack.c.b16 %v2853, %v2849
    %v3402 = vpack.c.b16 %v2854, %v2850
    %v3403 = vpack.c.b16 %v2855, %v2851
    %v3404 = vpack.c.b16 %v2856, %v2852
    %v3405 = vpack.c.b16 %v2861, %v2857
    %v3406 = vpack.c.b16 %v2862, %v2858
    %v3407 = vpack.c.b16 %v2863, %v2859
    %v3408 = vpack.c.b16 %v2864, %v2860
    %v3409 = vpack.c.b16 %v2869, %v2865
    %v3410 = vpack.c.b16 %v2870, %v2866
    %v3411 = vpack.c.b16 %v2871, %v2867
    %v3412 = vpack.c.b16 %v2872, %v2868
    %v3413 = vpack.c.b16 %v2877, %v2873
    %v3414 = vpack.c.b16 %v2878, %v2874
    %v3415 = vpack.c.b16 %v2879, %v2875
    %v3416 = vpack.c.b16 %v2880, %v2876
    %v3417 = vpack.c.b16 %v2885, %v2881
    %v3418 = vpack.c.b16 %v2886, %v2882
    %v3419 = vpack.c.b16 %v2887, %v2883
    %v3420 = vpack.c.b16 %v2888, %v2884
    %v3421 = vpack.c.b16 %v2893, %v2889
    %v3422 = vpack.c.b16 %v2894, %v2890
    %v3423 = vpack.c.b16 %v2895, %v2891
    %v3424 = vpack.c.b16 %v2896, %v2892
    %v3425 = vpack.c.b16 %v2901, %v2897
    %v3426 = vpack.c.b16 %v2902, %v2898
    %v3427 = vpack.c.b16 %v2903, %v2899
    %v3428 = vpack.c.b16 %v2904, %v2900
    %v3429 = vpack.c.b16 %v2909, %v2905
    %v3430 = vpack.c.b16 %v2910, %v2906
    %v3431 = vpack.c.b16 %v2911, %v2907
    %v3432 = vpack.c.b16 %v2912, %v2908
    %v3433 = vpack.c.b16 %v2917, %v2913
    %v3434 = vpack.c.b16 %v2918, %v2914
    %v3435 = vpack.c.b16 %v2919, %v2915
    %v3436 = vpack.c.b16 %v2920, %v2916
    %v3437 = vpack.c.b16 %v2925, %v2921
    %v3438 = vpack.c.b16 %v2926, %v2922
    %v3439 = vpack.c.b16 %v2927, %v2923
    %v3440 = vpack.c.b16 %v2928, %v2924
    %3953 = vmatprep.subr.bf16.mxu0 %v2930
    %3954 = vmatpush1.bf16.msra.mxu0 %v2929
    %3955 = vmatprep.subr.bf16.mxu0 %v2934
    %3956 = vmatpush1.bf16.msra.mxu0 %v2933
    %3957 = vmatprep.subr.bf16.mxu0 %v2938
    %3958 = vmatpush1.bf16.msra.mxu0 %v2937
    %3959 = vmatprep.subr.bf16.mxu0 %v2942
    %3960 = vmatpush1.bf16.msra.mxu0 %v2941
    %3961 = vmatprep.subr.bf16.mxu0 %v2946
    %3962 = vmatpush1.bf16.msra.mxu0 %v2945
    %3963 = vmatprep.subr.bf16.mxu0 %v2950
    %3964 = vmatpush1.bf16.msra.mxu0 %v2949
    %3965 = vmatprep.subr.bf16.mxu0 %v2954
    %3966 = vmatpush1.bf16.msra.mxu0 %v2953
    %3967 = vmatprep.subr.bf16.mxu0 %v2958
    %3968 = vmatpush1.bf16.msra.mxu0 %v2957
    %3969 = vmatprep.subr.bf16.mxu0 %v2962
    %3970 = vmatpush1.bf16.msra.mxu0 %v2961
    %3971 = vmatprep.subr.bf16.mxu0 %v2966
    %3972 = vmatpush1.bf16.msra.mxu0 %v2965
    %3973 = vmatprep.subr.bf16.mxu0 %v2970
    %3974 = vmatpush1.bf16.msra.mxu0 %v2969
    %3975 = vmatprep.subr.bf16.mxu0 %v2974
    %3976 = vmatpush1.bf16.msra.mxu0 %v2973
    %3977 = vmatprep.subr.bf16.mxu0 %v2978
    %3978 = vmatpush1.bf16.msra.mxu0 %v2977
    %3979 = vmatprep.subr.bf16.mxu0 %v2982
    %3980 = vmatpush1.bf16.msra.mxu0 %v2981
    %3981 = vmatprep.subr.bf16.mxu0 %v2986
    %3982 = vmatpush1.bf16.msra.mxu0 %v2985
    %3983 = vmatprep.subr.bf16.mxu0 %v2990
    %3984 = vmatpush1.bf16.msra.mxu0 %v2989
    %3985 = vmatprep.mubr.bf16.mxu0 %v1362
    %3986 = vmatmul.mubr.bf16.gmra.mrb[0].mxu0 %v1361
    %v3987 = vpop.f32.mrb[0].mxu0
    %v3988 = vadd.f32 %v1263, %v3987
    %v3989 = vpop.f32.mrb[0].mxu0
    %v3990 = vadd.f32 %v1267, %v3989
    %v3991 = vpop.f32.mrb[0].mxu0
    %v3992 = vpop.f32.mrb[0].mxu0
    %3993 = vdwg.mxu0
    %3994 = vmatprep.subr.bf16.mxu0 %v2994
    %3995 = vmatpush1.bf16.msra.mxu0 %v2993
    %3996 = vmatprep.subr.bf16.mxu0 %v2998
    %3997 = vmatpush1.bf16.msra.mxu0 %v2997
    %3998 = vmatprep.subr.bf16.mxu0 %v3002
    %3999 = vmatpush1.bf16.msra.mxu0 %v3001
    %4000 = vmatprep.subr.bf16.mxu0 %v3006
    %4001 = vmatpush1.bf16.msra.mxu0 %v3005
    %4002 = vmatprep.subr.bf16.mxu0 %v3010
    %4003 = vmatpush1.bf16.msra.mxu0 %v3009
    %4004 = vmatprep.subr.bf16.mxu0 %v3014
    %4005 = vmatpush1.bf16.msra.mxu0 %v3013
    %4006 = vmatprep.subr.bf16.mxu0 %v3018
    %4007 = vmatpush1.bf16.msra.mxu0 %v3017
    %4008 = vmatprep.subr.bf16.mxu0 %v3022
    %4009 = vmatpush1.bf16.msra.mxu0 %v3021
    %4010 = vmatprep.subr.bf16.mxu0 %v3026
    %4011 = vmatpush1.bf16.msra.mxu0 %v3025
    %4012 = vmatprep.subr.bf16.mxu0 %v3030
    %4013 = vmatpush1.bf16.msra.mxu0 %v3029
    %4014 = vmatprep.subr.bf16.mxu0 %v3034
    %4015 = vmatpush1.bf16.msra.mxu0 %v3033
    %4016 = vmatprep.subr.bf16.mxu0 %v3038
    %4017 = vmatpush1.bf16.msra.mxu0 %v3037
    %4018 = vmatprep.subr.bf16.mxu0 %v3042
    %4019 = vmatpush1.bf16.msra.mxu0 %v3041
    %4020 = vmatprep.subr.bf16.mxu0 %v3046
    %4021 = vmatpush1.bf16.msra.mxu0 %v3045
    %4022 = vmatprep.subr.bf16.mxu0 %v3050
    %4023 = vmatpush1.bf16.msra.mxu0 %v3049
    %4024 = vmatprep.subr.bf16.mxu0 %v3054
    %4025 = vmatpush1.bf16.msra.mxu0 %v3053
    %4026 = vmatprep.mubr.bf16.mxu0 %v1364
    %4027 = vmatmul.mubr.bf16.gmra.mrb[0].mxu0 %v1363
    %v4028 = vpop.f32.mrb[0].mxu0
    %v4029 = vadd.f32 %v3988, %v4028
    %v4030 = vpop.f32.mrb[0].mxu0
    %v4031 = vadd.f32 %v3990, %v4030
    %v4032 = vpop.f32.mrb[0].mxu0
    %v4033 = vpop.f32.mrb[0].mxu0
    %4034 = vdwg.mxu0
    %4035 = vmatprep.subr.bf16.mxu0 %v3058
    %4036 = vmatpush1.bf16.msra.mxu0 %v3057
    %4037 = vmatprep.subr.bf16.mxu0 %v3062
    %4038 = vmatpush1.bf16.msra.mxu0 %v3061
    %4039 = vmatprep.subr.bf16.mxu0 %v3066
    %4040 = vmatpush1.bf16.msra.mxu0 %v3065
    %4041 = vmatprep.subr.bf16.mxu0 %v3070
    %4042 = vmatpush1.bf16.msra.mxu0 %v3069
    %4043 = vmatprep.subr.bf16.mxu0 %v3074
    %4044 = vmatpush1.bf16.msra.mxu0 %v3073
    %4045 = vmatprep.subr.bf16.mxu0 %v3078
    %4046 = vmatpush1.bf16.msra.mxu0 %v3077
    %4047 = vmatprep.subr.bf16.mxu0 %v3082
    %4048 = vmatpush1.bf16.msra.mxu0 %v3081
    %4049 = vmatprep.subr.bf16.mxu0 %v3086
    %4050 = vmatpush1.bf16.msra.mxu0 %v3085
    %4051 = vmatprep.subr.bf16.mxu0 %v3090
    %4052 = vmatpush1.bf16.msra.mxu0 %v3089
    %4053 = vmatprep.subr.bf16.mxu0 %v3094
    %4054 = vmatpush1.bf16.msra.mxu0 %v3093
    %4055 = vmatprep.subr.bf16.mxu0 %v3098
    %4056 = vmatpush1.bf16.msra.mxu0 %v3097
    %4057 = vmatprep.subr.bf16.mxu0 %v3102
    %4058 = vmatpush1.bf16.msra.mxu0 %v3101
    %4059 = vmatprep.subr.bf16.mxu0 %v3106
    %4060 = vmatpush1.bf16.msra.mxu0 %v3105
    %4061 = vmatprep.subr.bf16.mxu0 %v3110
    %4062 = vmatpush1.bf16.msra.mxu0 %v3109
    %4063 = vmatprep.subr.bf16.mxu0 %v3114
    %4064 = vmatpush1.bf16.msra.mxu0 %v3113
    %4065 = vmatprep.subr.bf16.mxu0 %v3118
    %4066 = vmatpush1.bf16.msra.mxu0 %v3117
    %4067 = vmatprep.mubr.bf16.mxu0 %v1366
    %4068 = vmatmul.mubr.bf16.gmra.mrb[0].mxu0 %v1365
    %v4069 = vpop.f32.mrb[0].mxu0
    %v4070 = vadd.f32 %v4029, %v4069
    %v4071 = vpop.f32.mrb[0].mxu0
    %v4072 = vadd.f32 %v4031, %v4071
    %v4073 = vpop.f32.mrb[0].mxu0
    %v4074 = vpop.f32.mrb[0].mxu0
    %4075 = vdwg.mxu0
    %4076 = vmatprep.subr.bf16.mxu0 %v3122
    %4077 = vmatpush1.bf16.msra.mxu0 %v3121
    %4078 = vmatprep.subr.bf16.mxu0 %v3126
    %4079 = vmatpush1.bf16.msra.mxu0 %v3125
    %4080 = vmatprep.subr.bf16.mxu0 %v3130
    %4081 = vmatpush1.bf16.msra.mxu0 %v3129
    %4082 = vmatprep.subr.bf16.mxu0 %v3134
    %4083 = vmatpush1.bf16.msra.mxu0 %v3133
    %4084 = vmatprep.subr.bf16.mxu0 %v3138
    %4085 = vmatpush1.bf16.msra.mxu0 %v3137
    %4086 = vmatprep.subr.bf16.mxu0 %v3142
    %4087 = vmatpush1.bf16.msra.mxu0 %v3141
    %4088 = vmatprep.subr.bf16.mxu0 %v3146
    %4089 = vmatpush1.bf16.msra.mxu0 %v3145
    %4090 = vmatprep.subr.bf16.mxu0 %v3150
    %4091 = vmatpush1.bf16.msra.mxu0 %v3149
    %4092 = vmatprep.subr.bf16.mxu0 %v3154
    %4093 = vmatpush1.bf16.msra.mxu0 %v3153
    %4094 = vmatprep.subr.bf16.mxu0 %v3158
    %4095 = vmatpush1.bf16.msra.mxu0 %v3157
    %4096 = vmatprep.subr.bf16.mxu0 %v3162
    %4097 = vmatpush1.bf16.msra.mxu0 %v3161
    %4098 = vmatprep.subr.bf16.mxu0 %v3166
    %4099 = vmatpush1.bf16.msra.mxu0 %v3165
    %4100 = vmatprep.subr.bf16.mxu0 %v3170
    %4101 = vmatpush1.bf16.msra.mxu0 %v3169
    %4102 = vmatprep.subr.bf16.mxu0 %v3174
    %4103 = vmatpush1.bf16.msra.mxu0 %v3173
    %4104 = vmatprep.subr.bf16.mxu0 %v3178
    %4105 = vmatpush1.bf16.msra.mxu0 %v3177
    %4106 = vmatprep.subr.bf16.mxu0 %v3182
    %4107 = vmatpush1.bf16.msra.mxu0 %v3181
    %4108 = vmatprep.mubr.bf16.mxu0 %v1368
    %4109 = vmatmul.mubr.bf16.gmra.mrb[0].mxu0 %v1367
    %v4110 = vpop.f32.mrb[0].mxu0
    %v4111 = vadd.f32 %v4070, %v4110
    %v4112 = vpop.f32.mrb[0].mxu0
    %v4113 = vadd.f32 %v4072, %v4112
    %v4114 = vpop.f32.mrb[0].mxu0
    %v4115 = vpop.f32.mrb[0].mxu0
    %4116 = vdwg.mxu0
    %4117 = vmatprep.subr.bf16.mxu0 %v3186
    %4118 = vmatpush1.bf16.msra.mxu0 %v3185
    %4119 = vmatprep.subr.bf16.mxu0 %v3190
    %4120 = vmatpush1.bf16.msra.mxu0 %v3189
    %4121 = vmatprep.subr.bf16.mxu0 %v3194
    %4122 = vmatpush1.bf16.msra.mxu0 %v3193
    %4123 = vmatprep.subr.bf16.mxu0 %v3198
    %4124 = vmatpush1.bf16.msra.mxu0 %v3197
    %4125 = vmatprep.subr.bf16.mxu0 %v3202
    %4126 = vmatpush1.bf16.msra.mxu0 %v3201
    %4127 = vmatprep.subr.bf16.mxu0 %v3206
    %4128 = vmatpush1.bf16.msra.mxu0 %v3205
    %4129 = vmatprep.subr.bf16.mxu0 %v3210
    %4130 = vmatpush1.bf16.msra.mxu0 %v3209
    %4131 = vmatprep.subr.bf16.mxu0 %v3214
    %4132 = vmatpush1.bf16.msra.mxu0 %v3213
    %4133 = vmatprep.subr.bf16.mxu0 %v3218
    %4134 = vmatpush1.bf16.msra.mxu0 %v3217
    %4135 = vmatprep.subr.bf16.mxu0 %v3222
    %4136 = vmatpush1.bf16.msra.mxu0 %v3221
    %4137 = vmatprep.subr.bf16.mxu0 %v3226
    %4138 = vmatpush1.bf16.msra.mxu0 %v3225
    %4139 = vmatprep.subr.bf16.mxu0 %v3230
    %4140 = vmatpush1.bf16.msra.mxu0 %v3229
    %4141 = vmatprep.subr.bf16.mxu0 %v3234
    %4142 = vmatpush1.bf16.msra.mxu0 %v3233
    %4143 = vmatprep.subr.bf16.mxu0 %v3238
    %4144 = vmatpush1.bf16.msra.mxu0 %v3237
    %4145 = vmatprep.subr.bf16.mxu0 %v3242
    %4146 = vmatpush1.bf16.msra.mxu0 %v3241
    %4147 = vmatprep.subr.bf16.mxu0 %v3246
    %4148 = vmatpush1.bf16.msra.mxu0 %v3245
    %4149 = vmatprep.mubr.bf16.mxu0 %v1370
    %4150 = vmatmul.mubr.bf16.gmra.mrb[0].mxu0 %v1369
    %v4151 = vpop.f32.mrb[0].mxu0
    %v4152 = vadd.f32 %v4111, %v4151
    %v4153 = vpop.f32.mrb[0].mxu0
    %v4154 = vadd.f32 %v4113, %v4153
    %v4155 = vpop.f32.mrb[0].mxu0
    %v4156 = vpop.f32.mrb[0].mxu0
    %4157 = vdwg.mxu0
    %4158 = vmatprep.subr.bf16.mxu0 %v3250
    %4159 = vmatpush1.bf16.msra.mxu0 %v3249
    %4160 = vmatprep.subr.bf16.mxu0 %v3254
    %4161 = vmatpush1.bf16.msra.mxu0 %v3253
    %4162 = vmatprep.subr.bf16.mxu0 %v3258
    %4163 = vmatpush1.bf16.msra.mxu0 %v3257
    %4164 = vmatprep.subr.bf16.mxu0 %v3262
    %4165 = vmatpush1.bf16.msra.mxu0 %v3261
    %4166 = vmatprep.subr.bf16.mxu0 %v3266
    %4167 = vmatpush1.bf16.msra.mxu0 %v3265
    %4168 = vmatprep.subr.bf16.mxu0 %v3270
    %4169 = vmatpush1.bf16.msra.mxu0 %v3269
    %4170 = vmatprep.subr.bf16.mxu0 %v3274
    %4171 = vmatpush1.bf16.msra.mxu0 %v3273
    %4172 = vmatprep.subr.bf16.mxu0 %v3278
    %4173 = vmatpush1.bf16.msra.mxu0 %v3277
    %4174 = vmatprep.subr.bf16.mxu0 %v3282
    %4175 = vmatpush1.bf16.msra.mxu0 %v3281
    %4176 = vmatprep.subr.bf16.mxu0 %v3286
    %4177 = vmatpush1.bf16.msra.mxu0 %v3285
    %4178 = vmatprep.subr.bf16.mxu0 %v3290
    %4179 = vmatpush1.bf16.msra.mxu0 %v3289
    %4180 = vmatprep.subr.bf16.mxu0 %v3294
    %4181 = vmatpush1.bf16.msra.mxu0 %v3293
    %4182 = vmatprep.subr.bf16.mxu0 %v3298
    %4183 = vmatpush1.bf16.msra.mxu0 %v3297
    %4184 = vmatprep.subr.bf16.mxu0 %v3302
    %4185 = vmatpush1.bf16.msra.mxu0 %v3301
    %4186 = vmatprep.subr.bf16.mxu0 %v3306
    %4187 = vmatpush1.bf16.msra.mxu0 %v3305
    %4188 = vmatprep.subr.bf16.mxu0 %v3310
    %4189 = vmatpush1.bf16.msra.mxu0 %v3309
    %4190 = vmatprep.mubr.bf16.mxu0 %v1372
    %4191 = vmatmul.mubr.bf16.gmra.mrb[0].mxu0 %v1371
    %v4192 = vpop.f32.mrb[0].mxu0
    %v4193 = vadd.f32 %v4152, %v4192
    %v4194 = vpop.f32.mrb[0].mxu0
    %v4195 = vadd.f32 %v4154, %v4194
    %v4196 = vpop.f32.mrb[0].mxu0
    %v4197 = vpop.f32.mrb[0].mxu0
    %4198 = vdwg.mxu0
    %4199 = vmatprep.subr.bf16.mxu0 %v3314
    %4200 = vmatpush1.bf16.msra.mxu0 %v3313
    %4201 = vmatprep.subr.bf16.mxu0 %v3318
    %4202 = vmatpush1.bf16.msra.mxu0 %v3317
    %4203 = vmatprep.subr.bf16.mxu0 %v3322
    %4204 = vmatpush1.bf16.msra.mxu0 %v3321
    %4205 = vmatprep.subr.bf16.mxu0 %v3326
    %4206 = vmatpush1.bf16.msra.mxu0 %v3325
    %4207 = vmatprep.subr.bf16.mxu0 %v3330
    %4208 = vmatpush1.bf16.msra.mxu0 %v3329
    %4209 = vmatprep.subr.bf16.mxu0 %v3334
    %4210 = vmatpush1.bf16.msra.mxu0 %v3333
    %4211 = vmatprep.subr.bf16.mxu0 %v3338
    %4212 = vmatpush1.bf16.msra.mxu0 %v3337
    %4213 = vmatprep.subr.bf16.mxu0 %v3342
    %4214 = vmatpush1.bf16.msra.mxu0 %v3341
    %4215 = vmatprep.subr.bf16.mxu0 %v3346
    %4216 = vmatpush1.bf16.msra.mxu0 %v3345
    %4217 = vmatprep.subr.bf16.mxu0 %v3350
    %4218 = vmatpush1.bf16.msra.mxu0 %v3349
    %4219 = vmatprep.subr.bf16.mxu0 %v3354
    %4220 = vmatpush1.bf16.msra.mxu0 %v3353
    %4221 = vmatprep.subr.bf16.mxu0 %v3358
    %4222 = vmatpush1.bf16.msra.mxu0 %v3357
    %4223 = vmatprep.subr.bf16.mxu0 %v3362
    %4224 = vmatpush1.bf16.msra.mxu0 %v3361
    %4225 = vmatprep.subr.bf16.mxu0 %v3366
    %4226 = vmatpush1.bf16.msra.mxu0 %v3365
    %4227 = vmatprep.subr.bf16.mxu0 %v3370
    %4228 = vmatpush1.bf16.msra.mxu0 %v3369
    %4229 = vmatprep.subr.bf16.mxu0 %v3374
    %4230 = vmatpush1.bf16.msra.mxu0 %v3373
    %4231 = vmatprep.mubr.bf16.mxu0 %v1374
    %4232 = vmatmul.mubr.bf16.gmra.mrb[0].mxu0 %v1373
    %v4233 = vpop.f32.mrb[0].mxu0
    %v4234 = vadd.f32 %v4193, %v4233
    %v4235 = vpop.f32.mrb[0].mxu0
    %v4236 = vadd.f32 %v4195, %v4235
    %v4237 = vpop.f32.mrb[0].mxu0
    %v4238 = vpop.f32.mrb[0].mxu0
    %4239 = vdwg.mxu0
    %4240 = vmatprep.subr.bf16.mxu0 %v3378
    %4241 = vmatpush1.bf16.msra.mxu0 %v3377
    %4242 = vmatprep.subr.bf16.mxu0 %v3382
    %4243 = vmatpush1.bf16.msra.mxu0 %v3381
    %4244 = vmatprep.subr.bf16.mxu0 %v3386
    %4245 = vmatpush1.bf16.msra.mxu0 %v3385
    %4246 = vmatprep.subr.bf16.mxu0 %v3390
    %4247 = vmatpush1.bf16.msra.mxu0 %v3389
    %4248 = vmatprep.subr.bf16.mxu0 %v3394
    %4249 = vmatpush1.bf16.msra.mxu0 %v3393
    %4250 = vmatprep.subr.bf16.mxu0 %v3398
    %4251 = vmatpush1.bf16.msra.mxu0 %v3397
    %4252 = vmatprep.subr.bf16.mxu0 %v3402
    %4253 = vmatpush1.bf16.msra.mxu0 %v3401
    %4254 = vmatprep.subr.bf16.mxu0 %v3406
    %4255 = vmatpush1.bf16.msra.mxu0 %v3405
    %4256 = vmatprep.subr.bf16.mxu0 %v3410
    %4257 = vmatpush1.bf16.msra.mxu0 %v3409
    %4258 = vmatprep.subr.bf16.mxu0 %v3414
    %4259 = vmatpush1.bf16.msra.mxu0 %v3413
    %4260 = vmatprep.subr.bf16.mxu0 %v3418
    %4261 = vmatpush1.bf16.msra.mxu0 %v3417
    %4262 = vmatprep.subr.bf16.mxu0 %v3422
    %4263 = vmatpush1.bf16.msra.mxu0 %v3421
    %4264 = vmatprep.subr.bf16.mxu0 %v3426
    %4265 = vmatpush1.bf16.msra.mxu0 %v3425
    %4266 = vmatprep.subr.bf16.mxu0 %v3430
    %4267 = vmatpush1.bf16.msra.mxu0 %v3429
    %4268 = vmatprep.subr.bf16.mxu0 %v3434
    %4269 = vmatpush1.bf16.msra.mxu0 %v3433
    %4270 = vmatprep.subr.bf16.mxu0 %v3438
    %4271 = vmatpush1.bf16.msra.mxu0 %v3437
    %4272 = vmatprep.mubr.bf16.mxu0 %v1376
    %4273 = vmatmul.mubr.bf16.gmra.mrb[0].mxu0 %v1375
    %v4274 = vpop.f32.mrb[0].mxu0
    %v4275 = vadd.f32 %v4234, %v4274
    %v4276 = vpop.f32.mrb[0].mxu0
    %v4277 = vadd.f32 %v4236, %v4276
    %v4278 = vpop.f32.mrb[0].mxu0
    %v4279 = vpop.f32.mrb[0].mxu0
    %4280 = vdwg.mxu0
    %4281 = vmatprep.subr.bf16.mxu0 %v2932
    %4282 = vmatpush1.bf16.msra.mxu0 %v2931
    %4283 = vmatprep.subr.bf16.mxu0 %v2936
    %4284 = vmatpush1.bf16.msra.mxu0 %v2935
    %4285 = vmatprep.subr.bf16.mxu0 %v2940
    %4286 = vmatpush1.bf16.msra.mxu0 %v2939
    %4287 = vmatprep.subr.bf16.mxu0 %v2944
    %4288 = vmatpush1.bf16.msra.mxu0 %v2943
    %4289 = vmatprep.subr.bf16.mxu0 %v2948
    %4290 = vmatpush1.bf16.msra.mxu0 %v2947
    %4291 = vmatprep.subr.bf16.mxu0 %v2952
    %4292 = vmatpush1.bf16.msra.mxu0 %v2951
    %4293 = vmatprep.subr.bf16.mxu0 %v2956
    %4294 = vmatpush1.bf16.msra.mxu0 %v2955
    %4295 = vmatprep.subr.bf16.mxu0 %v2960
    %4296 = vmatpush1.bf16.msra.mxu0 %v2959
    %4297 = vmatprep.subr.bf16.mxu0 %v2964
    %4298 = vmatpush1.bf16.msra.mxu0 %v2963
    %4299 = vmatprep.subr.bf16.mxu0 %v2968
    %4300 = vmatpush1.bf16.msra.mxu0 %v2967
    %4301 = vmatprep.subr.bf16.mxu0 %v2972
    %4302 = vmatpush1.bf16.msra.mxu0 %v2971
    %4303 = vmatprep.subr.bf16.mxu0 %v2976
    %4304 = vmatpush1.bf16.msra.mxu0 %v2975
    %4305 = vmatprep.subr.bf16.mxu0 %v2980
    %4306 = vmatpush1.bf16.msra.mxu0 %v2979
    %4307 = vmatprep.subr.bf16.mxu0 %v2984
    %4308 = vmatpush1.bf16.msra.mxu0 %v2983
    %4309 = vmatprep.subr.bf16.mxu0 %v2988
    %4310 = vmatpush1.bf16.msra.mxu0 %v2987
    %4311 = vmatprep.subr.bf16.mxu0 %v2992
    %4312 = vmatpush1.bf16.msra.mxu0 %v2991
    %4313 = vmatprep.mubr.bf16.mxu0 %v1362
    %4314 = vmatmul.mubr.bf16.gmra.mrb[0].mxu0 %v1361
    %v4315 = vpop.f32.mrb[0].mxu0
    %v4316 = vadd.f32 %v1271, %v4315
    %v4317 = vpop.f32.mrb[0].mxu0
    %v4318 = vadd.f32 %v1275, %v4317
    %v4319 = vpop.f32.mrb[0].mxu0
    %v4320 = vpop.f32.mrb[0].mxu0
    %4321 = vdwg.mxu0
    %4322 = vmatprep.subr.bf16.mxu0 %v2996
    %4323 = vmatpush1.bf16.msra.mxu0 %v2995
    %4324 = vmatprep.subr.bf16.mxu0 %v3000
    %4325 = vmatpush1.bf16.msra.mxu0 %v2999
    %4326 = vmatprep.subr.bf16.mxu0 %v3004
    %4327 = vmatpush1.bf16.msra.mxu0 %v3003
    %4328 = vmatprep.subr.bf16.mxu0 %v3008
    %4329 = vmatpush1.bf16.msra.mxu0 %v3007
    %4330 = vmatprep.subr.bf16.mxu0 %v3012
    %4331 = vmatpush1.bf16.msra.mxu0 %v3011
    %4332 = vmatprep.subr.bf16.mxu0 %v3016
    %4333 = vmatpush1.bf16.msra.mxu0 %v3015
    %4334 = vmatprep.subr.bf16.mxu0 %v3020
    %4335 = vmatpush1.bf16.msra.mxu0 %v3019
    %4336 = vmatprep.subr.bf16.mxu0 %v3024
    %4337 = vmatpush1.bf16.msra.mxu0 %v3023
    %4338 = vmatprep.subr.bf16.mxu0 %v3028
    %4339 = vmatpush1.bf16.msra.mxu0 %v3027
    %4340 = vmatprep.subr.bf16.mxu0 %v3032
    %4341 = vmatpush1.bf16.msra.mxu0 %v3031
    %4342 = vmatprep.subr.bf16.mxu0 %v3036
    %4343 = vmatpush1.bf16.msra.mxu0 %v3035
    %4344 = vmatprep.subr.bf16.mxu0 %v3040
    %4345 = vmatpush1.bf16.msra.mxu0 %v3039
    %4346 = vmatprep.subr.bf16.mxu0 %v3044
    %4347 = vmatpush1.bf16.msra.mxu0 %v3043
    %4348 = vmatprep.subr.bf16.mxu0 %v3048
    %4349 = vmatpush1.bf16.msra.mxu0 %v3047
    %4350 = vmatprep.subr.bf16.mxu0 %v3052
    %4351 = vmatpush1.bf16.msra.mxu0 %v3051
    %4352 = vmatprep.subr.bf16.mxu0 %v3056
    %4353 = vmatpush1.bf16.msra.mxu0 %v3055
    %4354 = vmatprep.mubr.bf16.mxu0 %v1364
    %4355 = vmatmul.mubr.bf16.gmra.mrb[0].mxu0 %v1363
    %v4356 = vpop.f32.mrb[0].mxu0
    %v4357 = vadd.f32 %v4316, %v4356
    %v4358 = vpop.f32.mrb[0].mxu0
    %v4359 = vadd.f32 %v4318, %v4358
    %v4360 = vpop.f32.mrb[0].mxu0
    %v4361 = vpop.f32.mrb[0].mxu0
    %4362 = vdwg.mxu0
    %4363 = vmatprep.subr.bf16.mxu0 %v3060
    %4364 = vmatpush1.bf16.msra.mxu0 %v3059
    %4365 = vmatprep.subr.bf16.mxu0 %v3064
    %4366 = vmatpush1.bf16.msra.mxu0 %v3063
    %4367 = vmatprep.subr.bf16.mxu0 %v3068
    %4368 = vmatpush1.bf16.msra.mxu0 %v3067
    %4369 = vmatprep.subr.bf16.mxu0 %v3072
    %4370 = vmatpush1.bf16.msra.mxu0 %v3071
    %4371 = vmatprep.subr.bf16.mxu0 %v3076
    %4372 = vmatpush1.bf16.msra.mxu0 %v3075
    %4373 = vmatprep.subr.bf16.mxu0 %v3080
    %4374 = vmatpush1.bf16.msra.mxu0 %v3079
    %4375 = vmatprep.subr.bf16.mxu0 %v3084
    %4376 = vmatpush1.bf16.msra.mxu0 %v3083
    %4377 = vmatprep.subr.bf16.mxu0 %v3088
    %4378 = vmatpush1.bf16.msra.mxu0 %v3087
    %4379 = vmatprep.subr.bf16.mxu0 %v3092
    %4380 = vmatpush1.bf16.msra.mxu0 %v3091
    %4381 = vmatprep.subr.bf16.mxu0 %v3096
    %4382 = vmatpush1.bf16.msra.mxu0 %v3095
    %4383 = vmatprep.subr.bf16.mxu0 %v3100
    %4384 = vmatpush1.bf16.msra.mxu0 %v3099
    %4385 = vmatprep.subr.bf16.mxu0 %v3104
    %4386 = vmatpush1.bf16.msra.mxu0 %v3103
    %4387 = vmatprep.subr.bf16.mxu0 %v3108
    %4388 = vmatpush1.bf16.msra.mxu0 %v3107
    %4389 = vmatprep.subr.bf16.mxu0 %v3112
    %4390 = vmatpush1.bf16.msra.mxu0 %v3111
    %4391 = vmatprep.subr.bf16.mxu0 %v3116
    %4392 = vmatpush1.bf16.msra.mxu0 %v3115
    %4393 = vmatprep.subr.bf16.mxu0 %v3120
    %4394 = vmatpush1.bf16.msra.mxu0 %v3119
    %4395 = vmatprep.mubr.bf16.mxu0 %v1366
    %4396 = vmatmul.mubr.bf16.gmra.mrb[0].mxu0 %v1365
    %v4397 = vpop.f32.mrb[0].mxu0
    %v4398 = vadd.f32 %v4357, %v4397
    %v4399 = vpop.f32.mrb[0].mxu0
    %v4400 = vadd.f32 %v4359, %v4399
    %v4401 = vpop.f32.mrb[0].mxu0
    %v4402 = vpop.f32.mrb[0].mxu0
    %4403 = vdwg.mxu0
    %4404 = vmatprep.subr.bf16.mxu0 %v3124
    %4405 = vmatpush1.bf16.msra.mxu0 %v3123
    %4406 = vmatprep.subr.bf16.mxu0 %v3128
    %4407 = vmatpush1.bf16.msra.mxu0 %v3127
    %4408 = vmatprep.subr.bf16.mxu0 %v3132
    %4409 = vmatpush1.bf16.msra.mxu0 %v3131
    %4410 = vmatprep.subr.bf16.mxu0 %v3136
    %4411 = vmatpush1.bf16.msra.mxu0 %v3135
    %4412 = vmatprep.subr.bf16.mxu0 %v3140
    %4413 = vmatpush1.bf16.msra.mxu0 %v3139
    %4414 = vmatprep.subr.bf16.mxu0 %v3144
    %4415 = vmatpush1.bf16.msra.mxu0 %v3143
    %4416 = vmatprep.subr.bf16.mxu0 %v3148
    %4417 = vmatpush1.bf16.msra.mxu0 %v3147
    %4418 = vmatprep.subr.bf16.mxu0 %v3152
    %4419 = vmatpush1.bf16.msra.mxu0 %v3151
    %4420 = vmatprep.subr.bf16.mxu0 %v3156
    %4421 = vmatpush1.bf16.msra.mxu0 %v3155
    %4422 = vmatprep.subr.bf16.mxu0 %v3160
    %4423 = vmatpush1.bf16.msra.mxu0 %v3159
    %4424 = vmatprep.subr.bf16.mxu0 %v3164
    %4425 = vmatpush1.bf16.msra.mxu0 %v3163
    %4426 = vmatprep.subr.bf16.mxu0 %v3168
    %4427 = vmatpush1.bf16.msra.mxu0 %v3167
    %4428 = vmatprep.subr.bf16.mxu0 %v3172
    %4429 = vmatpush1.bf16.msra.mxu0 %v3171
    %4430 = vmatprep.subr.bf16.mxu0 %v3176
    %4431 = vmatpush1.bf16.msra.mxu0 %v3175
    %4432 = vmatprep.subr.bf16.mxu0 %v3180
    %4433 = vmatpush1.bf16.msra.mxu0 %v3179
    %4434 = vmatprep.subr.bf16.mxu0 %v3184
    %4435 = vmatpush1.bf16.msra.mxu0 %v3183
    %4436 = vmatprep.mubr.bf16.mxu0 %v1368
    %4437 = vmatmul.mubr.bf16.gmra.mrb[0].mxu0 %v1367
    %v4438 = vpop.f32.mrb[0].mxu0
    %v4439 = vadd.f32 %v4398, %v4438
    %v4440 = vpop.f32.mrb[0].mxu0
    %v4441 = vadd.f32 %v4400, %v4440
    %v4442 = vpop.f32.mrb[0].mxu0
    %v4443 = vpop.f32.mrb[0].mxu0
    %4444 = vdwg.mxu0
    %4445 = vmatprep.subr.bf16.mxu0 %v3188
    %4446 = vmatpush1.bf16.msra.mxu0 %v3187
    %4447 = vmatprep.subr.bf16.mxu0 %v3192
    %4448 = vmatpush1.bf16.msra.mxu0 %v3191
    %4449 = vmatprep.subr.bf16.mxu0 %v3196
    %4450 = vmatpush1.bf16.msra.mxu0 %v3195
    %4451 = vmatprep.subr.bf16.mxu0 %v3200
    %4452 = vmatpush1.bf16.msra.mxu0 %v3199
    %4453 = vmatprep.subr.bf16.mxu0 %v3204
    %4454 = vmatpush1.bf16.msra.mxu0 %v3203
    %4455 = vmatprep.subr.bf16.mxu0 %v3208
    %4456 = vmatpush1.bf16.msra.mxu0 %v3207
    %4457 = vmatprep.subr.bf16.mxu0 %v3212
    %4458 = vmatpush1.bf16.msra.mxu0 %v3211
    %4459 = vmatprep.subr.bf16.mxu0 %v3216
    %4460 = vmatpush1.bf16.msra.mxu0 %v3215
    %4461 = vmatprep.subr.bf16.mxu0 %v3220
    %4462 = vmatpush1.bf16.msra.mxu0 %v3219
    %4463 = vmatprep.subr.bf16.mxu0 %v3224
    %4464 = vmatpush1.bf16.msra.mxu0 %v3223
    %4465 = vmatprep.subr.bf16.mxu0 %v3228
    %4466 = vmatpush1.bf16.msra.mxu0 %v3227
    %4467 = vmatprep.subr.bf16.mxu0 %v3232
    %4468 = vmatpush1.bf16.msra.mxu0 %v3231
    %4469 = vmatprep.subr.bf16.mxu0 %v3236
    %4470 = vmatpush1.bf16.msra.mxu0 %v3235
    %4471 = vmatprep.subr.bf16.mxu0 %v3240
    %4472 = vmatpush1.bf16.msra.mxu0 %v3239
    %4473 = vmatprep.subr.bf16.mxu0 %v3244
    %4474 = vmatpush1.bf16.msra.mxu0 %v3243
    %4475 = vmatprep.subr.bf16.mxu0 %v3248
    %4476 = vmatpush1.bf16.msra.mxu0 %v3247
    %4477 = vmatprep.mubr.bf16.mxu0 %v1370
    %4478 = vmatmul.mubr.bf16.gmra.mrb[0].mxu0 %v1369
    %v4479 = vpop.f32.mrb[0].mxu0
    %v4480 = vadd.f32 %v4439, %v4479
    %v4481 = vpop.f32.mrb[0].mxu0
    %v4482 = vadd.f32 %v4441, %v4481
    %v4483 = vpop.f32.mrb[0].mxu0
    %v4484 = vpop.f32.mrb[0].mxu0
    %4485 = vdwg.mxu0
    %4486 = vmatprep.subr.bf16.mxu0 %v3252
    %4487 = vmatpush1.bf16.msra.mxu0 %v3251
    %4488 = vmatprep.subr.bf16.mxu0 %v3256
    %4489 = vmatpush1.bf16.msra.mxu0 %v3255
    %4490 = vmatprep.subr.bf16.mxu0 %v3260
    %4491 = vmatpush1.bf16.msra.mxu0 %v3259
    %4492 = vmatprep.subr.bf16.mxu0 %v3264
    %4493 = vmatpush1.bf16.msra.mxu0 %v3263
    %4494 = vmatprep.subr.bf16.mxu0 %v3268
    %4495 = vmatpush1.bf16.msra.mxu0 %v3267
    %4496 = vmatprep.subr.bf16.mxu0 %v3272
    %4497 = vmatpush1.bf16.msra.mxu0 %v3271
    %4498 = vmatprep.subr.bf16.mxu0 %v3276
    %4499 = vmatpush1.bf16.msra.mxu0 %v3275
    %4500 = vmatprep.subr.bf16.mxu0 %v3280
    %4501 = vmatpush1.bf16.msra.mxu0 %v3279
    %4502 = vmatprep.subr.bf16.mxu0 %v3284
    %4503 = vmatpush1.bf16.msra.mxu0 %v3283
    %4504 = vmatprep.subr.bf16.mxu0 %v3288
    %4505 = vmatpush1.bf16.msra.mxu0 %v3287
    %4506 = vmatprep.subr.bf16.mxu0 %v3292
    %4507 = vmatpush1.bf16.msra.mxu0 %v3291
    %4508 = vmatprep.subr.bf16.mxu0 %v3296
    %4509 = vmatpush1.bf16.msra.mxu0 %v3295
    %4510 = vmatprep.subr.bf16.mxu0 %v3300
    %4511 = vmatpush1.bf16.msra.mxu0 %v3299
    %4512 = vmatprep.subr.bf16.mxu0 %v3304
    %4513 = vmatpush1.bf16.msra.mxu0 %v3303
    %4514 = vmatprep.subr.bf16.mxu0 %v3308
    %4515 = vmatpush1.bf16.msra.mxu0 %v3307
    %4516 = vmatprep.subr.bf16.mxu0 %v3312
    %4517 = vmatpush1.bf16.msra.mxu0 %v3311
    %4518 = vmatprep.mubr.bf16.mxu0 %v1372
    %4519 = vmatmul.mubr.bf16.gmra.mrb[0].mxu0 %v1371
    %v4520 = vpop.f32.mrb[0].mxu0
    %v4521 = vadd.f32 %v4480, %v4520
    %v4522 = vpop.f32.mrb[0].mxu0
    %v4523 = vadd.f32 %v4482, %v4522
    %v4524 = vpop.f32.mrb[0].mxu0
    %v4525 = vpop.f32.mrb[0].mxu0
    %4526 = vdwg.mxu0
    %4527 = vmatprep.subr.bf16.mxu0 %v3316
    %4528 = vmatpush1.bf16.msra.mxu0 %v3315
    %4529 = vmatprep.subr.bf16.mxu0 %v3320
    %4530 = vmatpush1.bf16.msra.mxu0 %v3319
    %4531 = vmatprep.subr.bf16.mxu0 %v3324
    %4532 = vmatpush1.bf16.msra.mxu0 %v3323
    %4533 = vmatprep.subr.bf16.mxu0 %v3328
    %4534 = vmatpush1.bf16.msra.mxu0 %v3327
    %4535 = vmatprep.subr.bf16.mxu0 %v3332
    %4536 = vmatpush1.bf16.msra.mxu0 %v3331
    %4537 = vmatprep.subr.bf16.mxu0 %v3336
    %4538 = vmatpush1.bf16.msra.mxu0 %v3335
    %4539 = vmatprep.subr.bf16.mxu0 %v3340
    %4540 = vmatpush1.bf16.msra.mxu0 %v3339
    %4541 = vmatprep.subr.bf16.mxu0 %v3344
    %4542 = vmatpush1.bf16.msra.mxu0 %v3343
    %4543 = vmatprep.subr.bf16.mxu0 %v3348
    %4544 = vmatpush1.bf16.msra.mxu0 %v3347
    %4545 = vmatprep.subr.bf16.mxu0 %v3352
    %4546 = vmatpush1.bf16.msra.mxu0 %v3351
    %4547 = vmatprep.subr.bf16.mxu0 %v3356
    %4548 = vmatpush1.bf16.msra.mxu0 %v3355
    %4549 = vmatprep.subr.bf16.mxu0 %v3360
    %4550 = vmatpush1.bf16.msra.mxu0 %v3359
    %4551 = vmatprep.subr.bf16.mxu0 %v3364
    %4552 = vmatpush1.bf16.msra.mxu0 %v3363
    %4553 = vmatprep.subr.bf16.mxu0 %v3368
    %4554 = vmatpush1.bf16.msra.mxu0 %v3367
    %4555 = vmatprep.subr.bf16.mxu0 %v3372
    %4556 = vmatpush1.bf16.msra.mxu0 %v3371
    %4557 = vmatprep.subr.bf16.mxu0 %v3376
    %4558 = vmatpush1.bf16.msra.mxu0 %v3375
    %4559 = vmatprep.mubr.bf16.mxu0 %v1374
    %4560 = vmatmul.mubr.bf16.gmra.mrb[0].mxu0 %v1373
    %v4561 = vpop.f32.mrb[0].mxu0
    %v4562 = vadd.f32 %v4521, %v4561
    %v4563 = vpop.f32.mrb[0].mxu0
    %v4564 = vadd.f32 %v4523, %v4563
    %v4565 = vpop.f32.mrb[0].mxu0
    %v4566 = vpop.f32.mrb[0].mxu0
    %4567 = vdwg.mxu0
    %4568 = vmatprep.subr.bf16.mxu0 %v3380
    %4569 = vmatpush1.bf16.msra.mxu0 %v3379
    %4570 = vmatprep.subr.bf16.mxu0 %v3384
    %4571 = vmatpush1.bf16.msra.mxu0 %v3383
    %4572 = vmatprep.subr.bf16.mxu0 %v3388
    %4573 = vmatpush1.bf16.msra.mxu0 %v3387
    %4574 = vmatprep.subr.bf16.mxu0 %v3392
    %4575 = vmatpush1.bf16.msra.mxu0 %v3391
    %4576 = vmatprep.subr.bf16.mxu0 %v3396
    %4577 = vmatpush1.bf16.msra.mxu0 %v3395
    %4578 = vmatprep.subr.bf16.mxu0 %v3400
    %4579 = vmatpush1.bf16.msra.mxu0 %v3399
    %4580 = vmatprep.subr.bf16.mxu0 %v3404
    %4581 = vmatpush1.bf16.msra.mxu0 %v3403
    %4582 = vmatprep.subr.bf16.mxu0 %v3408
    %4583 = vmatpush1.bf16.msra.mxu0 %v3407
    %4584 = vmatprep.subr.bf16.mxu0 %v3412
    %4585 = vmatpush1.bf16.msra.mxu0 %v3411
    %4586 = vmatprep.subr.bf16.mxu0 %v3416
    %4587 = vmatpush1.bf16.msra.mxu0 %v3415
    %4588 = vmatprep.subr.bf16.mxu0 %v3420
    %4589 = vmatpush1.bf16.msra.mxu0 %v3419
    %4590 = vmatprep.subr.bf16.mxu0 %v3424
    %4591 = vmatpush1.bf16.msra.mxu0 %v3423
    %4592 = vmatprep.subr.bf16.mxu0 %v3428
    %4593 = vmatpush1.bf16.msra.mxu0 %v3427
    %4594 = vmatprep.subr.bf16.mxu0 %v3432
    %4595 = vmatpush1.bf16.msra.mxu0 %v3431
    %4596 = vmatprep.subr.bf16.mxu0 %v3436
    %4597 = vmatpush1.bf16.msra.mxu0 %v3435
    %4598 = vmatprep.subr.bf16.mxu0 %v3440
    %4599 = vmatpush1.bf16.msra.mxu0 %v3439
    %4600 = vmatprep.mubr.bf16.mxu0 %v1376
    %4601 = vmatmul.mubr.bf16.gmra.mrb[0].mxu0 %v1375
    %v4602 = vpop.f32.mrb[0].mxu0
    %v4603 = vadd.f32 %v4562, %v4602
    %v4604 = vpop.f32.mrb[0].mxu0
    %v4605 = vadd.f32 %v4564, %v4604
    %v4606 = vpop.f32.mrb[0].mxu0
    %v4607 = vpop.f32.mrb[0].mxu0
    %4608 = vdwg.mxu0
    %vm4609 = vcmp.gt.f32.partialorder %v4275, 0.0
    %vm4610 = vcmp.gt.f32.partialorder %v4277, 0.0
    %vm4611 = vcmp.gt.f32.partialorder %v4603, 0.0
    %vm4612 = vcmp.gt.f32.partialorder %v4605, 0.0
    %v4613 = vmul.f32 %v4275, 0.2
    %v4614 = vmul.f32 %v4277, 0.2
    %v4615 = vmul.f32 %v4603, 0.2
    %v4616 = vmul.f32 %v4605, 0.2
    %v4617 = vsel %vm4609, %v4275, %v4613
    %v4618 = vsel %vm4610, %v4277, %v4614
    %v4619 = vsel %vm4611, %v4603, %v4615
    %v4620 = vsel %vm4612, %v4605, %v4616
    %v4621 = vpack.c.bf16 %v4617, %v4617
    %v4622 = vpack.c.bf16 %v4618, %v4618
    %v4623 = vpack.c.bf16 %v4619, %v4619
    %v4624 = vpack.c.bf16 %v4620, %v4620
    %v4625 = vld [vmem:[#allocation7] sm:$0xf]
    %v4626 = vld [vmem:[#allocation7 + $0x4] sm:$0xf]
    %v4627 = vld [vmem:[#allocation7 + $0x8] sm:$0xf]
    %v4628 = vld [vmem:[#allocation7 + $0xc] sm:$0xf]
    %v4629 = vld [vmem:[#allocation7 + $0x10] sm:$0xf]
    %v4630 = vld [vmem:[#allocation7 + $0x14] sm:$0xf]
    %v4631 = vld [vmem:[#allocation7 + $0x18] sm:$0xf]
    %v4632 = vld [vmem:[#allocation7 + $0x1c] sm:$0xf]
    %v4633 = vld [vmem:[#allocation7 + $0x20] sm:$0xf]
    %v4634 = vld [vmem:[#allocation7 + $0x24] sm:$0xf]
    %v4635 = vld [vmem:[#allocation7 + $0x28] sm:$0xf]
    %v4636 = vld [vmem:[#allocation7 + $0x2c] sm:$0xf]
    %v4637 = vld [vmem:[#allocation7 + $0x30] sm:$0xf]
    %v4638 = vld [vmem:[#allocation7 + $0x34] sm:$0xf]
    %v4639 = vld [vmem:[#allocation7 + $0x38] sm:$0xf]
    %v4640 = vld [vmem:[#allocation7 + $0x3c] sm:$0xf]
    %v4641 = vld [vmem:[#allocation7 + $0x40] sm:$0xf]
    %v4642 = vld [vmem:[#allocation7 + $0x44] sm:$0xf]
    %v4643 = vld [vmem:[#allocation7 + $0x48] sm:$0xf]
    %v4644 = vld [vmem:[#allocation7 + $0x4c] sm:$0xf]
    %v4645 = vld [vmem:[#allocation7 + $0x50] sm:$0xf]
    %v4646 = vld [vmem:[#allocation7 + $0x54] sm:$0xf]
    %v4647 = vld [vmem:[#allocation7 + $0x58] sm:$0xf]
    %v4648 = vld [vmem:[#allocation7 + $0x5c] sm:$0xf]
    %v4649 = vld [vmem:[#allocation7 + $0x60] sm:$0xf]
    %v4650 = vld [vmem:[#allocation7 + $0x64] sm:$0xf]
    %v4651 = vld [vmem:[#allocation7 + $0x68] sm:$0xf]
    %v4652 = vld [vmem:[#allocation7 + $0x6c] sm:$0xf]
    %v4653 = vld [vmem:[#allocation7 + $0x70] sm:$0xf]
    %v4654 = vld [vmem:[#allocation7 + $0x74] sm:$0xf]
    %v4655 = vld [vmem:[#allocation7 + $0x78] sm:$0xf]
    %v4656 = vld [vmem:[#allocation7 + $0x7c] sm:$0xf]
    %v4657 = vld [vmem:[#allocation7 + $0x80] sm:$0xf]
    %v4658 = vld [vmem:[#allocation7 + $0x84] sm:$0xf]
    %v4659 = vld [vmem:[#allocation7 + $0x88] sm:$0xf]
    %v4660 = vld [vmem:[#allocation7 + $0x8c] sm:$0xf]
    %v4661 = vld [vmem:[#allocation7 + $0x90] sm:$0xf]
    %v4662 = vld [vmem:[#allocation7 + $0x94] sm:$0xf]
    %v4663 = vld [vmem:[#allocation7 + $0x98] sm:$0xf]
    %v4664 = vld [vmem:[#allocation7 + $0x9c] sm:$0xf]
    %v4665 = vld [vmem:[#allocation7 + $0xa0] sm:$0xf]
    %v4666 = vld [vmem:[#allocation7 + $0xa4] sm:$0xf]
    %v4667 = vld [vmem:[#allocation7 + $0xa8] sm:$0xf]
    %v4668 = vld [vmem:[#allocation7 + $0xac] sm:$0xf]
    %v4669 = vld [vmem:[#allocation7 + $0xb0] sm:$0xf]
    %v4670 = vld [vmem:[#allocation7 + $0xb4] sm:$0xf]
    %v4671 = vld [vmem:[#allocation7 + $0xb8] sm:$0xf]
    %v4672 = vld [vmem:[#allocation7 + $0xbc] sm:$0xf]
    %v4673 = vld [vmem:[#allocation7 + $0xc0] sm:$0xf]
    %v4674 = vld [vmem:[#allocation7 + $0xc4] sm:$0xf]
    %v4675 = vld [vmem:[#allocation7 + $0xc8] sm:$0xf]
    %v4676 = vld [vmem:[#allocation7 + $0xcc] sm:$0xf]
    %v4677 = vld [vmem:[#allocation7 + $0xd0] sm:$0xf]
    %v4678 = vld [vmem:[#allocation7 + $0xd4] sm:$0xf]
    %v4679 = vld [vmem:[#allocation7 + $0xd8] sm:$0xf]
    %v4680 = vld [vmem:[#allocation7 + $0xdc] sm:$0xf]
    %v4681 = vld [vmem:[#allocation7 + $0xe0] sm:$0xf]
    %v4682 = vld [vmem:[#allocation7 + $0xe4] sm:$0xf]
    %v4683 = vld [vmem:[#allocation7 + $0xe8] sm:$0xf]
    %v4684 = vld [vmem:[#allocation7 + $0xec] sm:$0xf]
    %v4685 = vld [vmem:[#allocation7 + $0xf0] sm:$0xf]
    %v4686 = vld [vmem:[#allocation7 + $0xf4] sm:$0xf]
    %v4687 = vld [vmem:[#allocation7 + $0xf8] sm:$0xf]
    %v4688 = vld [vmem:[#allocation7 + $0xfc] sm:$0xf]
    %v4689 = vld [vmem:[#allocation8] sm:$0x1]
    %v4691 = vlaneseq
    %v4692 = vshrl.u32 %v4691, 7
    %v4693 = vsub.s32 0, %v4692
    %v4694 = vrot.slane %v4689, %v4693
    %v4760 = vunpack.c.l.b16 %v4625
    %v4761 = vunpack.c.l.b16 %v4626
    %v4762 = vunpack.c.l.b16 %v4627
    %v4763 = vunpack.c.l.b16 %v4628
    %v4764 = vunpack.c.l.b16 %v4629
    %v4765 = vunpack.c.l.b16 %v4630
    %v4766 = vunpack.c.l.b16 %v4631
    %v4767 = vunpack.c.l.b16 %v4632
    %v4768 = vunpack.c.l.b16 %v4633
    %v4769 = vunpack.c.l.b16 %v4634
    %v4770 = vunpack.c.l.b16 %v4635
    %v4771 = vunpack.c.l.b16 %v4636
    %v4772 = vunpack.c.l.b16 %v4637
    %v4773 = vunpack.c.l.b16 %v4638
    %v4774 = vunpack.c.l.b16 %v4639
    %v4775 = vunpack.c.l.b16 %v4640
    %v4776 = vunpack.c.l.b16 %v4641
    %v4777 = vunpack.c.l.b16 %v4642
    %v4778 = vunpack.c.l.b16 %v4643
    %v4779 = vunpack.c.l.b16 %v4644
    %v4780 = vunpack.c.l.b16 %v4645
    %v4781 = vunpack.c.l.b16 %v4646
    %v4782 = vunpack.c.l.b16 %v4647
    %v4783 = vunpack.c.l.b16 %v4648
    %v4784 = vunpack.c.l.b16 %v4649
    %v4785 = vunpack.c.l.b16 %v4650
    %v4786 = vunpack.c.l.b16 %v4651
    %v4787 = vunpack.c.l.b16 %v4652
    %v4788 = vunpack.c.l.b16 %v4653
    %v4789 = vunpack.c.l.b16 %v4654
    %v4790 = vunpack.c.l.b16 %v4655
    %v4791 = vunpack.c.l.b16 %v4656
    %v4792 = vunpack.c.l.b16 %v4657
    %v4793 = vunpack.c.l.b16 %v4658
    %v4794 = vunpack.c.l.b16 %v4659
    %v4795 = vunpack.c.l.b16 %v4660
    %v4796 = vunpack.c.l.b16 %v4661
    %v4797 = vunpack.c.l.b16 %v4662
    %v4798 = vunpack.c.l.b16 %v4663
    %v4799 = vunpack.c.l.b16 %v4664
    %v4800 = vunpack.c.l.b16 %v4665
    %v4801 = vunpack.c.l.b16 %v4666
    %v4802 = vunpack.c.l.b16 %v4667
    %v4803 = vunpack.c.l.b16 %v4668
    %v4804 = vunpack.c.l.b16 %v4669
    %v4805 = vunpack.c.l.b16 %v4670
    %v4806 = vunpack.c.l.b16 %v4671
    %v4807 = vunpack.c.l.b16 %v4672
    %v4808 = vunpack.c.l.b16 %v4673
    %v4809 = vunpack.c.l.b16 %v4674
    %v4810 = vunpack.c.l.b16 %v4675
    %v4811 = vunpack.c.l.b16 %v4676
    %v4812 = vunpack.c.l.b16 %v4677
    %v4813 = vunpack.c.l.b16 %v4678
    %v4814 = vunpack.c.l.b16 %v4679
    %v4815 = vunpack.c.l.b16 %v4680
    %v4816 = vunpack.c.l.b16 %v4681
    %v4817 = vunpack.c.l.b16 %v4682
    %v4818 = vunpack.c.l.b16 %v4683
    %v4819 = vunpack.c.l.b16 %v4684
    %v4820 = vunpack.c.l.b16 %v4685
    %v4821 = vunpack.c.l.b16 %v4686
    %v4822 = vunpack.c.l.b16 %v4687
    %v4823 = vunpack.c.l.b16 %v4688
    %v4824 = vpack.c.b16 %v4761, %v4760
    %v4825 = vpack.c.b16 %v4763, %v4762
    %v4826 = vpack.c.b16 %v4765, %v4764
    %v4827 = vpack.c.b16 %v4767, %v4766
    %v4828 = vpack.c.b16 %v4769, %v4768
    %v4829 = vpack.c.b16 %v4771, %v4770
    %v4830 = vpack.c.b16 %v4773, %v4772
    %v4831 = vpack.c.b16 %v4775, %v4774
    %v4832 = vpack.c.b16 %v4777, %v4776
    %v4833 = vpack.c.b16 %v4779, %v4778
    %v4834 = vpack.c.b16 %v4781, %v4780
    %v4835 = vpack.c.b16 %v4783, %v4782
    %v4836 = vpack.c.b16 %v4785, %v4784
    %v4837 = vpack.c.b16 %v4787, %v4786
    %v4838 = vpack.c.b16 %v4789, %v4788
    %v4839 = vpack.c.b16 %v4791, %v4790
    %v4840 = vpack.c.b16 %v4793, %v4792
    %v4841 = vpack.c.b16 %v4795, %v4794
    %v4842 = vpack.c.b16 %v4797, %v4796
    %v4843 = vpack.c.b16 %v4799, %v4798
    %v4844 = vpack.c.b16 %v4801, %v4800
    %v4845 = vpack.c.b16 %v4803, %v4802
    %v4846 = vpack.c.b16 %v4805, %v4804
    %v4847 = vpack.c.b16 %v4807, %v4806
    %v4848 = vpack.c.b16 %v4809, %v4808
    %v4849 = vpack.c.b16 %v4811, %v4810
    %v4850 = vpack.c.b16 %v4813, %v4812
    %v4851 = vpack.c.b16 %v4815, %v4814
    %v4852 = vpack.c.b16 %v4817, %v4816
    %v4853 = vpack.c.b16 %v4819, %v4818
    %v4854 = vpack.c.b16 %v4821, %v4820
    %v4855 = vpack.c.b16 %v4823, %v4822
    %4888 = vmatprep.subr.bf16.mxu0 0
    %4889 = vmatpush1.bf16.msra.mxu0 %v4824
    %4890 = vmatprep.subr.bf16.mxu0 0
    %4891 = vmatpush1.bf16.msra.mxu0 %v4825
    %4892 = vmatprep.subr.bf16.mxu0 0
    %4893 = vmatpush1.bf16.msra.mxu0 %v4826
    %4894 = vmatprep.subr.bf16.mxu0 0
    %4895 = vmatpush1.bf16.msra.mxu0 %v4827
    %4896 = vmatprep.subr.bf16.mxu0 0
    %4897 = vmatpush1.bf16.msra.mxu0 %v4828
    %4898 = vmatprep.subr.bf16.mxu0 0
    %4899 = vmatpush1.bf16.msra.mxu0 %v4829
    %4900 = vmatprep.subr.bf16.mxu0 0
    %4901 = vmatpush1.bf16.msra.mxu0 %v4830
    %4902 = vmatprep.subr.bf16.mxu0 0
    %4903 = vmatpush1.bf16.msra.mxu0 %v4831
    %4904 = vmatprep.subr.bf16.mxu0 0
    %4905 = vmatpush1.bf16.msra.mxu0 %v4832
    %4906 = vmatprep.subr.bf16.mxu0 0
    %4907 = vmatpush1.bf16.msra.mxu0 %v4833
    %4908 = vmatprep.subr.bf16.mxu0 0
    %4909 = vmatpush1.bf16.msra.mxu0 %v4834
    %4910 = vmatprep.subr.bf16.mxu0 0
    %4911 = vmatpush1.bf16.msra.mxu0 %v4835
    %4912 = vmatprep.subr.bf16.mxu0 0
    %4913 = vmatpush1.bf16.msra.mxu0 %v4836
    %4914 = vmatprep.subr.bf16.mxu0 0
    %4915 = vmatpush1.bf16.msra.mxu0 %v4837
    %4916 = vmatprep.subr.bf16.mxu0 0
    %4917 = vmatpush1.bf16.msra.mxu0 %v4838
    %4918 = vmatprep.subr.bf16.mxu0 0
    %4919 = vmatpush1.bf16.msra.mxu0 %v4839
    %4920 = vmatprep.mubr.bf16.mxu0 %v4622
    %4921 = vmatmul.mubr.bf16.gmra.mrb[0].mxu0 %v4621
    %v4922 = vpop.f32.mrb[0].mxu0
    %v4923 = vadd.f32 %v4694, %v4922
    %v4924 = vpop.f32.mrb[0].mxu0
    %v4925 = vpop.f32.mrb[0].mxu0
    %v4926 = vpop.f32.mrb[0].mxu0
    %4927 = vdwg.mxu0
    %4928 = vmatprep.subr.bf16.mxu0 0
    %4929 = vmatpush1.bf16.msra.mxu0 %v4840
    %4930 = vmatprep.subr.bf16.mxu0 0
    %4931 = vmatpush1.bf16.msra.mxu0 %v4841
    %4932 = vmatprep.subr.bf16.mxu0 0
    %4933 = vmatpush1.bf16.msra.mxu0 %v4842
    %4934 = vmatprep.subr.bf16.mxu0 0
    %4935 = vmatpush1.bf16.msra.mxu0 %v4843
    %4936 = vmatprep.subr.bf16.mxu0 0
    %4937 = vmatpush1.bf16.msra.mxu0 %v4844
    %4938 = vmatprep.subr.bf16.mxu0 0
    %4939 = vmatpush1.bf16.msra.mxu0 %v4845
    %4940 = vmatprep.subr.bf16.mxu0 0
    %4941 = vmatpush1.bf16.msra.mxu0 %v4846
    %4942 = vmatprep.subr.bf16.mxu0 0
    %4943 = vmatpush1.bf16.msra.mxu0 %v4847
    %4944 = vmatprep.subr.bf16.mxu0 0
    %4945 = vmatpush1.bf16.msra.mxu0 %v4848
    %4946 = vmatprep.subr.bf16.mxu0 0
    %4947 = vmatpush1.bf16.msra.mxu0 %v4849
    %4948 = vmatprep.subr.bf16.mxu0 0
    %4949 = vmatpush1.bf16.msra.mxu0 %v4850
    %4950 = vmatprep.subr.bf16.mxu0 0
    %4951 = vmatpush1.bf16.msra.mxu0 %v4851
    %4952 = vmatprep.subr.bf16.mxu0 0
    %4953 = vmatpush1.bf16.msra.mxu0 %v4852
    %4954 = vmatprep.subr.bf16.mxu0 0
    %4955 = vmatpush1.bf16.msra.mxu0 %v4853
    %4956 = vmatprep.subr.bf16.mxu0 0
    %4957 = vmatpush1.bf16.msra.mxu0 %v4854
    %4958 = vmatprep.subr.bf16.mxu0 0
    %4959 = vmatpush1.bf16.msra.mxu0 %v4855
    %4960 = vmatprep.mubr.bf16.mxu0 %v4624
    %4961 = vmatmul.mubr.bf16.gmra.mrb[0].mxu0 %v4623
    %v4962 = vpop.f32.mrb[0].mxu0
    %v4963 = vadd.f32 %v4923, %v4962
    %v4964 = vpop.f32.mrb[0].mxu0
    %v4965 = vpop.f32.mrb[0].mxu0
    %v4966 = vpop.f32.mrb[0].mxu0
    %4967 = vdwg.mxu0
    %4968 = vst [vmem:[#allocation10] sm:$0x3] %v4963
    // Predicated region
    $region38: #{tpu_custom_call.1} parent=1 // pred_check
      _
    $region39: #{tpu_custom_call.1} parent=1 // pred_check_branch
      %4970 = sbr.rel (0) target = $region41
    $region40: #{tpu_custom_call.1} parent=1 // pred_region
      %s4972 = ssub.s32 32, 32
      %4973 = vsyncadd [#allocation4], %s4972
      %s4975 = sshll.u32 [#allocation10], 4
      %s4976 = int_to_ptr.vmem [resolvable:$true] %s4975
      %4978 = dma.vmem_to_hbm [thread:$0]  %s4976, 32, %s5, [#allocation4]
    $region41: #{tpu_custom_call.1} parent=1 // pred_fallthru
      _
    // Predicated region
    $region42: #{tpu_custom_call.1} parent=1 // pred_check
      _
    $region43: #{tpu_custom_call.1} parent=1 // pred_check_branch
      %4980 = sbr.rel (0) target = $region45
    $region44: #{tpu_custom_call.1} parent=1 // pred_region
      %4981 = dma.done [#allocation4], 32
    $region45: #{tpu_custom_call.1} parent=1 // pred_fallthru
      _
    %4982 = vsyncpa [#allocation3], 1
    %4983 = vsyncpa [#allocation6], 1
    %4984 = vsyncpa [#allocation9], 1
    %4985 = vsyncpa [#allocation4], 1

</llo_original>
